<compile_context>
chip_gen: v6e
topology: v6e:2x2x1
jax: 0.10.0
libtpu: 0.0.40
codegen_flags: <defaults>
</compile_context>

<pallas_src>
import math
from functools import partial, lru_cache

import numpy as np
import jax
import jax.numpy as jnp
from jax.experimental import pallas as pl
from jax.experimental.pallas import tpu as pltpu

# ----------------------------- module hyper-params -----------------------------
WINDOW = 16          # get_views(64, 16, 4)
STRIDE = 4
VIDEO_LEN = 64
NW_PAD = 128         # window axis padded to a full lane width -> aligned MXU matmuls

# MXU operand dtype (f32 accumulation everywhere). bf16 per perf review; set to jnp.float32 to
# recover bit-tight numerics (the test tolerance tightens automatically).
MXU_DTYPE = jnp.bfloat16


# ----------------------------- static window tables (host-side) -----------------
@lru_cache(maxsize=None)
def _window_constants(n):
    """Sliding-window tables for get_views(n, WINDOW, STRIDE), computed once on the host."""
    nw = (n - WINDOW) // STRIDE + 1
    assert nw <= NW_PAD
    wmat = np.zeros((n, NW_PAD), np.float32)            # wmat[i, w] = 1 iff frame i in window w
    for w in range(nw):
        wmat[w * STRIDE: w * STRIDE + WINDOW, w] = 1.0
    count = wmat.sum(axis=1, keepdims=True)             # overlaps per frame (>=1 everywhere)
    maskscale = (wmat / count).astype(np.float32)       # membership with 1/count folded in
    cov = (wmat @ wmat.T) > 0.0                         # (i, j) share at least one window
    covbias = np.where(cov, 0.0, -1e30).astype(np.float32)
    return wmat, maskscale, covbias


# ----------------------------- fused Pallas kernel ------------------------------
def _fused_window_attn_kernel(x_ref, wqkv_ref, wo_ref, bo_ref, wmat_ref, wmat_t_ref,
                              msk_ref, covb_ref, o_ref, merged_ref, *,
                              heads, dim_head, scale):
    """Whole CrossAttention forward for one block of batch elements per grid step.

    x_ref      : (B_BLK, N, C)     input tokens (MXU dtype)
    wqkv_ref   : (C, 3*inner)      concatenated to_q | to_k | to_v weights (MXU dtype)
    wo_ref     : (inner, C)        to_out[0] weight (MXU dtype)
    bo_ref     : (1, C)            to_out[0] bias (f32)
    wmat_ref   : (N, NW_PAD)       0/1 window membership (MXU dtype, exact)
    wmat_t_ref : (NW_PAD, N)       its transpose (avoids an in-kernel transpose)
    msk_ref    : (N, NW_PAD) f32   membership / overlap-count (folds the final average)
    covb_ref   : (N, N)      f32   0 where (i, j) share a window, -1e30 otherwise
    o_ref      : (B_BLK, N, C)     output (f32)
    merged_ref : (B_BLK, N, inner) VMEM scratch holding the merged per-head PV results
    """
    bb, n, c = x_ref.shape
    inner = heads * dim_head
    hb = heads * bb

    # ---- QKV projection: one (bb*n, c) @ (c, 3*inner) MXU matmul (bf16 in, f32 acc) ----
    x = x_ref[...].reshape(bb * n, c)
    qkv = jnp.dot(x, wqkv_ref[...], preferred_element_type=jnp.float32)
    q = (qkv[:, :inner] * scale).reshape(bb, n, inner)      # fold attention scale into q once
    k = qkv[:, inner:2 * inner].reshape(bb, n, inner)
    v = qkv[:, 2 * inner:].reshape(bb, n, inner)

    wmat = wmat_ref[...]                                     # (n, NW_PAD), MXU dtype
    wmat_t = wmat_t_ref[...]                                 # (NW_PAD, n)
    msk = msk_ref[...][None]                                 # (1, n, NW_PAD) f32
    covb = jnp.broadcast_to(covb_ref[...][None], (bb, n, n))  # hoisted out of the head loop

    # ---- per-head scores -> masked softmax numerators (exp on the EUP, f32) ----
    e_list, v_list = [], []
    for h in range(heads):
        cs = slice(h * dim_head, (h + 1) * dim_head)
        qh = q[:, :, cs].astype(wmat.dtype)
        kh = k[:, :, cs].astype(wmat.dtype)
        v_list.append(v[:, :, cs].astype(wmat.dtype))
        sim = jnp.einsum('bid,bjd->bij', qh, kh,
                         preferred_element_type=jnp.float32)             # (bb, n, n)
        # restrict shared row max / exp to columns that share a window with row i: the shared
        # max still cancels per window, and never-used logits cannot under/overflow anything.
        sim = sim + covb
        e_list.append(jnp.exp(sim - jnp.max(sim, axis=-1, keepdims=True)))

    # ---- all 13 window softmax denominators for every (head, batch) row: ONE stacked matmul ----
    e_all = jnp.concatenate(e_list, axis=0)                               # (hb, n, n) f32
    l = jnp.dot(e_all.reshape(hb * n, n).astype(wmat.dtype), wmat,
                preferred_element_type=jnp.float32).reshape(hb, n, NW_PAD)
    # masked reciprocal on the EUP; +1 in dead slots avoids 1/0, msk both masks and averages
    l_safe = l + (msk == 0.0).astype(jnp.float32)
    r = pl.reciprocal(l_safe, approx=True) * msk                          # (hb, n, NW_PAD)
    # scatter per-window denominators back to (i, j): second stacked matmul against wmat^T
    s = jnp.dot(r.reshape(hb * n, NW_PAD).astype(wmat.dtype), wmat_t,
                preferred_element_type=jnp.float32).reshape(hb, n, n)
    p_all = (e_all * s).astype(wmat.dtype)    # fused, overlap-averaged window-attention weights

    # ---- PV per head, written lane-dense into the merged-heads scratch ----
    for h in range(heads):
        out_h = jnp.einsum('bij,bjd->bid', p_all[h * bb:(h + 1) * bb], v_list[h],
                           preferred_element_type=jnp.float32)            # (bb, n, dim_head)
        merged_ref[:, :, h * dim_head:(h + 1) * dim_head] = out_h

    # ---- output projection on the lane-dense merged scratch ----
    fused = merged_ref[...].reshape(bb * n, inner).astype(wmat.dtype)
    y = jnp.dot(fused, wo_ref[...], preferred_element_type=jnp.float32) + bo_ref[...]
    o_ref[...] = y.reshape(bb, n, c).astype(o_ref.dtype)


# ----------------------------- wrapper ------------------------------------------
def prepare_kernel_params(params):
    """Pre-fuse q/k/v projections and pre-cast weights to the MXU dtype (done once, offline)."""
    wqkv = jnp.concatenate([params["wq"], params["wk"], params["wv"]], axis=1)  # (qd, 3*inner)
    return {
        "wqkv": wqkv.astype(MXU_DTYPE),
        "wo": params["wo"].astype(MXU_DTYPE),
        "bo": params["bo"].reshape(1, -1).astype(jnp.float32),
    }


def cross_attention_forward(x, kparams, *, heads, dim_head):
    """CrossAttention.forward with context=None (self-attention, windowed fusion path)."""
    b, n, qd = x.shape
    assert n == VIDEO_LEN, "windowed path assumes temporal length 64 (get_views(64,16,4))"
    inner = heads * dim_head
    scale = dim_head ** (-0.5)

    # Static window tables (host-side) passed as tiny constant inputs.
    wmat_np, maskscale_np, covbias_np = _window_constants(n)
    wmat = jnp.asarray(wmat_np, MXU_DTYPE)               # 0/1, exactly representable
    wmat_t = jnp.asarray(wmat_np.T.copy(), MXU_DTYPE)
    maskscale = jnp.asarray(maskscale_np)                # f32 (keeps 1/3 etc. accurate)
    covbias = jnp.asarray(covbias_np)                    # f32

    # Fold as much batch as possible into each grid step (bigger MXU M) while keeping >=2
    # "parallel" steps so both v7x TensorCores get work; one extra step costs ~0.35us elsewhere.
    b_blk = b // 2 if (b % 2 == 0 and b > 1) else 1
    grid = (b // b_blk,)

    kernel = partial(_fused_window_attn_kernel, heads=heads, dim_head=dim_head, scale=scale)
    return pl.pallas_call(
        kernel,
        out_shape=jax.ShapeDtypeStruct((b, n, qd), jnp.float32),
        grid=grid,
        in_specs=[
            pl.BlockSpec((b_blk, n, qd), lambda i: (i, 0, 0)),        # x
            pl.BlockSpec((qd, 3 * inner), lambda i: (0, 0)),          # wqkv
            pl.BlockSpec((inner, qd), lambda i: (0, 0)),              # wo
            pl.BlockSpec((1, qd), lambda i: (0, 0)),                  # bo
            pl.BlockSpec((n, NW_PAD), lambda i: (0, 0)),              # wmat
            pl.BlockSpec((NW_PAD, n), lambda i: (0, 0)),              # wmat^T
            pl.BlockSpec((n, NW_PAD), lambda i: (0, 0)),              # membership / count
            pl.BlockSpec((n, n), lambda i: (0, 0)),                   # joint-coverage bias
        ],
        out_specs=pl.BlockSpec((b_blk, n, qd), lambda i: (i, 0, 0)),
        scratch_shapes=[pltpu.VMEM((b_blk, n, inner), jnp.float32)],
        compiler_params=pltpu.CompilerParams(dimension_semantics=("parallel",)),
    )(x.astype(MXU_DTYPE), kparams["wqkv"], kparams["wo"], kparams["bo"],
      wmat, wmat_t, maskscale, covbias)


# ----------------------------- pure-JAX reference -------------------------------
def reference_forward(x, params, *, heads, dim_head):
    b, n, qd = x.shape
    scale = dim_head ** (-0.5)
    xf = x.reshape(b * n, qd)
    q = xf @ params["wq"]
    k = xf @ params["wk"]
    v = xf @ params["wv"]

    def split_heads(t):
        return (t.reshape(b, n, heads, dim_head)
                 .transpose(0, 2, 1, 3)
                 .reshape(b * heads, n, dim_head))

    qh, kh, vh = map(split_heads, (q, k, v))
    value = jnp.zeros_like(qh)
    count = jnp.zeros_like(qh)
    for s in range(0, n - WINDOW + 1, STRIDE):
        qq, kk, vv = qh[:, s:s + WINDOW], kh[:, s:s + WINDOW], vh[:, s:s + WINDOW]
        sim = jnp.einsum("bid,bjd->bij", qq, kk) * scale
        p = jax.nn.softmax(sim, axis=-1)
        out = jnp.einsum("bij,bjd->bid", p, vv)
        value = value.at[:, s:s + WINDOW].add(out)
        count = count.at[:, s:s + WINDOW].add(1.0)
    fo = jnp.where(count > 0, value / count, value)
    fo = (fo.reshape(b, heads, n, dim_head)
            .transpose(0, 2, 1, 3)
            .reshape(b * n, heads * dim_head))
    return (fo @ params["wo"] + params["bo"]).reshape(b, n, qd)


# ----------------------------- main ---------------------------------------------
if __name__ == "__main__":
    B, N, QUERY_DIM = 4, VIDEO_LEN, 128
    HEADS, DIM_HEAD = 4, 32
    INNER = HEADS * DIM_HEAD   # 128 -> lane-dense merged heads / output

    key = jax.random.PRNGKey(0)
    kx, kq, kk_, kv, kw, kb = jax.random.split(key, 6)

    def init(k, shape, fan_in):
        bound = 1.0 / math.sqrt(fan_in)
        return jax.random.uniform(k, shape, jnp.float32, -bound, bound)

    params = {
        "wq": init(kq, (QUERY_DIM, INNER), QUERY_DIM),   # to_q.weight.T
        "wk": init(kk_, (QUERY_DIM, INNER), QUERY_DIM),  # to_k.weight.T (context_dim=query_dim)
        "wv": init(kv, (QUERY_DIM, INNER), QUERY_DIM),   # to_v.weight.T
        "wo": init(kw, (INNER, QUERY_DIM), INNER),       # to_out[0].weight.T
        "bo": init(kb, (QUERY_DIM,), INNER),             # to_out[0].bias
    }
    kparams = prepare_kernel_params(params)              # offline weight fusion + dtype cast

    x = jax.random.normal(kx, (B, N, QUERY_DIM), jnp.float32)

    fwd = jax.jit(partial(cross_attention_forward, heads=HEADS, dim_head=DIM_HEAD))
    y = jax.block_until_ready(fwd(x, kparams))

    y_ref = reference_forward(x, params, heads=HEADS, dim_head=DIM_HEAD)
    assert y.shape == (B, N, QUERY_DIM)
    # bf16 MXU operands (per perf review) vs. the pure-f32 reference: allow bf16-level rounding.
    tol = 2e-3 if MXU_DTYPE == jnp.float32 else 1e-2
    max_err = float(jnp.max(jnp.abs(y - y_ref)))
    assert jnp.allclose(y, y_ref, atol=tol, rtol=tol), max_err
    print("KERNEL_OK")
</pallas_src>

<mosaic_0001>
module attributes {stable_mosaic.version = 11 : i64} {
  func.func @_fused_window_attn_kernel(%arg0: i32, %arg1: memref<2x64x128xbf16, #tpu.memory_space<vmem>>, %arg2: memref<128x384xbf16, #tpu.memory_space<vmem>>, %arg3: memref<128x128xbf16, #tpu.memory_space<vmem>>, %arg4: memref<1x128xf32, #tpu.memory_space<vmem>>, %arg5: memref<64x128xbf16, #tpu.memory_space<vmem>>, %arg6: memref<128x64xbf16, #tpu.memory_space<vmem>>, %arg7: memref<64x128xf32, #tpu.memory_space<vmem>>, %arg8: memref<64x64xf32, #tpu.memory_space<vmem>>, %arg9: memref<2x64x128xf32, #tpu.memory_space<vmem>>, %arg10: memref<2x64x128xf32, #tpu.memory_space<vmem>>) attributes {dimension_semantics = [#tpu.dimension_semantics<parallel>], iteration_bounds = array<i64: 2>, scalar_prefetch = 0 : i64, scratch_operands = 1 : i64, tpu.core_type = #tpu.core_type<tc>, window_params = [{transform_indices = @transform_0, window_bounds = array<i64: 2, 64, 128>}, {pipeline_mode = #tpu.pipeline_mode<synchronous>, transform_indices = @transform_1, window_bounds = array<i64: 128, 384>}, {pipeline_mode = #tpu.pipeline_mode<synchronous>, transform_indices = @transform_2, window_bounds = array<i64: 128, 128>}, {pipeline_mode = #tpu.pipeline_mode<synchronous>, transform_indices = @transform_3, window_bounds = array<i64: 1, 128>}, {pipeline_mode = #tpu.pipeline_mode<synchronous>, transform_indices = @transform_4, window_bounds = array<i64: 64, 128>}, {pipeline_mode = #tpu.pipeline_mode<synchronous>, transform_indices = @transform_5, window_bounds = array<i64: 128, 64>}, {pipeline_mode = #tpu.pipeline_mode<synchronous>, transform_indices = @transform_6, window_bounds = array<i64: 64, 128>}, {pipeline_mode = #tpu.pipeline_mode<synchronous>, transform_indices = @transform_7, window_bounds = array<i64: 64, 64>}, {transform_indices = @transform_8, window_bounds = array<i64: 2, 64, 128>}]} {
    %c0 = arith.constant 0 : index
    %c0_0 = arith.constant 0 : index
    %c0_1 = arith.constant 0 : index
    %0 = vector.load %arg1[%c0, %c0_0, %c0_1] : memref<2x64x128xbf16, #tpu.memory_space<vmem>>, vector<2x64x128xbf16>
    %1 = vector.shape_cast %0 : vector<2x64x128xbf16> to vector<128x128xbf16>
    %c0_2 = arith.constant 0 : index
    %c0_3 = arith.constant 0 : index
    %2 = vector.load %arg2[%c0_2, %c0_3] : memref<128x384xbf16, #tpu.memory_space<vmem>>, vector<128x384xbf16>
    %cst = arith.constant dense<0.000000e+00> : vector<128x384xf32>
    %3 = tpu.matmul %1, %2, %cst {dimension_numbers = #tpu.dot_dimension_numbers<[1], [0], [0], [1], [0, 0, 1, 1], [], []>} : vector<128x128xbf16>, vector<128x384xbf16>, vector<128x384xf32> -> vector<128x384xf32>
    %4 = vector.extract_strided_slice %3 {offsets = [0, 0], sizes = [128, 128], strides = [1, 1]} : vector<128x384xf32> to vector<128x128xf32>
    %cst_4 = arith.constant 0.176776692 : f32
    %5 = vector.broadcast %cst_4 : f32 to vector<128x128xf32>
    %6 = arith.mulf %4, %5 : vector<128x128xf32>
    %7 = vector.shape_cast %6 : vector<128x128xf32> to vector<2x64x128xf32>
    %8 = vector.extract_strided_slice %3 {offsets = [0, 128], sizes = [128, 128], strides = [1, 1]} : vector<128x384xf32> to vector<128x128xf32>
    %9 = vector.shape_cast %8 : vector<128x128xf32> to vector<2x64x128xf32>
    %10 = vector.extract_strided_slice %3 {offsets = [0, 256], sizes = [128, 128], strides = [1, 1]} : vector<128x384xf32> to vector<128x128xf32>
    %11 = vector.shape_cast %10 : vector<128x128xf32> to vector<2x64x128xf32>
    %c0_5 = arith.constant 0 : index
    %c0_6 = arith.constant 0 : index
    %12 = vector.load %arg5[%c0_5, %c0_6] : memref<64x128xbf16, #tpu.memory_space<vmem>>, vector<64x128xbf16>
    %c0_7 = arith.constant 0 : index
    %c0_8 = arith.constant 0 : index
    %13 = vector.load %arg6[%c0_7, %c0_8] : memref<128x64xbf16, #tpu.memory_space<vmem>>, vector<128x64xbf16>
    %c0_9 = arith.constant 0 : index
    %c0_10 = arith.constant 0 : index
    %14 = vector.load %arg7[%c0_9, %c0_10] : memref<64x128xf32, #tpu.memory_space<vmem>>, vector<64x128xf32>
    %15 = vector.shape_cast %14 : vector<64x128xf32> to vector<1x64x128xf32>
    %c0_11 = arith.constant 0 : index
    %c0_12 = arith.constant 0 : index
    %16 = vector.load %arg8[%c0_11, %c0_12] : memref<64x64xf32, #tpu.memory_space<vmem>>, vector<64x64xf32>
    %17 = vector.shape_cast %16 : vector<64x64xf32> to vector<1x64x64xf32>
    %18 = vector.shape_cast %17 : vector<1x64x64xf32> to vector<1x64x64xf32>
    %19 = vector.broadcast %18 : vector<1x64x64xf32> to vector<2x64x64xf32>
    %20 = vector.extract_strided_slice %7 {offsets = [0, 0, 0], sizes = [2, 64, 32], strides = [1, 1, 1]} : vector<2x64x128xf32> to vector<2x64x32xf32>
    %21 = arith.truncf %20 : vector<2x64x32xf32> to vector<2x64x32xbf16>
    %22 = vector.extract_strided_slice %9 {offsets = [0, 0, 0], sizes = [2, 64, 32], strides = [1, 1, 1]} : vector<2x64x128xf32> to vector<2x64x32xf32>
    %23 = arith.truncf %22 : vector<2x64x32xf32> to vector<2x64x32xbf16>
    %24 = vector.extract_strided_slice %11 {offsets = [0, 0, 0], sizes = [2, 64, 32], strides = [1, 1, 1]} : vector<2x64x128xf32> to vector<2x64x32xf32>
    %25 = arith.truncf %24 : vector<2x64x32xf32> to vector<2x64x32xbf16>
    "tpu.trace_start"() <{level = 10 : i32, message = "bid,bjd->bij"}> : () -> ()
    %cst_13 = arith.constant dense<0.000000e+00> : vector<2x64x64xf32>
    %26 = tpu.matmul %21, %23, %cst_13 {dimension_numbers = #tpu.dot_dimension_numbers<[2], [2], [1], [1], [0, 0, 0, 1, 1, 1], [0], [0]>} : vector<2x64x32xbf16>, vector<2x64x32xbf16>, vector<2x64x64xf32> -> vector<2x64x64xf32>
    "tpu.trace_stop"() : () -> ()
    %27 = arith.addf %26, %19 : vector<2x64x64xf32>
    %cst_14 = arith.constant dense<0xFF800000> : vector<2x64xf32>
    %28 = vector.multi_reduction <maximumf>, %27, %cst_14 [2] : vector<2x64x64xf32> to vector<2x64xf32>
    %29 = vector.shape_cast %28 : vector<2x64xf32> to vector<2x64x1xf32>
    %30 = vector.broadcast %29 : vector<2x64x1xf32> to vector<2x64x64xf32>
    %31 = arith.subf %27, %30 : vector<2x64x64xf32>
    %32 = math.exp %31 : vector<2x64x64xf32>
    %33 = vector.extract_strided_slice %7 {offsets = [0, 0, 32], sizes = [2, 64, 32], strides = [1, 1, 1]} : vector<2x64x128xf32> to vector<2x64x32xf32>
    %34 = arith.truncf %33 : vector<2x64x32xf32> to vector<2x64x32xbf16>
    %35 = vector.extract_strided_slice %9 {offsets = [0, 0, 32], sizes = [2, 64, 32], strides = [1, 1, 1]} : vector<2x64x128xf32> to vector<2x64x32xf32>
    %36 = arith.truncf %35 : vector<2x64x32xf32> to vector<2x64x32xbf16>
    %37 = vector.extract_strided_slice %11 {offsets = [0, 0, 32], sizes = [2, 64, 32], strides = [1, 1, 1]} : vector<2x64x128xf32> to vector<2x64x32xf32>
    %38 = arith.truncf %37 : vector<2x64x32xf32> to vector<2x64x32xbf16>
    "tpu.trace_start"() <{level = 10 : i32, message = "bid,bjd->bij"}> : () -> ()
    %cst_15 = arith.constant dense<0.000000e+00> : vector<2x64x64xf32>
    %39 = tpu.matmul %34, %36, %cst_15 {dimension_numbers = #tpu.dot_dimension_numbers<[2], [2], [1], [1], [0, 0, 0, 1, 1, 1], [0], [0]>} : vector<2x64x32xbf16>, vector<2x64x32xbf16>, vector<2x64x64xf32> -> vector<2x64x64xf32>
    "tpu.trace_stop"() : () -> ()
    %40 = arith.addf %39, %19 : vector<2x64x64xf32>
    %cst_16 = arith.constant dense<0xFF800000> : vector<2x64xf32>
    %41 = vector.multi_reduction <maximumf>, %40, %cst_16 [2] : vector<2x64x64xf32> to vector<2x64xf32>
    %42 = vector.shape_cast %41 : vector<2x64xf32> to vector<2x64x1xf32>
    %43 = vector.broadcast %42 : vector<2x64x1xf32> to vector<2x64x64xf32>
    %44 = arith.subf %40, %43 : vector<2x64x64xf32>
    %45 = math.exp %44 : vector<2x64x64xf32>
    %46 = vector.extract_strided_slice %7 {offsets = [0, 0, 64], sizes = [2, 64, 32], strides = [1, 1, 1]} : vector<2x64x128xf32> to vector<2x64x32xf32>
    %47 = arith.truncf %46 : vector<2x64x32xf32> to vector<2x64x32xbf16>
    %48 = vector.extract_strided_slice %9 {offsets = [0, 0, 64], sizes = [2, 64, 32], strides = [1, 1, 1]} : vector<2x64x128xf32> to vector<2x64x32xf32>
    %49 = arith.truncf %48 : vector<2x64x32xf32> to vector<2x64x32xbf16>
    %50 = vector.extract_strided_slice %11 {offsets = [0, 0, 64], sizes = [2, 64, 32], strides = [1, 1, 1]} : vector<2x64x128xf32> to vector<2x64x32xf32>
    %51 = arith.truncf %50 : vector<2x64x32xf32> to vector<2x64x32xbf16>
    "tpu.trace_start"() <{level = 10 : i32, message = "bid,bjd->bij"}> : () -> ()
    %cst_17 = arith.constant dense<0.000000e+00> : vector<2x64x64xf32>
    %52 = tpu.matmul %47, %49, %cst_17 {dimension_numbers = #tpu.dot_dimension_numbers<[2], [2], [1], [1], [0, 0, 0, 1, 1, 1], [0], [0]>} : vector<2x64x32xbf16>, vector<2x64x32xbf16>, vector<2x64x64xf32> -> vector<2x64x64xf32>
    "tpu.trace_stop"() : () -> ()
    %53 = arith.addf %52, %19 : vector<2x64x64xf32>
    %cst_18 = arith.constant dense<0xFF800000> : vector<2x64xf32>
    %54 = vector.multi_reduction <maximumf>, %53, %cst_18 [2] : vector<2x64x64xf32> to vector<2x64xf32>
    %55 = vector.shape_cast %54 : vector<2x64xf32> to vector<2x64x1xf32>
    %56 = vector.broadcast %55 : vector<2x64x1xf32> to vector<2x64x64xf32>
    %57 = arith.subf %53, %56 : vector<2x64x64xf32>
    %58 = math.exp %57 : vector<2x64x64xf32>
    %59 = vector.extract_strided_slice %7 {offsets = [0, 0, 96], sizes = [2, 64, 32], strides = [1, 1, 1]} : vector<2x64x128xf32> to vector<2x64x32xf32>
    %60 = arith.truncf %59 : vector<2x64x32xf32> to vector<2x64x32xbf16>
    %61 = vector.extract_strided_slice %9 {offsets = [0, 0, 96], sizes = [2, 64, 32], strides = [1, 1, 1]} : vector<2x64x128xf32> to vector<2x64x32xf32>
    %62 = arith.truncf %61 : vector<2x64x32xf32> to vector<2x64x32xbf16>
    %63 = vector.extract_strided_slice %11 {offsets = [0, 0, 96], sizes = [2, 64, 32], strides = [1, 1, 1]} : vector<2x64x128xf32> to vector<2x64x32xf32>
    %64 = arith.truncf %63 : vector<2x64x32xf32> to vector<2x64x32xbf16>
    "tpu.trace_start"() <{level = 10 : i32, message = "bid,bjd->bij"}> : () -> ()
    %cst_19 = arith.constant dense<0.000000e+00> : vector<2x64x64xf32>
    %65 = tpu.matmul %60, %62, %cst_19 {dimension_numbers = #tpu.dot_dimension_numbers<[2], [2], [1], [1], [0, 0, 0, 1, 1, 1], [0], [0]>} : vector<2x64x32xbf16>, vector<2x64x32xbf16>, vector<2x64x64xf32> -> vector<2x64x64xf32>
    "tpu.trace_stop"() : () -> ()
    %66 = arith.addf %65, %19 : vector<2x64x64xf32>
    %cst_20 = arith.constant dense<0xFF800000> : vector<2x64xf32>
    %67 = vector.multi_reduction <maximumf>, %66, %cst_20 [2] : vector<2x64x64xf32> to vector<2x64xf32>
    %68 = vector.shape_cast %67 : vector<2x64xf32> to vector<2x64x1xf32>
    %69 = vector.broadcast %68 : vector<2x64x1xf32> to vector<2x64x64xf32>
    %70 = arith.subf %66, %69 : vector<2x64x64xf32>
    %71 = math.exp %70 : vector<2x64x64xf32>
    %72 = tpu.concatenate %32, %45, %58, %71 in 0 : vector<2x64x64xf32>, vector<2x64x64xf32>, vector<2x64x64xf32>, vector<2x64x64xf32> -> vector<8x64x64xf32>
    %73 = vector.shape_cast %72 : vector<8x64x64xf32> to vector<512x64xf32>
    %74 = arith.truncf %73 : vector<512x64xf32> to vector<512x64xbf16>
    %cst_21 = arith.constant dense<0.000000e+00> : vector<512x128xf32>
    %75 = tpu.matmul %74, %12, %cst_21 {dimension_numbers = #tpu.dot_dimension_numbers<[1], [0], [0], [1], [0, 0, 1, 1], [], []>} : vector<512x64xbf16>, vector<64x128xbf16>, vector<512x128xf32> -> vector<512x128xf32>
    %76 = vector.shape_cast %75 : vector<512x128xf32> to vector<8x64x128xf32>
    %cst_22 = arith.constant 0.000000e+00 : f32
    %77 = vector.broadcast %cst_22 : f32 to vector<1x64x128xf32>
    %78 = arith.cmpf oeq, %15, %77 : vector<1x64x128xf32>
    %79 = arith.extui %78 : vector<1x64x128xi1> to vector<1x64x128xi32>
    %80 = arith.sitofp %79 : vector<1x64x128xi32> to vector<1x64x128xf32>
    %81 = vector.broadcast %80 : vector<1x64x128xf32> to vector<8x64x128xf32>
    %82 = arith.addf %76, %81 : vector<8x64x128xf32>
    %83 = tpu.reciprocal %82 {approx = true} : vector<8x64x128xf32> -> vector<8x64x128xf32>
    %84 = vector.broadcast %15 : vector<1x64x128xf32> to vector<8x64x128xf32>
    %85 = arith.mulf %83, %84 : vector<8x64x128xf32>
    %86 = vector.shape_cast %85 : vector<8x64x128xf32> to vector<512x128xf32>
    %87 = arith.truncf %86 : vector<512x128xf32> to vector<512x128xbf16>
    %cst_23 = arith.constant dense<0.000000e+00> : vector<512x64xf32>
    %88 = tpu.matmul %87, %13, %cst_23 {dimension_numbers = #tpu.dot_dimension_numbers<[1], [0], [0], [1], [0, 0, 1, 1], [], []>} : vector<512x128xbf16>, vector<128x64xbf16>, vector<512x64xf32> -> vector<512x64xf32>
    %89 = vector.shape_cast %88 : vector<512x64xf32> to vector<8x64x64xf32>
    %90 = arith.mulf %72, %89 : vector<8x64x64xf32>
    %91 = arith.truncf %90 : vector<8x64x64xf32> to vector<8x64x64xbf16>
    %92 = vector.extract_strided_slice %91 {offsets = [0, 0, 0], sizes = [2, 64, 64], strides = [1, 1, 1]} : vector<8x64x64xbf16> to vector<2x64x64xbf16>
    "tpu.trace_start"() <{level = 10 : i32, message = "bij,bjd->bid"}> : () -> ()
    %cst_24 = arith.constant dense<0.000000e+00> : vector<2x64x32xf32>
    %93 = tpu.matmul %92, %25, %cst_24 {dimension_numbers = #tpu.dot_dimension_numbers<[2], [1], [1], [2], [0, 0, 0, 1, 1, 2], [0], [0]>} : vector<2x64x64xbf16>, vector<2x64x32xbf16>, vector<2x64x32xf32> -> vector<2x64x32xf32>
    "tpu.trace_stop"() : () -> ()
    %c0_25 = arith.constant 0 : index
    %c0_26 = arith.constant 0 : index
    %c0_27 = arith.constant 0 : index
    %94 = vector.load %arg10[%c0_25, %c0_26, %c0_27] : memref<2x64x128xf32, #tpu.memory_space<vmem>>, vector<2x64x32xf32>
    tpu.vector_store %arg10[%c0_25, %c0_26, %c0_27], %93 {strides = array<i32>} : memref<2x64x128xf32, #tpu.memory_space<vmem>>, vector<2x64x32xf32>,
    %95 = vector.extract_strided_slice %91 {offsets = [2, 0, 0], sizes = [2, 64, 64], strides = [1, 1, 1]} : vector<8x64x64xbf16> to vector<2x64x64xbf16>
    "tpu.trace_start"() <{level = 10 : i32, message = "bij,bjd->bid"}> : () -> ()
    %cst_28 = arith.constant dense<0.000000e+00> : vector<2x64x32xf32>
    %96 = tpu.matmul %95, %38, %cst_28 {dimension_numbers = #tpu.dot_dimension_numbers<[2], [1], [1], [2], [0, 0, 0, 1, 1, 2], [0], [0]>} : vector<2x64x64xbf16>, vector<2x64x32xbf16>, vector<2x64x32xf32> -> vector<2x64x32xf32>
    "tpu.trace_stop"() : () -> ()
    %c0_29 = arith.constant 0 : index
    %c0_30 = arith.constant 0 : index
    %c32 = arith.constant 32 : index
    %97 = vector.load %arg10[%c0_29, %c0_30, %c32] : memref<2x64x128xf32, #tpu.memory_space<vmem>>, vector<2x64x32xf32>
    tpu.vector_store %arg10[%c0_29, %c0_30, %c32], %96 {strides = array<i32>} : memref<2x64x128xf32, #tpu.memory_space<vmem>>, vector<2x64x32xf32>,
    %98 = vector.extract_strided_slice %91 {offsets = [4, 0, 0], sizes = [2, 64, 64], strides = [1, 1, 1]} : vector<8x64x64xbf16> to vector<2x64x64xbf16>
    "tpu.trace_start"() <{level = 10 : i32, message = "bij,bjd->bid"}> : () -> ()
    %cst_31 = arith.constant dense<0.000000e+00> : vector<2x64x32xf32>
    %99 = tpu.matmul %98, %51, %cst_31 {dimension_numbers = #tpu.dot_dimension_numbers<[2], [1], [1], [2], [0, 0, 0, 1, 1, 2], [0], [0]>} : vector<2x64x64xbf16>, vector<2x64x32xbf16>, vector<2x64x32xf32> -> vector<2x64x32xf32>
    "tpu.trace_stop"() : () -> ()
    %c0_32 = arith.constant 0 : index
    %c0_33 = arith.constant 0 : index
    %c64 = arith.constant 64 : index
    %100 = vector.load %arg10[%c0_32, %c0_33, %c64] : memref<2x64x128xf32, #tpu.memory_space<vmem>>, vector<2x64x32xf32>
    tpu.vector_store %arg10[%c0_32, %c0_33, %c64], %99 {strides = array<i32>} : memref<2x64x128xf32, #tpu.memory_space<vmem>>, vector<2x64x32xf32>,
    %101 = vector.extract_strided_slice %91 {offsets = [6, 0, 0], sizes = [2, 64, 64], strides = [1, 1, 1]} : vector<8x64x64xbf16> to vector<2x64x64xbf16>
    "tpu.trace_start"() <{level = 10 : i32, message = "bij,bjd->bid"}> : () -> ()
    %cst_34 = arith.constant dense<0.000000e+00> : vector<2x64x32xf32>
    %102 = tpu.matmul %101, %64, %cst_34 {dimension_numbers = #tpu.dot_dimension_numbers<[2], [1], [1], [2], [0, 0, 0, 1, 1, 2], [0], [0]>} : vector<2x64x64xbf16>, vector<2x64x32xbf16>, vector<2x64x32xf32> -> vector<2x64x32xf32>
    "tpu.trace_stop"() : () -> ()
    %c0_35 = arith.constant 0 : index
    %c0_36 = arith.constant 0 : index
    %c96 = arith.constant 96 : index
    %103 = vector.load %arg10[%c0_35, %c0_36, %c96] : memref<2x64x128xf32, #tpu.memory_space<vmem>>, vector<2x64x32xf32>
    tpu.vector_store %arg10[%c0_35, %c0_36, %c96], %102 {strides = array<i32>} : memref<2x64x128xf32, #tpu.memory_space<vmem>>, vector<2x64x32xf32>,
    %c0_37 = arith.constant 0 : index
    %c0_38 = arith.constant 0 : index
    %c0_39 = arith.constant 0 : index
    %104 = vector.load %arg10[%c0_37, %c0_38, %c0_39] : memref<2x64x128xf32, #tpu.memory_space<vmem>>, vector<2x64x128xf32>
    %105 = vector.shape_cast %104 : vector<2x64x128xf32> to vector<128x128xf32>
    %106 = arith.truncf %105 : vector<128x128xf32> to vector<128x128xbf16>
    %c0_40 = arith.constant 0 : index
    %c0_41 = arith.constant 0 : index
    %107 = vector.load %arg3[%c0_40, %c0_41] : memref<128x128xbf16, #tpu.memory_space<vmem>>, vector<128x128xbf16>
    %cst_42 = arith.constant dense<0.000000e+00> : vector<128x128xf32>
    %108 = tpu.matmul %106, %107, %cst_42 {dimension_numbers = #tpu.dot_dimension_numbers<[1], [0], [0], [1], [0, 0, 1, 1], [], []>} : vector<128x128xbf16>, vector<128x128xbf16>, vector<128x128xf32> -> vector<128x128xf32>
    %c0_43 = arith.constant 0 : index
    %c0_44 = arith.constant 0 : index
    %109 = vector.load %arg4[%c0_43, %c0_44] : memref<1x128xf32, #tpu.memory_space<vmem>>, vector<1x128xf32>
    %110 = vector.broadcast %109 : vector<1x128xf32> to vector<128x128xf32>
    %111 = arith.addf %108, %110 : vector<128x128xf32>
    %112 = vector.shape_cast %111 : vector<128x128xf32> to vector<2x64x128xf32>
    %c0_45 = arith.constant 0 : index
    %c0_46 = arith.constant 0 : index
    %c0_47 = arith.constant 0 : index
    %113 = vector.load %arg9[%c0_45, %c0_46, %c0_47] : memref<2x64x128xf32, #tpu.memory_space<vmem>>, vector<2x64x128xf32>
    tpu.vector_store %arg9[%c0_45, %c0_46, %c0_47], %112 {strides = array<i32>} : memref<2x64x128xf32, #tpu.memory_space<vmem>>, vector<2x64x128xf32>,
    return
  }
  func.func @transform_0(%arg0: i32) -> (i32, i32, i32) {
    %c0_i32 = arith.constant 0 : i32
    %c0_i32_0 = arith.constant 0 : i32
    %c0_i32_1 = arith.constant 0 : i32
    return %arg0, %c0_i32, %c0_i32_0 : i32, i32, i32
  }
  func.func @transform_1(%arg0: i32) -> (i32, i32) {
    %c0_i32 = arith.constant 0 : i32
    %c0_i32_0 = arith.constant 0 : i32
    %c0_i32_1 = arith.constant 0 : i32
    return %c0_i32, %c0_i32_0 : i32, i32
  }
  func.func @transform_2(%arg0: i32) -> (i32, i32) {
    %c0_i32 = arith.constant 0 : i32
    %c0_i32_0 = arith.constant 0 : i32
    %c0_i32_1 = arith.constant 0 : i32
    return %c0_i32, %c0_i32_0 : i32, i32
  }
  func.func @transform_3(%arg0: i32) -> (i32, i32) {
    %c0_i32 = arith.constant 0 : i32
    %c0_i32_0 = arith.constant 0 : i32
    %c0_i32_1 = arith.constant 0 : i32
    return %c0_i32, %c0_i32_0 : i32, i32
  }
  func.func @transform_4(%arg0: i32) -> (i32, i32) {
    %c0_i32 = arith.constant 0 : i32
    %c0_i32_0 = arith.constant 0 : i32
    %c0_i32_1 = arith.constant 0 : i32
    return %c0_i32, %c0_i32_0 : i32, i32
  }
  func.func @transform_5(%arg0: i32) -> (i32, i32) {
    %c0_i32 = arith.constant 0 : i32
    %c0_i32_0 = arith.constant 0 : i32
    %c0_i32_1 = arith.constant 0 : i32
    return %c0_i32, %c0_i32_0 : i32, i32
  }
  func.func @transform_6(%arg0: i32) -> (i32, i32) {
    %c0_i32 = arith.constant 0 : i32
    %c0_i32_0 = arith.constant 0 : i32
    %c0_i32_1 = arith.constant 0 : i32
    return %c0_i32, %c0_i32_0 : i32, i32
  }
  func.func @transform_7(%arg0: i32) -> (i32, i32) {
    %c0_i32 = arith.constant 0 : i32
    %c0_i32_0 = arith.constant 0 : i32
    %c0_i32_1 = arith.constant 0 : i32
    return %c0_i32, %c0_i32_0 : i32, i32
  }
  func.func @transform_8(%arg0: i32) -> (i32, i32, i32) {
    %c0_i32 = arith.constant 0 : i32
    %c0_i32_0 = arith.constant 0 : i32
    %c0_i32_1 = arith.constant 0 : i32
    return %arg0, %c0_i32, %c0_i32_0 : i32, i32, i32
  }
}

</mosaic_0001>

<llo_original>
// kernel: cross_attention_forward.1
$region0: #{cross_attention_forward.1}
  #allocation0 [shape = 'u32[]', space=smem, size = 0x4, offset = 0x4, fixed_abs, tag = 'smem constant byte address 0x4 - core index']
  #allocation1 [shape = 'u32[144,128]{1,0:T(1,128)}', space=vmem, size = 0x12000, scoped, tag = 'internal scratch']
  #allocation2 [shape = 'f32[2,64,128]{2,1,0:T(8,128)}', space=vmem, size = 0x10000, scoped, tag = 'scratch operand']
  %s0 = inlined_call_operand.vmem [shape: bf16[4,64,128], index: 0, kind: input, shape index: {}]
  %s1 = inlined_call_operand.vmem [shape: bf16[128,384], index: 1, kind: input, shape index: {}]
  %s2 = inlined_call_operand.vmem [shape: bf16[128,128], index: 2, kind: input, shape index: {}]
  %s3 = inlined_call_operand.hbm [shape: f32[1,128], index: 3, kind: input, shape index: {}]
  %s4 = inlined_call_operand.hbm [shape: bf16[64,128], index: 4, kind: input, shape index: {}]
  %s5 = inlined_call_operand.hbm [shape: bf16[128,64], index: 5, kind: input, shape index: {}]
  %s6 = inlined_call_operand.vmem [shape: f32[64,128], index: 6, kind: input, shape index: {}]
  %s7 = inlined_call_operand.vmem [shape: f32[64,64], index: 7, kind: input, shape index: {}]
  %s8 = inlined_call_operand.hbm [shape: f32[4,64,128], index: 8, kind: output, shape index: {}]
  %s9 = sld [smem:[#allocation0]]
  $region77: #{cross_attention_forward.1} parent=0
    _
  %s11 = ssub.s32 1, %s9
  %s12 = scalar_select 0, %s11, %s9
  $region1: #{cross_attention_forward.1} parent=0
    #allocation3 [shape = 'u8[512]{0}', space=vmem, size = 0x400, scoped, tag = 'input window, operand 3, single buffered']
    #allocation4 [shape = 's32[2]{0}', space=sflag, size = 0x8, scoped, tag = 'scoped memory for cross_attention_forward.1']
    #allocation5 [shape = 's32[2]{0}', space=sflag, size = 0x8, scoped, tag = 'scoped memory for cross_attention_forward.1']
    #allocation6 [shape = 'u8[16384]{0}', space=vmem, size = 0x4000, scoped, tag = 'input window, operand 4, single buffered']
    #allocation7 [shape = 's32[1]{0}', space=sflag, size = 0x4, scoped, tag = 'scoped memory for cross_attention_forward.1']
    #allocation8 [shape = 'u8[32768]{0}', space=vmem, size = 0x8000, scoped, tag = 'input window, operand 5, single buffered']
    #allocation9 [shape = 'u8[131072]{0}', space=vmem, size = 0x20000, scoped, tag = 'output window, operand 0']
    %13 = vsyncpa [#allocation4], 0
    %14 = vsyncpa [#allocation7], 0
    %15 = vsyncpa [#allocation5], 0
    %s16 = scalar_lea.sflag [#allocation5], 1
    %17 = vsyncpa %s16, 0
    loop: start=0, step=1, limit=4
    $region2: #{cross_attention_forward.1} parent=1 // loop_pre_header
      _
    $region3: #{cross_attention_forward.1} parent=1 // loop_header
      %s19 = sphi 0, %s23
      %p20 = scmp.ge.s32.totalorder %s19, 4
      %s29 = sphi 0, %s31
      %s32 = sphi 0, %s29
      %s33 = sphi 0, %s32
      %s49 = sphi 0, %s33
      %s53 = sphi 0, %s53
      %s55 = sphi 0, %s53
      %s56 = sphi 0, %s55
      %s70 = sphi 0, %s56
      %s74 = sphi 0, %s74
      %s76 = sphi 0, %s74
      %s77 = sphi 0, %s76
      %s91 = sphi 0, %s77
      %s95 = sphi 0, %s95
      %s97 = sphi 0, %s95
      %s98 = sphi 0, %s97
      %s112 = sphi 0, %s98
      %s116 = sphi 0, %s116
      %s118 = sphi 0, %s116
      %s119 = sphi 0, %s118
      %s133 = sphi 0, %s119
      %s137 = sphi 0, %s137
      %s139 = sphi 0, %s137
      %s140 = sphi 0, %s139
      %s154 = sphi 0, %s140
      %s158 = sphi 0, %s158
      %s160 = sphi 0, %s158
      %s161 = sphi 0, %s160
      %s175 = sphi 0, %s161
      %s179 = sphi 0, %s179
      %s181 = sphi 0, %s179
      %s182 = sphi 0, %s181
      %s196 = sphi 0, %s182
      %s202 = sphi 0, %s204
      %s205 = sphi 0, %s202
      %s206 = sphi 0, %s205
      %s222 = sphi 0, %s206
    $region4: #{cross_attention_forward.1} parent=1 // loop_header_branch
      %22 = sbr.rel (%p20) target = $region8
    $region5: #{cross_attention_forward.1} parent=1 // loop_body
      %s24 = ssub.s32 %s19, 1
      %s25 = ssub.s32 %s19, 2
      %s26 = sadd.s32 %s19, 1
      %s27 = ssub.s32 %s19, %s26
      %p28 = scmp.eq.s32.totalorder %s27, 0
      %s30 = sadd.s32 %s29, 1
      %s31 = scalar_select %p28, %s29, %s30
      %p34 = pneg %p28
      %p35 = scmp.eq.s32.totalorder %s19, 1
      %p36 = por %p34, %p35
      %p37 = scmp.ne.s32.totalorder %s29, %s32
      %p38 = scmp.eq.s32.totalorder %s19, 0
      %p39 = por %p37, %p38
      %p40 = scmp.ne.s32.totalorder %s29, %s32
      %p41 = scmp.eq.s32.totalorder %s24, 1
      %p42 = por %p40, %p41
      %p43 = scmp.ne.s32.totalorder %s32, %s33
      %p44 = scmp.eq.s32.totalorder %s24, 0
      %p45 = por %p43, %p44
      %p46 = scmp.ne.s32.totalorder %s32, %s33
      %p47 = scmp.eq.s32.totalorder %s25, 1
      %p48 = por %p46, %p47
      %p50 = scmp.ne.s32.totalorder %s33, %s49
      %p51 = scmp.eq.s32.totalorder %s25, 0
      %p52 = por %p50, %p51
      %s54 = sadd.s32 %s53, 1
      %p57 = scmp.eq.s32.totalorder %s19, 1
      %p58 = scmp.ne.s32.totalorder %s53, %s55
      %p59 = scmp.eq.s32.totalorder %s19, 0
      %p60 = por %p58, %p59
      %p61 = scmp.ne.s32.totalorder %s53, %s55
      %p62 = scmp.eq.s32.totalorder %s24, 1
      %p63 = por %p61, %p62
      %p64 = scmp.ne.s32.totalorder %s55, %s56
      %p65 = scmp.eq.s32.totalorder %s24, 0
      %p66 = por %p64, %p65
      %p67 = scmp.ne.s32.totalorder %s55, %s56
      %p68 = scmp.eq.s32.totalorder %s25, 1
      %p69 = por %p67, %p68
      %p71 = scmp.ne.s32.totalorder %s56, %s70
      %p72 = scmp.eq.s32.totalorder %s25, 0
      %p73 = por %p71, %p72
      %s75 = sadd.s32 %s74, 1
      %p78 = scmp.eq.s32.totalorder %s19, 1
      %p79 = scmp.ne.s32.totalorder %s74, %s76
      %p80 = scmp.eq.s32.totalorder %s19, 0
      %p81 = por %p79, %p80
      %p82 = scmp.ne.s32.totalorder %s74, %s76
      %p83 = scmp.eq.s32.totalorder %s24, 1
      %p84 = por %p82, %p83
      %p85 = scmp.ne.s32.totalorder %s76, %s77
      %p86 = scmp.eq.s32.totalorder %s24, 0
      %p87 = por %p85, %p86
      %p88 = scmp.ne.s32.totalorder %s76, %s77
      %p89 = scmp.eq.s32.totalorder %s25, 1
      %p90 = por %p88, %p89
      %p92 = scmp.ne.s32.totalorder %s77, %s91
      %p93 = scmp.eq.s32.totalorder %s25, 0
      %p94 = por %p92, %p93
      %s96 = sadd.s32 %s95, 1
      %p99 = scmp.eq.s32.totalorder %s19, 1
      %p100 = scmp.ne.s32.totalorder %s95, %s97
      %p101 = scmp.eq.s32.totalorder %s19, 0
      %p102 = por %p100, %p101
      %p103 = scmp.ne.s32.totalorder %s95, %s97
      %p104 = scmp.eq.s32.totalorder %s24, 1
      %p105 = por %p103, %p104
      %p106 = scmp.ne.s32.totalorder %s97, %s98
      %p107 = scmp.eq.s32.totalorder %s24, 0
      %p108 = por %p106, %p107
      %p109 = scmp.ne.s32.totalorder %s97, %s98
      %p110 = scmp.eq.s32.totalorder %s25, 1
      %p111 = por %p109, %p110
      %p113 = scmp.ne.s32.totalorder %s98, %s112
      %p114 = scmp.eq.s32.totalorder %s25, 0
      %p115 = por %p113, %p114
      %s117 = sadd.s32 %s116, 1
      %p120 = scmp.eq.s32.totalorder %s19, 1
      %p121 = scmp.ne.s32.totalorder %s116, %s118
      %p122 = scmp.eq.s32.totalorder %s19, 0
      %p123 = por %p121, %p122
      %p124 = scmp.ne.s32.totalorder %s116, %s118
      %p125 = scmp.eq.s32.totalorder %s24, 1
      %p126 = por %p124, %p125
      %p127 = scmp.ne.s32.totalorder %s118, %s119
      %p128 = scmp.eq.s32.totalorder %s24, 0
      %p129 = por %p127, %p128
      %p130 = scmp.ne.s32.totalorder %s118, %s119
      %p131 = scmp.eq.s32.totalorder %s25, 1
      %p132 = por %p130, %p131
      %p134 = scmp.ne.s32.totalorder %s119, %s133
      %p135 = scmp.eq.s32.totalorder %s25, 0
      %p136 = por %p134, %p135
      %s138 = sadd.s32 %s137, 1
      %p141 = scmp.eq.s32.totalorder %s19, 1
      %p142 = scmp.ne.s32.totalorder %s137, %s139
      %p143 = scmp.eq.s32.totalorder %s19, 0
      %p144 = por %p142, %p143
      %p145 = scmp.ne.s32.totalorder %s137, %s139
      %p146 = scmp.eq.s32.totalorder %s24, 1
      %p147 = por %p145, %p146
      %p148 = scmp.ne.s32.totalorder %s139, %s140
      %p149 = scmp.eq.s32.totalorder %s24, 0
      %p150 = por %p148, %p149
      %p151 = scmp.ne.s32.totalorder %s139, %s140
      %p152 = scmp.eq.s32.totalorder %s25, 1
      %p153 = por %p151, %p152
      %p155 = scmp.ne.s32.totalorder %s140, %s154
      %p156 = scmp.eq.s32.totalorder %s25, 0
      %p157 = por %p155, %p156
      %s159 = sadd.s32 %s158, 1
      %p162 = scmp.eq.s32.totalorder %s19, 1
      %p163 = scmp.ne.s32.totalorder %s158, %s160
      %p164 = scmp.eq.s32.totalorder %s19, 0
      %p165 = por %p163, %p164
      %p166 = scmp.ne.s32.totalorder %s158, %s160
      %p167 = scmp.eq.s32.totalorder %s24, 1
      %p168 = por %p166, %p167
      %p169 = scmp.ne.s32.totalorder %s160, %s161
      %p170 = scmp.eq.s32.totalorder %s24, 0
      %p171 = por %p169, %p170
      %p172 = scmp.ne.s32.totalorder %s160, %s161
      %p173 = scmp.eq.s32.totalorder %s25, 1
      %p174 = por %p172, %p173
      %p176 = scmp.ne.s32.totalorder %s161, %s175
      %p177 = scmp.eq.s32.totalorder %s25, 0
      %p178 = por %p176, %p177
      %s180 = sadd.s32 %s179, 1
      %p183 = scmp.eq.s32.totalorder %s19, 1
      %p184 = scmp.ne.s32.totalorder %s179, %s181
      %p185 = scmp.eq.s32.totalorder %s19, 0
      %p186 = por %p184, %p185
      %p187 = scmp.ne.s32.totalorder %s179, %s181
      %p188 = scmp.eq.s32.totalorder %s24, 1
      %p189 = por %p187, %p188
      %p190 = scmp.ne.s32.totalorder %s181, %s182
      %p191 = scmp.eq.s32.totalorder %s24, 0
      %p192 = por %p190, %p191
      %p193 = scmp.ne.s32.totalorder %s181, %s182
      %p194 = scmp.eq.s32.totalorder %s25, 1
      %p195 = por %p193, %p194
      %p197 = scmp.ne.s32.totalorder %s182, %s196
      %p198 = scmp.eq.s32.totalorder %s25, 0
      %p199 = por %p197, %p198
      %s200 = ssub.s32 %s19, %s26
      %p201 = scmp.eq.s32.totalorder %s200, 0
      %s203 = sadd.s32 %s202, 1
      %s204 = scalar_select %p201, %s202, %s203
      %p207 = pneg %p201
      %p208 = scmp.eq.s32.totalorder %s19, 1
      %p209 = por %p207, %p208
      %p210 = scmp.ne.s32.totalorder %s202, %s205
      %p211 = scmp.eq.s32.totalorder %s19, 0
      %p212 = por %p210, %p211
      %p213 = scmp.ne.s32.totalorder %s202, %s205
      %p214 = scmp.eq.s32.totalorder %s24, 1
      %p215 = por %p213, %p214
      %p216 = scmp.ne.s32.totalorder %s205, %s206
      %p217 = scmp.eq.s32.totalorder %s24, 0
      %p218 = por %p216, %p217
      %p219 = scmp.ne.s32.totalorder %s205, %s206
      %p220 = scmp.eq.s32.totalorder %s25, 1
      %p221 = por %p219, %p220
      %p223 = scmp.ne.s32.totalorder %s206, %s222
      %p224 = scmp.eq.s32.totalorder %s25, 0
      %p225 = por %p223, %p224
      %p226 = scmp.le.s32.totalorder 1, %s19
      %p227 = scmp.lt.s32.totalorder %s19, 3
      %p228 = pnand %p226, %p227
      %p229 = pneg %p228
      // Predicated region
      $region9: #{cross_attention_forward.1} parent=5 // pred_check
        _
      $region10: #{cross_attention_forward.1} parent=5 // pred_check_branch
        %231 = sbr.rel (%p228) target = $region12
      $region11: #{cross_attention_forward.1} parent=5 // pred_region
        %s232 = ssub.s32 %s19, 1
        // Predicated region
        $region13: #{cross_attention_forward.1} parent=11 // pred_check
          %p233 = pneg %p66
        $region14: #{cross_attention_forward.1} parent=11 // pred_check_branch
          %235 = sbr.rel (%p233) target = $region16
        $region15: #{cross_attention_forward.1} parent=11 // pred_region
          _
        $region16: #{cross_attention_forward.1} parent=11 // pred_fallthru
          _
        // Predicated region
        $region17: #{cross_attention_forward.1} parent=11 // pred_check
          %p236 = pneg %p87
        $region18: #{cross_attention_forward.1} parent=11 // pred_check_branch
          %238 = sbr.rel (%p236) target = $region20
        $region19: #{cross_attention_forward.1} parent=11 // pred_region
          _
        $region20: #{cross_attention_forward.1} parent=11 // pred_fallthru
          _
        // Predicated region
        $region21: #{cross_attention_forward.1} parent=11 // pred_check
          %p239 = pneg %p108
        $region22: #{cross_attention_forward.1} parent=11 // pred_check_branch
          %241 = sbr.rel (%p239) target = $region24
        $region23: #{cross_attention_forward.1} parent=11 // pred_region
          %s243 = ssub.s32 16, 16
          %244 = vsyncadd [#allocation4], %s243
          %s246 = sshll.u32 [#allocation3], 4
          %s247 = int_to_ptr.vmem [resolvable:$true] %s246
          %249 = dma.hbm_to_vmem [thread:$0]  %s3, 16, %s247, [#allocation4]
        $region24: #{cross_attention_forward.1} parent=11 // pred_fallthru
          _
        // Predicated region
        $region25: #{cross_attention_forward.1} parent=11 // pred_check
          %p250 = pneg %p129
        $region26: #{cross_attention_forward.1} parent=11 // pred_check_branch
          %252 = sbr.rel (%p250) target = $region28
        $region27: #{cross_attention_forward.1} parent=11 // pred_region
          %s254 = ssub.s32 512, 512
          %255 = vsyncadd [#allocation7], %s254
          %s256 = sshll.u32 [#allocation6], 4
          %s257 = int_to_ptr.vmem [resolvable:$true] %s256
          %262 = dma.hbm_to_vmem [thread:$0]  %s4, 512, %s257, [#allocation7], 64, 64, 4
        $region28: #{cross_attention_forward.1} parent=11 // pred_fallthru
          _
        // Predicated region
        $region29: #{cross_attention_forward.1} parent=11 // pred_check
          %p263 = pneg %p150
        $region30: #{cross_attention_forward.1} parent=11 // pred_check_branch
          %265 = sbr.rel (%p263) target = $region32
        $region31: #{cross_attention_forward.1} parent=11 // pred_region
          %s267 = ssub.s32 1024, 1024
          %268 = vsyncadd [#allocation7], %s267
          %s269 = sshll.u32 [#allocation8], 4
          %s270 = int_to_ptr.vmem [resolvable:$true] %s269
          %275 = dma.hbm_to_vmem [thread:$0]  %s5, 1024, %s270, [#allocation7], 64, 64, 4
        $region32: #{cross_attention_forward.1} parent=11 // pred_fallthru
          _
        // Predicated region
        $region33: #{cross_attention_forward.1} parent=11 // pred_check
          %p276 = pneg %p171
        $region34: #{cross_attention_forward.1} parent=11 // pred_check_branch
          %278 = sbr.rel (%p276) target = $region36
        $region35: #{cross_attention_forward.1} parent=11 // pred_region
          _
        $region36: #{cross_attention_forward.1} parent=11 // pred_fallthru
          _
        // Predicated region
        $region37: #{cross_attention_forward.1} parent=11 // pred_check
          %p279 = pneg %p192
        $region38: #{cross_attention_forward.1} parent=11 // pred_check_branch
          %281 = sbr.rel (%p279) target = $region40
        $region39: #{cross_attention_forward.1} parent=11 // pred_region
          _
        $region40: #{cross_attention_forward.1} parent=11 // pred_fallthru
          _
      $region12: #{cross_attention_forward.1} parent=5 // pred_fallthru
        _
      %p282 = scmp.lt.s32.totalorder %s19, 2
      // Predicated region
      $region41: #{cross_attention_forward.1} parent=5 // pred_check
        %p283 = pneg %p282
      $region42: #{cross_attention_forward.1} parent=5 // pred_check_branch
        %285 = sbr.rel (%p283) target = $region44
      $region43: #{cross_attention_forward.1} parent=5 // pred_region
        // Predicated region
        $region45: #{cross_attention_forward.1} parent=43 // pred_check
          %p286 = pneg %p39
        $region46: #{cross_attention_forward.1} parent=43 // pred_check_branch
          %288 = sbr.rel (%p286) target = $region48
        $region47: #{cross_attention_forward.1} parent=43 // pred_region
          %s289 = smul.u32 2, %s19
          %p290 = scmp.lt.s32.totalorder %s289, 3
          %s291 = scalar_select %p290, %s289, 3
          %s292 = smul.addr %s291, 8
          %s293 = smul.addr %s292, 4
          %s294 = scalar_lea.vmem %s0, %s293
          %s295 = smul.u32 2, %s19
        $region48: #{cross_attention_forward.1} parent=43 // pred_fallthru
          _
      $region44: #{cross_attention_forward.1} parent=5 // pred_fallthru
        _
      %p296 = scmp.le.s32.totalorder 1, %s19
      %p297 = scmp.lt.s32.totalorder %s19, 3
      %p298 = pnand %p296, %p297
      %p299 = pneg %p298
      // Predicated region
      $region49: #{cross_attention_forward.1} parent=5 // pred_check
        _
      $region50: #{cross_attention_forward.1} parent=5 // pred_check_branch
        %301 = sbr.rel (%p298) target = $region52
      $region51: #{cross_attention_forward.1} parent=5 // pred_region
        %s302 = ssub.s32 %s19, 1
        // Predicated region
        $region53: #{cross_attention_forward.1} parent=51 // pred_check
          %p303 = pneg %p108
        $region54: #{cross_attention_forward.1} parent=51 // pred_check_branch
          %305 = sbr.rel (%p303) target = $region56
        $region55: #{cross_attention_forward.1} parent=51 // pred_region
          %306 = dma.done [#allocation4], 16
        $region56: #{cross_attention_forward.1} parent=51 // pred_fallthru
          _
        // Predicated region
        $region57: #{cross_attention_forward.1} parent=51 // pred_check
          %p307 = pneg %p129
        $region58: #{cross_attention_forward.1} parent=51 // pred_check_branch
          %309 = sbr.rel (%p307) target = $region60
        $region59: #{cross_attention_forward.1} parent=51 // pred_region
          %310 = dma.done [#allocation7], 512
        $region60: #{cross_attention_forward.1} parent=51 // pred_fallthru
          _
        // Predicated region
        $region61: #{cross_attention_forward.1} parent=51 // pred_check
          %p311 = pneg %p150
        $region62: #{cross_attention_forward.1} parent=51 // pred_check_branch
          %313 = sbr.rel (%p311) target = $region64
        $region63: #{cross_attention_forward.1} parent=51 // pred_region
          %314 = dma.done [#allocation7], 1024
        $region64: #{cross_attention_forward.1} parent=51 // pred_fallthru
          _
        %s315 = smul.u32 2, %s24
        %p316 = scmp.lt.s32.totalorder %s315, 3
        %s317 = scalar_select %p316, %s315, 3
        %s318 = smul.addr %s317, 8
        %s319 = smul.addr %s318, 4
        %s320 = scalar_lea.vmem %s0, %s319
        %p321 = pneg %p45
        %p322 = pneg %p42
        %p323 = pneg %p66
        %p324 = pneg %p63
        %p325 = pneg %p87
        %p326 = pneg %p84
        %p327 = pneg %p108
        %p328 = pneg %p105
        %p329 = pneg %p129
        %p330 = pneg %p126
        %p331 = pneg %p150
        %p332 = pneg %p147
        %p333 = pneg %p171
        %p334 = pneg %p168
        %p335 = pneg %p192
        %p336 = pneg %p189
        %p337 = pneg %p218
        %p338 = pneg %p215
        %s339 = sand.u32 %s205, 1
        %s340 = scalar_lea.sflag [#allocation5], %s339
        %s341 = sand.u32 %s205, 1
        %s342 = smul.addr %s341, 128
        %s343 = scalar_lea.vmem [#allocation9], %s342
        %s344 = smul.u32 2, %s24
        %p345 = scmp.lt.s32.totalorder %s344, 3
        %s346 = scalar_select %p345, %s344, 3
        %s347 = smul.addr %s346, 8
        %s348 = smul.addr %s347, 4
        %s349 = scalar_lea.vmem %s0, %s348
        %s350 = smul.u32 2, %s24
        %s351 = smul.u32 2, %s24
        %v353 = vld [vmem:[%s349] sm:$0xf]
        %v354 = vld [vmem:[%s349 + $0x4] sm:$0xf]
        %v355 = vld [vmem:[%s349 + $0x8] sm:$0xf]
        %v356 = vld [vmem:[%s349 + $0xc] sm:$0xf]
        %v357 = vld [vmem:[%s349 + $0x10] sm:$0xf]
        %v358 = vld [vmem:[%s349 + $0x14] sm:$0xf]
        %v359 = vld [vmem:[%s349 + $0x18] sm:$0xf]
        %v360 = vld [vmem:[%s349 + $0x1c] sm:$0xf]
        %v361 = vld [vmem:[%s349 + $0x20] sm:$0xf]
        %v362 = vld [vmem:[%s349 + $0x24] sm:$0xf]
        %v363 = vld [vmem:[%s349 + $0x28] sm:$0xf]
        %v364 = vld [vmem:[%s349 + $0x2c] sm:$0xf]
        %v365 = vld [vmem:[%s349 + $0x30] sm:$0xf]
        %v366 = vld [vmem:[%s349 + $0x34] sm:$0xf]
        %v367 = vld [vmem:[%s349 + $0x38] sm:$0xf]
        %v368 = vld [vmem:[%s349 + $0x3c] sm:$0xf]
        %v369 = vld [vmem:[%s1] sm:$0xff]
        %v370 = vld [vmem:[%s1 + $0x8] sm:$0xf]
        %v371 = vld [vmem:[%s1 + $0xc] sm:$0xff]
        %v372 = vld [vmem:[%s1 + $0x14] sm:$0xf]
        %v373 = vld [vmem:[%s1 + $0x18] sm:$0xff]
        %v374 = vld [vmem:[%s1 + $0x20] sm:$0xf]
        %v375 = vld [vmem:[%s1 + $0x24] sm:$0xff]
        %v376 = vld [vmem:[%s1 + $0x2c] sm:$0xf]
        %v377 = vld [vmem:[%s1 + $0x30] sm:$0xff]
        %v378 = vld [vmem:[%s1 + $0x38] sm:$0xf]
        %v379 = vld [vmem:[%s1 + $0x3c] sm:$0xff]
        %v380 = vld [vmem:[%s1 + $0x44] sm:$0xf]
        %v381 = vld [vmem:[%s1 + $0x48] sm:$0xff]
        %v382 = vld [vmem:[%s1 + $0x50] sm:$0xf]
        %v383 = vld [vmem:[%s1 + $0x54] sm:$0xff]
        %v384 = vld [vmem:[%s1 + $0x5c] sm:$0xf]
        %v385 = vld [vmem:[%s1 + $0x60] sm:$0xff]
        %v386 = vld [vmem:[%s1 + $0x68] sm:$0xf]
        %v387 = vld [vmem:[%s1 + $0x6c] sm:$0xff]
        %v388 = vld [vmem:[%s1 + $0x74] sm:$0xf]
        %v389 = vld [vmem:[%s1 + $0x78] sm:$0xff]
        %v390 = vld [vmem:[%s1 + $0x80] sm:$0xf]
        %v391 = vld [vmem:[%s1 + $0x84] sm:$0xff]
        %v392 = vld [vmem:[%s1 + $0x8c] sm:$0xf]
        %v393 = vld [vmem:[%s1 + $0x90] sm:$0xff]
        %v394 = vld [vmem:[%s1 + $0x98] sm:$0xf]
        %v395 = vld [vmem:[%s1 + $0x9c] sm:$0xff]
        %v396 = vld [vmem:[%s1 + $0xa4] sm:$0xf]
        %v397 = vld [vmem:[%s1 + $0xa8] sm:$0xff]
        %v398 = vld [vmem:[%s1 + $0xb0] sm:$0xf]
        %v399 = vld [vmem:[%s1 + $0xb4] sm:$0xff]
        %v400 = vld [vmem:[%s1 + $0xbc] sm:$0xf]
        %v417 = vunpack.c.l.b16 %v353
        %v418 = vunpack.c.l.b16 %v354
        %v419 = vunpack.c.l.b16 %v355
        %v420 = vunpack.c.l.b16 %v356
        %v421 = vunpack.c.l.b16 %v357
        %v422 = vunpack.c.l.b16 %v358
        %v423 = vunpack.c.l.b16 %v359
        %v424 = vunpack.c.l.b16 %v360
        %v425 = vunpack.c.l.b16 %v361
        %v426 = vunpack.c.l.b16 %v362
        %v427 = vunpack.c.l.b16 %v363
        %v428 = vunpack.c.l.b16 %v364
        %v429 = vunpack.c.l.b16 %v365
        %v430 = vunpack.c.l.b16 %v366
        %v431 = vunpack.c.l.b16 %v367
        %v432 = vunpack.c.l.b16 %v368
        %v433 = vpack.c.b16 %v418, %v417
        %v434 = vpack.c.b16 %v420, %v419
        %v435 = vpack.c.b16 %v422, %v421
        %v436 = vpack.c.b16 %v424, %v423
        %v437 = vpack.c.b16 %v426, %v425
        %v438 = vpack.c.b16 %v428, %v427
        %v439 = vpack.c.b16 %v430, %v429
        %v440 = vpack.c.b16 %v432, %v431
        %v481 = vunpack.c.l.b16 %v369
        %v482 = vunpack.c.h.b16 %v369
        %v483 = vunpack.c.l.b16 %v370
        %v484 = vunpack.c.l.b16 %v371
        %v485 = vunpack.c.h.b16 %v371
        %v486 = vunpack.c.l.b16 %v372
        %v487 = vunpack.c.l.b16 %v373
        %v488 = vunpack.c.h.b16 %v373
        %v489 = vunpack.c.l.b16 %v374
        %v490 = vunpack.c.l.b16 %v375
        %v491 = vunpack.c.h.b16 %v375
        %v492 = vunpack.c.l.b16 %v376
        %v493 = vunpack.c.l.b16 %v377
        %v494 = vunpack.c.h.b16 %v377
        %v495 = vunpack.c.l.b16 %v378
        %v496 = vunpack.c.l.b16 %v379
        %v497 = vunpack.c.h.b16 %v379
        %v498 = vunpack.c.l.b16 %v380
        %v499 = vunpack.c.l.b16 %v381
        %v500 = vunpack.c.h.b16 %v381
        %v501 = vunpack.c.l.b16 %v382
        %v502 = vunpack.c.l.b16 %v383
        %v503 = vunpack.c.h.b16 %v383
        %v504 = vunpack.c.l.b16 %v384
        %v505 = vunpack.c.l.b16 %v385
        %v506 = vunpack.c.h.b16 %v385
        %v507 = vunpack.c.l.b16 %v386
        %v508 = vunpack.c.l.b16 %v387
        %v509 = vunpack.c.h.b16 %v387
        %v510 = vunpack.c.l.b16 %v388
        %v511 = vunpack.c.l.b16 %v389
        %v512 = vunpack.c.h.b16 %v389
        %v513 = vunpack.c.l.b16 %v390
        %v514 = vunpack.c.l.b16 %v391
        %v515 = vunpack.c.h.b16 %v391
        %v516 = vunpack.c.l.b16 %v392
        %v517 = vunpack.c.l.b16 %v393
        %v518 = vunpack.c.h.b16 %v393
        %v519 = vunpack.c.l.b16 %v394
        %v520 = vunpack.c.l.b16 %v395
        %v521 = vunpack.c.h.b16 %v395
        %v522 = vunpack.c.l.b16 %v396
        %v523 = vunpack.c.l.b16 %v397
        %v524 = vunpack.c.h.b16 %v397
        %v525 = vunpack.c.l.b16 %v398
        %v526 = vunpack.c.l.b16 %v399
        %v527 = vunpack.c.h.b16 %v399
        %v528 = vunpack.c.l.b16 %v400
        %v529 = vpack.c.b16 %v484, %v481
        %v530 = vpack.c.b16 %v485, %v482
        %v531 = vpack.c.b16 %v486, %v483
        %v532 = vpack.c.b16 %v490, %v487
        %v533 = vpack.c.b16 %v491, %v488
        %v534 = vpack.c.b16 %v492, %v489
        %v535 = vpack.c.b16 %v496, %v493
        %v536 = vpack.c.b16 %v497, %v494
        %v537 = vpack.c.b16 %v498, %v495
        %v538 = vpack.c.b16 %v502, %v499
        %v539 = vpack.c.b16 %v503, %v500
        %v540 = vpack.c.b16 %v504, %v501
        %v541 = vpack.c.b16 %v508, %v505
        %v542 = vpack.c.b16 %v509, %v506
        %v543 = vpack.c.b16 %v510, %v507
        %v544 = vpack.c.b16 %v514, %v511
        %v545 = vpack.c.b16 %v515, %v512
        %v546 = vpack.c.b16 %v516, %v513
        %v547 = vpack.c.b16 %v520, %v517
        %v548 = vpack.c.b16 %v521, %v518
        %v549 = vpack.c.b16 %v522, %v519
        %v550 = vpack.c.b16 %v526, %v523
        %v551 = vpack.c.b16 %v527, %v524
        %v552 = vpack.c.b16 %v528, %v525
        %577 = vmatprep.subr.bf16.mxu0 %v551
        %578 = vmatpush1.bf16.msra.mxu0 %v550
        %579 = vmatprep.subr.bf16.mxu0 %v548
        %580 = vmatpush1.bf16.msra.mxu0 %v547
        %581 = vmatprep.subr.bf16.mxu0 %v545
        %582 = vmatpush1.bf16.msra.mxu0 %v544
        %583 = vmatprep.subr.bf16.mxu0 %v542
        %584 = vmatpush1.bf16.msra.mxu0 %v541
        %585 = vmatprep.subr.bf16.mxu0 %v539
        %586 = vmatpush1.bf16.msra.mxu0 %v538
        %587 = vmatprep.subr.bf16.mxu0 %v536
        %588 = vmatpush1.bf16.msra.mxu0 %v535
        %589 = vmatprep.subr.bf16.mxu0 %v533
        %590 = vmatpush1.bf16.msra.mxu0 %v532
        %591 = vmatprep.subr.bf16.mxu0 %v530
        %592 = vmatpush1.bf16.msra.mxu0 %v529
        %593 = vmatprep.subr.bf16.mxu0 0
        %594 = vmatpush2.bf16.msra.mxu0 0
        %595 = vmatprep.subr.bf16.mxu0 0
        %596 = vmatpush2.bf16.msra.mxu0 0
        %597 = vmatprep.subr.bf16.mxu0 0
        %598 = vmatpush2.bf16.msra.mxu0 0
        %599 = vmatprep.subr.bf16.mxu0 0
        %600 = vmatpush2.bf16.msra.mxu0 0
        %601 = vmatprep.subr.bf16.mxu0 0
        %602 = vmatpush2.bf16.msra.mxu0 0
        %603 = vmatprep.subr.bf16.mxu0 0
        %604 = vmatpush2.bf16.msra.mxu0 0
        %605 = vmatprep.subr.bf16.mxu0 0
        %606 = vmatpush2.bf16.msra.mxu0 0
        %607 = vmatprep.subr.bf16.mxu0 0
        %608 = vmatpush2.bf16.msra.mxu0 0
        %609 = vmatprep.mubr.bf16.mxu0 0
        %610 = vmatmul.mubr.bf16.gmra.mxu0 %v433
        %v611 = vpop.f32.mrf.mxu0
        %v612 = vadd.f32 0.0, %v611
        %v613 = vpop.f32.mrf.mxu0
        %v614 = vadd.f32 0.0, %v613
        %v615 = vpop.f32.mrf.mxu0
        %v616 = vadd.f32 0.0, %v615
        %v617 = vpop.f32.mrf.mxu0
        %v618 = vadd.f32 0.0, %v617
        %619 = vmatprep.mubr.bf16.mxu0 0
        %620 = vmatmul.mubr.bf16.gmra.mxu0 %v434
        %v621 = vpop.f32.mrf.mxu0
        %v622 = vadd.f32 0.0, %v621
        %v623 = vpop.f32.mrf.mxu0
        %v624 = vadd.f32 0.0, %v623
        %v625 = vpop.f32.mrf.mxu0
        %v626 = vadd.f32 0.0, %v625
        %v627 = vpop.f32.mrf.mxu0
        %v628 = vadd.f32 0.0, %v627
        %629 = vmatprep.mubr.bf16.mxu0 0
        %630 = vmatmul.mubr.bf16.gmra.mxu0 %v435
        %v631 = vpop.f32.mrf.mxu0
        %v632 = vadd.f32 0.0, %v631
        %v633 = vpop.f32.mrf.mxu0
        %v634 = vadd.f32 0.0, %v633
        %v635 = vpop.f32.mrf.mxu0
        %v636 = vadd.f32 0.0, %v635
        %v637 = vpop.f32.mrf.mxu0
        %v638 = vadd.f32 0.0, %v637
        %639 = vmatprep.mubr.bf16.mxu0 0
        %640 = vmatmul.mubr.bf16.gmra.mxu0 %v436
        %v641 = vpop.f32.mrf.mxu0
        %v642 = vadd.f32 0.0, %v641
        %v643 = vpop.f32.mrf.mxu0
        %v644 = vadd.f32 0.0, %v643
        %v645 = vpop.f32.mrf.mxu0
        %v646 = vadd.f32 0.0, %v645
        %v647 = vpop.f32.mrf.mxu0
        %v648 = vadd.f32 0.0, %v647
        %649 = vmatprep.mubr.bf16.mxu0 0
        %650 = vmatmul.mubr.bf16.gmra.mxu0 %v437
        %v651 = vpop.f32.mrf.mxu0
        %v652 = vadd.f32 0.0, %v651
        %v653 = vpop.f32.mrf.mxu0
        %v654 = vadd.f32 0.0, %v653
        %v655 = vpop.f32.mrf.mxu0
        %v656 = vadd.f32 0.0, %v655
        %v657 = vpop.f32.mrf.mxu0
        %v658 = vadd.f32 0.0, %v657
        %659 = vmatprep.mubr.bf16.mxu0 0
        %660 = vmatmul.mubr.bf16.gmra.mxu0 %v438
        %v661 = vpop.f32.mrf.mxu0
        %v662 = vadd.f32 0.0, %v661
        %v663 = vpop.f32.mrf.mxu0
        %v664 = vadd.f32 0.0, %v663
        %v665 = vpop.f32.mrf.mxu0
        %v666 = vadd.f32 0.0, %v665
        %v667 = vpop.f32.mrf.mxu0
        %v668 = vadd.f32 0.0, %v667
        %669 = vmatprep.mubr.bf16.mxu0 0
        %670 = vmatmul.mubr.bf16.gmra.mxu0 %v439
        %v671 = vpop.f32.mrf.mxu0
        %v672 = vadd.f32 0.0, %v671
        %v673 = vpop.f32.mrf.mxu0
        %v674 = vadd.f32 0.0, %v673
        %v675 = vpop.f32.mrf.mxu0
        %v676 = vadd.f32 0.0, %v675
        %v677 = vpop.f32.mrf.mxu0
        %v678 = vadd.f32 0.0, %v677
        %679 = vmatprep.mubr.bf16.mxu0 0
        %680 = vmatmul.mubr.bf16.gmra.mxu0 %v440
        %v681 = vpop.f32.mrf.mxu0
        %v682 = vadd.f32 0.0, %v681
        %v683 = vpop.f32.mrf.mxu0
        %v684 = vadd.f32 0.0, %v683
        %v685 = vpop.f32.mrf.mxu0
        %v686 = vadd.f32 0.0, %v685
        %v687 = vpop.f32.mrf.mxu0
        %v688 = vadd.f32 0.0, %v687
        %689 = vdwg.mxu0
        %690 = vmatprep.subr.bf16.mxu0 0
        %691 = vmatpush1.bf16.msra.mxu0 %v552
        %692 = vmatprep.subr.bf16.mxu0 0
        %693 = vmatpush1.bf16.msra.mxu0 %v549
        %694 = vmatprep.subr.bf16.mxu0 0
        %695 = vmatpush1.bf16.msra.mxu0 %v546
        %696 = vmatprep.subr.bf16.mxu0 0
        %697 = vmatpush1.bf16.msra.mxu0 %v543
        %698 = vmatprep.subr.bf16.mxu0 0
        %699 = vmatpush1.bf16.msra.mxu0 %v540
        %700 = vmatprep.subr.bf16.mxu0 0
        %701 = vmatpush1.bf16.msra.mxu0 %v537
        %702 = vmatprep.subr.bf16.mxu0 0
        %703 = vmatpush1.bf16.msra.mxu0 %v534
        %704 = vmatprep.subr.bf16.mxu0 0
        %705 = vmatpush1.bf16.msra.mxu0 %v531
        %706 = vmatprep.subr.bf16.mxu0 0
        %707 = vmatpush2.bf16.msra.mxu0 0
        %708 = vmatprep.subr.bf16.mxu0 0
        %709 = vmatpush2.bf16.msra.mxu0 0
        %710 = vmatprep.subr.bf16.mxu0 0
        %711 = vmatpush2.bf16.msra.mxu0 0
        %712 = vmatprep.subr.bf16.mxu0 0
        %713 = vmatpush2.bf16.msra.mxu0 0
        %714 = vmatprep.subr.bf16.mxu0 0
        %715 = vmatpush2.bf16.msra.mxu0 0
        %716 = vmatprep.subr.bf16.mxu0 0
        %717 = vmatpush2.bf16.msra.mxu0 0
        %718 = vmatprep.subr.bf16.mxu0 0
        %719 = vmatpush2.bf16.msra.mxu0 0
        %720 = vmatprep.subr.bf16.mxu0 0
        %721 = vmatpush2.bf16.msra.mxu0 0
        %722 = vmatprep.mubr.bf16.mxu0 0
        %723 = vmatmul.mubr.bf16.gmra.mxu0 %v433
        %v724 = vpop.f32.mrf.mxu0
        %v725 = vadd.f32 0.0, %v724
        %v726 = vpop.f32.mrf.mxu0
        %v727 = vpop.f32.mrf.mxu0
        %v728 = vadd.f32 0.0, %v727
        %v729 = vpop.f32.mrf.mxu0
        %730 = vmatprep.mubr.bf16.mxu0 0
        %731 = vmatmul.mubr.bf16.gmra.mxu0 %v434
        %v732 = vpop.f32.mrf.mxu0
        %v733 = vadd.f32 0.0, %v732
        %v734 = vpop.f32.mrf.mxu0
        %v735 = vpop.f32.mrf.mxu0
        %v736 = vadd.f32 0.0, %v735
        %v737 = vpop.f32.mrf.mxu0
        %738 = vmatprep.mubr.bf16.mxu0 0
        %739 = vmatmul.mubr.bf16.gmra.mxu0 %v435
        %v740 = vpop.f32.mrf.mxu0
        %v741 = vadd.f32 0.0, %v740
        %v742 = vpop.f32.mrf.mxu0
        %v743 = vpop.f32.mrf.mxu0
        %v744 = vadd.f32 0.0, %v743
        %v745 = vpop.f32.mrf.mxu0
        %746 = vmatprep.mubr.bf16.mxu0 0
        %747 = vmatmul.mubr.bf16.gmra.mxu0 %v436
        %v748 = vpop.f32.mrf.mxu0
        %v749 = vadd.f32 0.0, %v748
        %v750 = vpop.f32.mrf.mxu0
        %v751 = vpop.f32.mrf.mxu0
        %v752 = vadd.f32 0.0, %v751
        %v753 = vpop.f32.mrf.mxu0
        %754 = vmatprep.mubr.bf16.mxu0 0
        %755 = vmatmul.mubr.bf16.gmra.mxu0 %v437
        %v756 = vpop.f32.mrf.mxu0
        %v757 = vadd.f32 0.0, %v756
        %v758 = vpop.f32.mrf.mxu0
        %v759 = vpop.f32.mrf.mxu0
        %v760 = vadd.f32 0.0, %v759
        %v761 = vpop.f32.mrf.mxu0
        %762 = vmatprep.mubr.bf16.mxu0 0
        %763 = vmatmul.mubr.bf16.gmra.mxu0 %v438
        %v764 = vpop.f32.mrf.mxu0
        %v765 = vadd.f32 0.0, %v764
        %v766 = vpop.f32.mrf.mxu0
        %v767 = vpop.f32.mrf.mxu0
        %v768 = vadd.f32 0.0, %v767
        %v769 = vpop.f32.mrf.mxu0
        %770 = vmatprep.mubr.bf16.mxu0 0
        %771 = vmatmul.mubr.bf16.gmra.mxu0 %v439
        %v772 = vpop.f32.mrf.mxu0
        %v773 = vadd.f32 0.0, %v772
        %v774 = vpop.f32.mrf.mxu0
        %v775 = vpop.f32.mrf.mxu0
        %v776 = vadd.f32 0.0, %v775
        %v777 = vpop.f32.mrf.mxu0
        %778 = vmatprep.mubr.bf16.mxu0 0
        %779 = vmatmul.mubr.bf16.gmra.mxu0 %v440
        %v780 = vpop.f32.mrf.mxu0
        %v781 = vadd.f32 0.0, %v780
        %v782 = vpop.f32.mrf.mxu0
        %v783 = vpop.f32.mrf.mxu0
        %v784 = vadd.f32 0.0, %v783
        %v785 = vpop.f32.mrf.mxu0
        %786 = vdwg.mxu0
        %v787 = vmul.f32 %v612, 0.17677669
        %v788 = vmul.f32 %v616, 0.17677669
        %v789 = vmul.f32 %v622, 0.17677669
        %v790 = vmul.f32 %v626, 0.17677669
        %v791 = vmul.f32 %v632, 0.17677669
        %v792 = vmul.f32 %v636, 0.17677669
        %v793 = vmul.f32 %v642, 0.17677669
        %v794 = vmul.f32 %v646, 0.17677669
        %v795 = vmul.f32 %v652, 0.17677669
        %v796 = vmul.f32 %v656, 0.17677669
        %v797 = vmul.f32 %v662, 0.17677669
        %v798 = vmul.f32 %v666, 0.17677669
        %v799 = vmul.f32 %v672, 0.17677669
        %v800 = vmul.f32 %v676, 0.17677669
        %v801 = vmul.f32 %v682, 0.17677669
        %v802 = vmul.f32 %v686, 0.17677669
        %v803 = vld [vmem:[#allocation6] sm:$0xf]
        %v804 = vld [vmem:[#allocation6 + $0x4] sm:$0xf]
        %v805 = vld [vmem:[#allocation6 + $0x8] sm:$0xf]
        %v806 = vld [vmem:[#allocation6 + $0xc] sm:$0xf]
        %v807 = vld [vmem:[#allocation6 + $0x10] sm:$0xf]
        %v808 = vld [vmem:[#allocation6 + $0x14] sm:$0xf]
        %v809 = vld [vmem:[#allocation6 + $0x18] sm:$0xf]
        %v810 = vld [vmem:[#allocation6 + $0x1c] sm:$0xf]
        %v811 = vld [vmem:[#allocation8] sm:$0xf]
        %v812 = vld [vmem:[#allocation8 + $0x4] sm:$0xf]
        %v813 = vld [vmem:[#allocation8 + $0x8] sm:$0xf]
        %v814 = vld [vmem:[#allocation8 + $0xc] sm:$0xf]
        %v815 = vld [vmem:[#allocation8 + $0x10] sm:$0xf]
        %v816 = vld [vmem:[#allocation8 + $0x14] sm:$0xf]
        %v817 = vld [vmem:[#allocation8 + $0x18] sm:$0xf]
        %v818 = vld [vmem:[#allocation8 + $0x1c] sm:$0xf]
        %v819 = vld [vmem:[#allocation8 + $0x20] sm:$0xf]
        %v820 = vld [vmem:[#allocation8 + $0x24] sm:$0xf]
        %v821 = vld [vmem:[#allocation8 + $0x28] sm:$0xf]
        %v822 = vld [vmem:[#allocation8 + $0x2c] sm:$0xf]
        %v823 = vld [vmem:[#allocation8 + $0x30] sm:$0xf]
        %v824 = vld [vmem:[#allocation8 + $0x34] sm:$0xf]
        %v825 = vld [vmem:[#allocation8 + $0x38] sm:$0xf]
        %v826 = vld [vmem:[#allocation8 + $0x3c] sm:$0xf]
        %v827 = vld [vmem:[%s6] sm:$0xff]
        %v828 = vld [vmem:[%s6 + $0x8] sm:$0xff]
        %v829 = vld [vmem:[%s6 + $0x10] sm:$0xff]
        %v830 = vld [vmem:[%s6 + $0x18] sm:$0xff]
        %v831 = vld [vmem:[%s6 + $0x20] sm:$0xff]
        %v832 = vld [vmem:[%s6 + $0x28] sm:$0xff]
        %v833 = vld [vmem:[%s6 + $0x30] sm:$0xff]
        %v834 = vld [vmem:[%s6 + $0x38] sm:$0xff]
        %v835 = vld [vmem:[%s7] sm:$0xff]
        %v836 = vld [vmem:[%s7 + $0x8] sm:$0xff]
        %v837 = vld [vmem:[%s7 + $0x10] sm:$0xff]
        %v838 = vld [vmem:[%s7 + $0x18] sm:$0xff]
        %v839 = vld [vmem:[%s7 + $0x20] sm:$0xff]
        %v840 = vld [vmem:[%s7 + $0x28] sm:$0xff]
        %v841 = vld [vmem:[%s7 + $0x30] sm:$0xff]
        %v842 = vld [vmem:[%s7 + $0x38] sm:$0xff]
        %v843 = vpack.c.bf16 %v788, %v787
        %v844 = vpack.c.bf16 %v790, %v789
        %v845 = vpack.c.bf16 %v792, %v791
        %v846 = vpack.c.bf16 %v794, %v793
        %v847 = vpack.c.bf16 %v796, %v795
        %v848 = vpack.c.bf16 %v798, %v797
        %v849 = vpack.c.bf16 %v800, %v799
        %v850 = vpack.c.bf16 %v802, %v801
        %v851 = vpack.c.bf16 %v618, %v614
        %v852 = vpack.c.bf16 %v628, %v624
        %v853 = vpack.c.bf16 %v638, %v634
        %v854 = vpack.c.bf16 %v648, %v644
        %v855 = vpack.c.bf16 %v658, %v654
        %v856 = vpack.c.bf16 %v668, %v664
        %v857 = vpack.c.bf16 %v678, %v674
        %v858 = vpack.c.bf16 %v688, %v684
        %v859 = vpack.c.bf16 %v728, %v725
        %v860 = vpack.c.bf16 %v736, %v733
        %v861 = vpack.c.bf16 %v744, %v741
        %v862 = vpack.c.bf16 %v752, %v749
        %v863 = vpack.c.bf16 %v760, %v757
        %v864 = vpack.c.bf16 %v768, %v765
        %v865 = vpack.c.bf16 %v776, %v773
        %v866 = vpack.c.bf16 %v784, %v781
        %vm867 = vcmask 261120
        %v869 = vsel %vm867, %v843, 0
        %v872 = vsel %vm867, %v844, 0
        %v875 = vsel %vm867, %v845, 0
        %v878 = vsel %vm867, %v846, 0
        %v881 = vsel %vm867, %v851, 0
        %v884 = vsel %vm867, %v852, 0
        %v887 = vsel %vm867, %v853, 0
        %v890 = vsel %vm867, %v854, 0
        %892 = vmatprep.subr.bf16.mxu0 0
        %893 = vmatpush1.bf16.xpose.msra.mxu0 0
        %894 = vmatprep.subr.bf16.mxu0 0
        %895 = vmatpush1.bf16.xpose.msra.mxu0 0
        %896 = vmatprep.subr.bf16.mxu0 0
        %897 = vmatpush1.bf16.xpose.msra.mxu0 0
        %898 = vmatprep.subr.bf16.mxu0 0
        %899 = vmatpush1.bf16.xpose.msra.mxu0 0
        %900 = vmatprep.subr.bf16.mxu0 0
        %901 = vmatpush1.bf16.xpose.msra.mxu0 %v890
        %902 = vmatprep.subr.bf16.mxu0 0
        %903 = vmatpush1.bf16.xpose.msra.mxu0 %v887
        %904 = vmatprep.subr.bf16.mxu0 0
        %905 = vmatpush1.bf16.xpose.msra.mxu0 %v884
        %906 = vmatprep.subr.bf16.mxu0 0
        %907 = vmatpush1.bf16.xpose.msra.mxu0 %v881
        %908 = vmatprep.subr.bf16.mxu0 0
        %909 = vmatpush2.bf16.xpose.msra.mxu0 0
        %910 = vmatprep.subr.bf16.mxu0 0
        %911 = vmatpush2.bf16.xpose.msra.mxu0 0
        %912 = vmatprep.subr.bf16.mxu0 0
        %913 = vmatpush2.bf16.xpose.msra.mxu0 0
        %914 = vmatprep.subr.bf16.mxu0 0
        %915 = vmatpush2.bf16.xpose.msra.mxu0 0
        %916 = vmatprep.subr.bf16.mxu0 0
        %917 = vmatpush2.bf16.xpose.msra.mxu0 0
        %918 = vmatprep.subr.bf16.mxu0 0
        %919 = vmatpush2.bf16.xpose.msra.mxu0 0
        %920 = vmatprep.subr.bf16.mxu0 0
        %921 = vmatpush2.bf16.xpose.msra.mxu0 0
        %922 = vmatprep.subr.bf16.mxu0 0
        %923 = vmatpush2.bf16.xpose.msra.mxu0 0
        %924 = vmatprep.mubr.bf16.mxu0 0
        %925 = vmatmul.mubr.bf16.gmra.mxu0 %v869
        %v926 = vpop.f32.mrf.mxu0
        %v927 = vadd.f32 %v835, %v926
        %v928 = vpop.f32.mrf.mxu0
        %v929 = vpop.f32.mrf.mxu0
        %v930 = vadd.f32 %v836, %v929
        %v931 = vpop.f32.mrf.mxu0
        %932 = vmatprep.mubr.bf16.mxu0 0
        %933 = vmatmul.mubr.bf16.gmra.mxu0 %v872
        %v934 = vpop.f32.mrf.mxu0
        %v935 = vadd.f32 %v837, %v934
        %v936 = vpop.f32.mrf.mxu0
        %v937 = vpop.f32.mrf.mxu0
        %v938 = vadd.f32 %v838, %v937
        %v939 = vpop.f32.mrf.mxu0
        %940 = vmatprep.mubr.bf16.mxu0 0
        %941 = vmatmul.mubr.bf16.gmra.mxu0 %v875
        %v942 = vpop.f32.mrf.mxu0
        %v943 = vadd.f32 %v839, %v942
        %v944 = vpop.f32.mrf.mxu0
        %v945 = vpop.f32.mrf.mxu0
        %v946 = vadd.f32 %v840, %v945
        %v947 = vpop.f32.mrf.mxu0
        %948 = vmatprep.mubr.bf16.mxu0 0
        %949 = vmatmul.mubr.bf16.gmra.mxu0 %v878
        %v950 = vpop.f32.mrf.mxu0
        %v951 = vadd.f32 %v841, %v950
        %v952 = vpop.f32.mrf.mxu0
        %v953 = vpop.f32.mrf.mxu0
        %v954 = vadd.f32 %v842, %v953
        %v955 = vpop.f32.mrf.mxu0
        %956 = vdwg.mxu0
        %v958 = vsel %vm867, %v847, 0
        %v961 = vsel %vm867, %v848, 0
        %v964 = vsel %vm867, %v849, 0
        %v967 = vsel %vm867, %v850, 0
        %v970 = vsel %vm867, %v855, 0
        %v973 = vsel %vm867, %v856, 0
        %v976 = vsel %vm867, %v857, 0
        %v979 = vsel %vm867, %v858, 0
        %981 = vmatprep.subr.bf16.mxu0 0
        %982 = vmatpush1.bf16.xpose.msra.mxu0 0
        %983 = vmatprep.subr.bf16.mxu0 0
        %984 = vmatpush1.bf16.xpose.msra.mxu0 0
        %985 = vmatprep.subr.bf16.mxu0 0
        %986 = vmatpush1.bf16.xpose.msra.mxu0 0
        %987 = vmatprep.subr.bf16.mxu0 0
        %988 = vmatpush1.bf16.xpose.msra.mxu0 0
        %989 = vmatprep.subr.bf16.mxu0 0
        %990 = vmatpush1.bf16.xpose.msra.mxu0 %v979
        %991 = vmatprep.subr.bf16.mxu0 0
        %992 = vmatpush1.bf16.xpose.msra.mxu0 %v976
        %993 = vmatprep.subr.bf16.mxu0 0
        %994 = vmatpush1.bf16.xpose.msra.mxu0 %v973
        %995 = vmatprep.subr.bf16.mxu0 0
        %996 = vmatpush1.bf16.xpose.msra.mxu0 %v970
        %997 = vmatprep.subr.bf16.mxu0 0
        %998 = vmatpush2.bf16.xpose.msra.mxu0 0
        %999 = vmatprep.subr.bf16.mxu0 0
        %1000 = vmatpush2.bf16.xpose.msra.mxu0 0
        %1001 = vmatprep.subr.bf16.mxu0 0
        %1002 = vmatpush2.bf16.xpose.msra.mxu0 0
        %1003 = vmatprep.subr.bf16.mxu0 0
        %1004 = vmatpush2.bf16.xpose.msra.mxu0 0
        %1005 = vmatprep.subr.bf16.mxu0 0
        %1006 = vmatpush2.bf16.xpose.msra.mxu0 0
        %1007 = vmatprep.subr.bf16.mxu0 0
        %1008 = vmatpush2.bf16.xpose.msra.mxu0 0
        %1009 = vmatprep.subr.bf16.mxu0 0
        %1010 = vmatpush2.bf16.xpose.msra.mxu0 0
        %1011 = vmatprep.subr.bf16.mxu0 0
        %1012 = vmatpush2.bf16.xpose.msra.mxu0 0
        %1013 = vmatprep.mubr.bf16.mxu0 0
        %1014 = vmatmul.mubr.bf16.gmra.mxu0 %v958
        %v1015 = vpop.f32.mrf.mxu0
        %v1016 = vadd.f32 %v835, %v1015
        %v1017 = vpop.f32.mrf.mxu0
        %v1018 = vpop.f32.mrf.mxu0
        %v1019 = vadd.f32 %v836, %v1018
        %v1020 = vpop.f32.mrf.mxu0
        %1021 = vmatprep.mubr.bf16.mxu0 0
        %1022 = vmatmul.mubr.bf16.gmra.mxu0 %v961
        %v1023 = vpop.f32.mrf.mxu0
        %v1024 = vadd.f32 %v837, %v1023
        %v1025 = vpop.f32.mrf.mxu0
        %v1026 = vpop.f32.mrf.mxu0
        %v1027 = vadd.f32 %v838, %v1026
        %v1028 = vpop.f32.mrf.mxu0
        %1029 = vmatprep.mubr.bf16.mxu0 0
        %1030 = vmatmul.mubr.bf16.gmra.mxu0 %v964
        %v1031 = vpop.f32.mrf.mxu0
        %v1032 = vadd.f32 %v839, %v1031
        %v1033 = vpop.f32.mrf.mxu0
        %v1034 = vpop.f32.mrf.mxu0
        %v1035 = vadd.f32 %v840, %v1034
        %v1036 = vpop.f32.mrf.mxu0
        %1037 = vmatprep.mubr.bf16.mxu0 0
        %1038 = vmatmul.mubr.bf16.gmra.mxu0 %v967
        %v1039 = vpop.f32.mrf.mxu0
        %v1040 = vadd.f32 %v841, %v1039
        %v1041 = vpop.f32.mrf.mxu0
        %v1042 = vpop.f32.mrf.mxu0
        %v1043 = vadd.f32 %v842, %v1042
        %v1044 = vpop.f32.mrf.mxu0
        %1045 = vdwg.mxu0
        %vm1046 = vcmask 523264
        %v1047 = vsel %vm1046, %v927, -inf
        %1048 = vmax.xlane.f32.xlu0 %v1047
        %v1049 = vpop.xlane.xlu0 %1048
        %v1050 = vsel %vm1046, %v930, -inf
        %1051 = vmax.xlane.f32.xlu0 %v1050
        %v1052 = vpop.xlane.xlu0 %1051
        %v1053 = vsel %vm1046, %v935, -inf
        %1054 = vmax.xlane.f32.xlu0 %v1053
        %v1055 = vpop.xlane.xlu0 %1054
        %v1056 = vsel %vm1046, %v938, -inf
        %1057 = vmax.xlane.f32.xlu0 %v1056
        %v1058 = vpop.xlane.xlu0 %1057
        %v1059 = vsel %vm1046, %v943, -inf
        %1060 = vmax.xlane.f32.xlu0 %v1059
        %v1061 = vpop.xlane.xlu0 %1060
        %v1062 = vsel %vm1046, %v946, -inf
        %1063 = vmax.xlane.f32.xlu0 %v1062
        %v1064 = vpop.xlane.xlu0 %1063
        %v1065 = vsel %vm1046, %v951, -inf
        %1066 = vmax.xlane.f32.xlu0 %v1065
        %v1067 = vpop.xlane.xlu0 %1066
        %v1068 = vsel %vm1046, %v954, -inf
        %1069 = vmax.xlane.f32.xlu0 %v1068
        %v1070 = vpop.xlane.xlu0 %1069
        %v1071 = vsel %vm1046, %v1016, -inf
        %1072 = vmax.xlane.f32.xlu0 %v1071
        %v1073 = vpop.xlane.xlu0 %1072
        %v1074 = vsel %vm1046, %v1019, -inf
        %1075 = vmax.xlane.f32.xlu0 %v1074
        %v1076 = vpop.xlane.xlu0 %1075
        %v1077 = vsel %vm1046, %v1024, -inf
        %1078 = vmax.xlane.f32.xlu0 %v1077
        %v1079 = vpop.xlane.xlu0 %1078
        %v1080 = vsel %vm1046, %v1027, -inf
        %1081 = vmax.xlane.f32.xlu0 %v1080
        %v1082 = vpop.xlane.xlu0 %1081
        %v1083 = vsel %vm1046, %v1032, -inf
        %1084 = vmax.xlane.f32.xlu0 %v1083
        %v1085 = vpop.xlane.xlu0 %1084
        %v1086 = vsel %vm1046, %v1035, -inf
        %1087 = vmax.xlane.f32.xlu0 %v1086
        %v1088 = vpop.xlane.xlu0 %1087
        %v1089 = vsel %vm1046, %v1040, -inf
        %1090 = vmax.xlane.f32.xlu0 %v1089
        %v1091 = vpop.xlane.xlu0 %1090
        %v1092 = vsel %vm1046, %v1043, -inf
        %1093 = vmax.xlane.f32.xlu0 %v1092
        %v1094 = vpop.xlane.xlu0 %1093
        %v1095 = vsub.f32 %v927, %v1049
        %v1096 = vsub.f32 %v930, %v1052
        %v1097 = vsub.f32 %v935, %v1055
        %v1098 = vsub.f32 %v938, %v1058
        %v1099 = vsub.f32 %v943, %v1061
        %v1100 = vsub.f32 %v946, %v1064
        %v1101 = vsub.f32 %v951, %v1067
        %v1102 = vsub.f32 %v954, %v1070
        %v1103 = vsub.f32 %v1016, %v1073
        %v1104 = vsub.f32 %v1019, %v1076
        %v1105 = vsub.f32 %v1024, %v1079
        %v1106 = vsub.f32 %v1027, %v1082
        %v1107 = vsub.f32 %v1032, %v1085
        %v1108 = vsub.f32 %v1035, %v1088
        %v1109 = vsub.f32 %v1040, %v1091
        %v1110 = vsub.f32 %v1043, %v1094
        %v1111 = vmul.f32 %v1095, 1.442695
        %v1112 = vpow.pop %v1111
        %v1113 = vmul.f32 %v1096, 1.442695
        %v1114 = vpow.pop %v1113
        %v1115 = vmul.f32 %v1097, 1.442695
        %v1116 = vpow.pop %v1115
        %v1117 = vmul.f32 %v1098, 1.442695
        %v1118 = vpow.pop %v1117
        %v1119 = vmul.f32 %v1099, 1.442695
        %v1120 = vpow.pop %v1119
        %v1121 = vmul.f32 %v1100, 1.442695
        %v1122 = vpow.pop %v1121
        %v1123 = vmul.f32 %v1101, 1.442695
        %v1124 = vpow.pop %v1123
        %v1125 = vmul.f32 %v1102, 1.442695
        %v1126 = vpow.pop %v1125
        %v1127 = vmul.f32 %v1103, 1.442695
        %v1128 = vpow.pop %v1127
        %v1129 = vmul.f32 %v1104, 1.442695
        %v1130 = vpow.pop %v1129
        %v1131 = vmul.f32 %v1105, 1.442695
        %v1132 = vpow.pop %v1131
        %v1133 = vmul.f32 %v1106, 1.442695
        %v1134 = vpow.pop %v1133
        %v1135 = vmul.f32 %v1107, 1.442695
        %v1136 = vpow.pop %v1135
        %v1137 = vmul.f32 %v1108, 1.442695
        %v1138 = vpow.pop %v1137
        %v1139 = vmul.f32 %v1109, 1.442695
        %v1140 = vpow.pop %v1139
        %v1141 = vmul.f32 %v1110, 1.442695
        %v1142 = vpow.pop %v1141
        %1147 = vrot.lane.b32.xlu0 %v843, 96
        %v1148 = vpop.permute.xlu0 %1147
        %1149 = vrot.lane.b32.xlu0 %v844, 96
        %v1150 = vpop.permute.xlu0 %1149
        %1151 = vrot.lane.b32.xlu0 %v845, 96
        %v1152 = vpop.permute.xlu0 %1151
        %1153 = vrot.lane.b32.xlu0 %v846, 96
        %v1154 = vpop.permute.xlu0 %1153
        %1159 = vrot.lane.b32.xlu0 %v851, 96
        %v1160 = vpop.permute.xlu0 %1159
        %1161 = vrot.lane.b32.xlu0 %v852, 96
        %v1162 = vpop.permute.xlu0 %1161
        %1163 = vrot.lane.b32.xlu0 %v853, 96
        %v1164 = vpop.permute.xlu0 %1163
        %1165 = vrot.lane.b32.xlu0 %v854, 96
        %v1166 = vpop.permute.xlu0 %1165
        %v1168 = vsel %vm867, %v1148, 0
        %v1171 = vsel %vm867, %v1150, 0
        %v1174 = vsel %vm867, %v1152, 0
        %v1177 = vsel %vm867, %v1154, 0
        %v1180 = vsel %vm867, %v1160, 0
        %v1183 = vsel %vm867, %v1162, 0
        %v1186 = vsel %vm867, %v1164, 0
        %v1189 = vsel %vm867, %v1166, 0
        %1191 = vmatprep.subr.bf16.mxu0 0
        %1192 = vmatpush1.bf16.xpose.msra.mxu0 0
        %1193 = vmatprep.subr.bf16.mxu0 0
        %1194 = vmatpush1.bf16.xpose.msra.mxu0 0
        %1195 = vmatprep.subr.bf16.mxu0 0
        %1196 = vmatpush1.bf16.xpose.msra.mxu0 0
        %1197 = vmatprep.subr.bf16.mxu0 0
        %1198 = vmatpush1.bf16.xpose.msra.mxu0 0
        %1199 = vmatprep.subr.bf16.mxu0 0
        %1200 = vmatpush1.bf16.xpose.msra.mxu0 %v1189
        %1201 = vmatprep.subr.bf16.mxu0 0
        %1202 = vmatpush1.bf16.xpose.msra.mxu0 %v1186
        %1203 = vmatprep.subr.bf16.mxu0 0
        %1204 = vmatpush1.bf16.xpose.msra.mxu0 %v1183
        %1205 = vmatprep.subr.bf16.mxu0 0
        %1206 = vmatpush1.bf16.xpose.msra.mxu0 %v1180
        %1207 = vmatprep.subr.bf16.mxu0 0
        %1208 = vmatpush2.bf16.xpose.msra.mxu0 0
        %1209 = vmatprep.subr.bf16.mxu0 0
        %1210 = vmatpush2.bf16.xpose.msra.mxu0 0
        %1211 = vmatprep.subr.bf16.mxu0 0
        %1212 = vmatpush2.bf16.xpose.msra.mxu0 0
        %1213 = vmatprep.subr.bf16.mxu0 0
        %1214 = vmatpush2.bf16.xpose.msra.mxu0 0
        %1215 = vmatprep.subr.bf16.mxu0 0
        %1216 = vmatpush2.bf16.xpose.msra.mxu0 0
        %1217 = vmatprep.subr.bf16.mxu0 0
        %1218 = vmatpush2.bf16.xpose.msra.mxu0 0
        %1219 = vmatprep.subr.bf16.mxu0 0
        %1220 = vmatpush2.bf16.xpose.msra.mxu0 0
        %1221 = vmatprep.subr.bf16.mxu0 0
        %1222 = vmatpush2.bf16.xpose.msra.mxu0 0
        %1223 = vmatprep.mubr.bf16.mxu0 0
        %1224 = vmatmul.mubr.bf16.gmra.mxu0 %v1168
        %v1225 = vpop.f32.mrf.mxu0
        %v1226 = vadd.f32 %v835, %v1225
        %v1227 = vpop.f32.mrf.mxu0
        %v1228 = vpop.f32.mrf.mxu0
        %v1229 = vadd.f32 %v836, %v1228
        %v1230 = vpop.f32.mrf.mxu0
        %1231 = vmatprep.mubr.bf16.mxu0 0
        %1232 = vmatmul.mubr.bf16.gmra.mxu0 %v1171
        %v1233 = vpop.f32.mrf.mxu0
        %v1234 = vadd.f32 %v837, %v1233
        %v1235 = vpop.f32.mrf.mxu0
        %v1236 = vpop.f32.mrf.mxu0
        %v1237 = vadd.f32 %v838, %v1236
        %v1238 = vpop.f32.mrf.mxu0
        %1239 = vmatprep.mubr.bf16.mxu0 0
        %1240 = vmatmul.mubr.bf16.gmra.mxu0 %v1174
        %v1241 = vpop.f32.mrf.mxu0
        %v1242 = vadd.f32 %v839, %v1241
        %v1243 = vpop.f32.mrf.mxu0
        %v1244 = vpop.f32.mrf.mxu0
        %v1245 = vadd.f32 %v840, %v1244
        %v1246 = vpop.f32.mrf.mxu0
        %1247 = vmatprep.mubr.bf16.mxu0 0
        %1248 = vmatmul.mubr.bf16.gmra.mxu0 %v1177
        %v1249 = vpop.f32.mrf.mxu0
        %v1250 = vadd.f32 %v841, %v1249
        %v1251 = vpop.f32.mrf.mxu0
        %v1252 = vpop.f32.mrf.mxu0
        %v1253 = vadd.f32 %v842, %v1252
        %v1254 = vpop.f32.mrf.mxu0
        %1255 = vdwg.mxu0
        %1260 = vrot.lane.b32.xlu0 %v847, 96
        %v1261 = vpop.permute.xlu0 %1260
        %1262 = vrot.lane.b32.xlu0 %v848, 96
        %v1263 = vpop.permute.xlu0 %1262
        %1264 = vrot.lane.b32.xlu0 %v849, 96
        %v1265 = vpop.permute.xlu0 %1264
        %1266 = vrot.lane.b32.xlu0 %v850, 96
        %v1267 = vpop.permute.xlu0 %1266
        %1272 = vrot.lane.b32.xlu0 %v855, 96
        %v1273 = vpop.permute.xlu0 %1272
        %1274 = vrot.lane.b32.xlu0 %v856, 96
        %v1275 = vpop.permute.xlu0 %1274
        %1276 = vrot.lane.b32.xlu0 %v857, 96
        %v1277 = vpop.permute.xlu0 %1276
        %1278 = vrot.lane.b32.xlu0 %v858, 96
        %v1279 = vpop.permute.xlu0 %1278
        %v1281 = vsel %vm867, %v1261, 0
        %v1284 = vsel %vm867, %v1263, 0
        %v1287 = vsel %vm867, %v1265, 0
        %v1290 = vsel %vm867, %v1267, 0
        %v1293 = vsel %vm867, %v1273, 0
        %v1296 = vsel %vm867, %v1275, 0
        %v1299 = vsel %vm867, %v1277, 0
        %v1302 = vsel %vm867, %v1279, 0
        %1304 = vmatprep.subr.bf16.mxu0 0
        %1305 = vmatpush1.bf16.xpose.msra.mxu0 0
        %1306 = vmatprep.subr.bf16.mxu0 0
        %1307 = vmatpush1.bf16.xpose.msra.mxu0 0
        %1308 = vmatprep.subr.bf16.mxu0 0
        %1309 = vmatpush1.bf16.xpose.msra.mxu0 0
        %1310 = vmatprep.subr.bf16.mxu0 0
        %1311 = vmatpush1.bf16.xpose.msra.mxu0 0
        %1312 = vmatprep.subr.bf16.mxu0 0
        %1313 = vmatpush1.bf16.xpose.msra.mxu0 %v1302
        %1314 = vmatprep.subr.bf16.mxu0 0
        %1315 = vmatpush1.bf16.xpose.msra.mxu0 %v1299
        %1316 = vmatprep.subr.bf16.mxu0 0
        %1317 = vmatpush1.bf16.xpose.msra.mxu0 %v1296
        %1318 = vmatprep.subr.bf16.mxu0 0
        %1319 = vmatpush1.bf16.xpose.msra.mxu0 %v1293
        %1320 = vmatprep.subr.bf16.mxu0 0
        %1321 = vmatpush2.bf16.xpose.msra.mxu0 0
        %1322 = vmatprep.subr.bf16.mxu0 0
        %1323 = vmatpush2.bf16.xpose.msra.mxu0 0
        %1324 = vmatprep.subr.bf16.mxu0 0
        %1325 = vmatpush2.bf16.xpose.msra.mxu0 0
        %1326 = vmatprep.subr.bf16.mxu0 0
        %1327 = vmatpush2.bf16.xpose.msra.mxu0 0
        %1328 = vmatprep.subr.bf16.mxu0 0
        %1329 = vmatpush2.bf16.xpose.msra.mxu0 0
        %1330 = vmatprep.subr.bf16.mxu0 0
        %1331 = vmatpush2.bf16.xpose.msra.mxu0 0
        %1332 = vmatprep.subr.bf16.mxu0 0
        %1333 = vmatpush2.bf16.xpose.msra.mxu0 0
        %1334 = vmatprep.subr.bf16.mxu0 0
        %1335 = vmatpush2.bf16.xpose.msra.mxu0 0
        %1336 = vmatprep.mubr.bf16.mxu0 0
        %1337 = vmatmul.mubr.bf16.gmra.mxu0 %v1281
        %v1338 = vpop.f32.mrf.mxu0
        %v1339 = vadd.f32 %v835, %v1338
        %v1340 = vpop.f32.mrf.mxu0
        %v1341 = vpop.f32.mrf.mxu0
        %v1342 = vadd.f32 %v836, %v1341
        %v1343 = vpop.f32.mrf.mxu0
        %1344 = vmatprep.mubr.bf16.mxu0 0
        %1345 = vmatmul.mubr.bf16.gmra.mxu0 %v1284
        %v1346 = vpop.f32.mrf.mxu0
        %v1347 = vadd.f32 %v837, %v1346
        %v1348 = vpop.f32.mrf.mxu0
        %v1349 = vpop.f32.mrf.mxu0
        %v1350 = vadd.f32 %v838, %v1349
        %v1351 = vpop.f32.mrf.mxu0
        %1352 = vmatprep.mubr.bf16.mxu0 0
        %1353 = vmatmul.mubr.bf16.gmra.mxu0 %v1287
        %v1354 = vpop.f32.mrf.mxu0
        %v1355 = vadd.f32 %v839, %v1354
        %v1356 = vpop.f32.mrf.mxu0
        %v1357 = vpop.f32.mrf.mxu0
        %v1358 = vadd.f32 %v840, %v1357
        %v1359 = vpop.f32.mrf.mxu0
        %1360 = vmatprep.mubr.bf16.mxu0 0
        %1361 = vmatmul.mubr.bf16.gmra.mxu0 %v1290
        %v1362 = vpop.f32.mrf.mxu0
        %v1363 = vadd.f32 %v841, %v1362
        %v1364 = vpop.f32.mrf.mxu0
        %v1365 = vpop.f32.mrf.mxu0
        %v1366 = vadd.f32 %v842, %v1365
        %v1367 = vpop.f32.mrf.mxu0
        %1368 = vdwg.mxu0
        %v1369 = vsel %vm1046, %v1226, -inf
        %1370 = vmax.xlane.f32.xlu0 %v1369
        %v1371 = vpop.xlane.xlu0 %1370
        %v1372 = vsel %vm1046, %v1229, -inf
        %1373 = vmax.xlane.f32.xlu0 %v1372
        %v1374 = vpop.xlane.xlu0 %1373
        %v1375 = vsel %vm1046, %v1234, -inf
        %1376 = vmax.xlane.f32.xlu0 %v1375
        %v1377 = vpop.xlane.xlu0 %1376
        %v1378 = vsel %vm1046, %v1237, -inf
        %1379 = vmax.xlane.f32.xlu0 %v1378
        %v1380 = vpop.xlane.xlu0 %1379
        %v1381 = vsel %vm1046, %v1242, -inf
        %1382 = vmax.xlane.f32.xlu0 %v1381
        %v1383 = vpop.xlane.xlu0 %1382
        %v1384 = vsel %vm1046, %v1245, -inf
        %1385 = vmax.xlane.f32.xlu0 %v1384
        %v1386 = vpop.xlane.xlu0 %1385
        %v1387 = vsel %vm1046, %v1250, -inf
        %1388 = vmax.xlane.f32.xlu0 %v1387
        %v1389 = vpop.xlane.xlu0 %1388
        %v1390 = vsel %vm1046, %v1253, -inf
        %1391 = vmax.xlane.f32.xlu0 %v1390
        %v1392 = vpop.xlane.xlu0 %1391
        %v1393 = vsel %vm1046, %v1339, -inf
        %1394 = vmax.xlane.f32.xlu0 %v1393
        %v1395 = vpop.xlane.xlu0 %1394
        %v1396 = vsel %vm1046, %v1342, -inf
        %1397 = vmax.xlane.f32.xlu0 %v1396
        %v1398 = vpop.xlane.xlu0 %1397
        %v1399 = vsel %vm1046, %v1347, -inf
        %1400 = vmax.xlane.f32.xlu0 %v1399
        %v1401 = vpop.xlane.xlu0 %1400
        %v1402 = vsel %vm1046, %v1350, -inf
        %1403 = vmax.xlane.f32.xlu0 %v1402
        %v1404 = vpop.xlane.xlu0 %1403
        %v1405 = vsel %vm1046, %v1355, -inf
        %1406 = vmax.xlane.f32.xlu0 %v1405
        %v1407 = vpop.xlane.xlu0 %1406
        %v1408 = vsel %vm1046, %v1358, -inf
        %1409 = vmax.xlane.f32.xlu0 %v1408
        %v1410 = vpop.xlane.xlu0 %1409
        %v1411 = vsel %vm1046, %v1363, -inf
        %1412 = vmax.xlane.f32.xlu0 %v1411
        %v1413 = vpop.xlane.xlu0 %1412
        %v1414 = vsel %vm1046, %v1366, -inf
        %1415 = vmax.xlane.f32.xlu0 %v1414
        %v1416 = vpop.xlane.xlu0 %1415
        %v1417 = vsub.f32 %v1226, %v1371
        %v1418 = vsub.f32 %v1229, %v1374
        %v1419 = vsub.f32 %v1234, %v1377
        %v1420 = vsub.f32 %v1237, %v1380
        %v1421 = vsub.f32 %v1242, %v1383
        %v1422 = vsub.f32 %v1245, %v1386
        %v1423 = vsub.f32 %v1250, %v1389
        %v1424 = vsub.f32 %v1253, %v1392
        %v1425 = vsub.f32 %v1339, %v1395
        %v1426 = vsub.f32 %v1342, %v1398
        %v1427 = vsub.f32 %v1347, %v1401
        %v1428 = vsub.f32 %v1350, %v1404
        %v1429 = vsub.f32 %v1355, %v1407
        %v1430 = vsub.f32 %v1358, %v1410
        %v1431 = vsub.f32 %v1363, %v1413
        %v1432 = vsub.f32 %v1366, %v1416
        %v1433 = vmul.f32 %v1417, 1.442695
        %v1434 = vpow.pop %v1433
        %v1435 = vmul.f32 %v1418, 1.442695
        %v1436 = vpow.pop %v1435
        %v1437 = vmul.f32 %v1419, 1.442695
        %v1438 = vpow.pop %v1437
        %v1439 = vmul.f32 %v1420, 1.442695
        %v1440 = vpow.pop %v1439
        %v1441 = vmul.f32 %v1421, 1.442695
        %v1442 = vpow.pop %v1441
        %v1443 = vmul.f32 %v1422, 1.442695
        %v1444 = vpow.pop %v1443
        %v1445 = vmul.f32 %v1423, 1.442695
        %v1446 = vpow.pop %v1445
        %v1447 = vmul.f32 %v1424, 1.442695
        %v1448 = vpow.pop %v1447
        %v1449 = vmul.f32 %v1425, 1.442695
        %v1450 = vpow.pop %v1449
        %v1451 = vmul.f32 %v1426, 1.442695
        %v1452 = vpow.pop %v1451
        %v1453 = vmul.f32 %v1427, 1.442695
        %v1454 = vpow.pop %v1453
        %v1455 = vmul.f32 %v1428, 1.442695
        %v1456 = vpow.pop %v1455
        %v1457 = vmul.f32 %v1429, 1.442695
        %v1458 = vpow.pop %v1457
        %v1459 = vmul.f32 %v1430, 1.442695
        %v1460 = vpow.pop %v1459
        %v1461 = vmul.f32 %v1431, 1.442695
        %v1462 = vpow.pop %v1461
        %v1463 = vmul.f32 %v1432, 1.442695
        %v1464 = vpow.pop %v1463
        %1465 = vrot.lane.b32.xlu0 %v843, 64
        %v1466 = vpop.permute.xlu0 %1465
        %1467 = vrot.lane.b32.xlu0 %v844, 64
        %v1468 = vpop.permute.xlu0 %1467
        %1469 = vrot.lane.b32.xlu0 %v845, 64
        %v1470 = vpop.permute.xlu0 %1469
        %1471 = vrot.lane.b32.xlu0 %v846, 64
        %v1472 = vpop.permute.xlu0 %1471
        %1473 = vrot.lane.b32.xlu0 %v851, 64
        %v1474 = vpop.permute.xlu0 %1473
        %1475 = vrot.lane.b32.xlu0 %v852, 64
        %v1476 = vpop.permute.xlu0 %1475
        %1477 = vrot.lane.b32.xlu0 %v853, 64
        %v1478 = vpop.permute.xlu0 %1477
        %1479 = vrot.lane.b32.xlu0 %v854, 64
        %v1480 = vpop.permute.xlu0 %1479
        %v1482 = vsel %vm867, %v1466, 0
        %v1485 = vsel %vm867, %v1468, 0
        %v1488 = vsel %vm867, %v1470, 0
        %v1491 = vsel %vm867, %v1472, 0
        %v1494 = vsel %vm867, %v1474, 0
        %v1497 = vsel %vm867, %v1476, 0
        %v1500 = vsel %vm867, %v1478, 0
        %v1503 = vsel %vm867, %v1480, 0
        %1505 = vmatprep.subr.bf16.mxu0 0
        %1506 = vmatpush1.bf16.xpose.msra.mxu0 0
        %1507 = vmatprep.subr.bf16.mxu0 0
        %1508 = vmatpush1.bf16.xpose.msra.mxu0 0
        %1509 = vmatprep.subr.bf16.mxu0 0
        %1510 = vmatpush1.bf16.xpose.msra.mxu0 0
        %1511 = vmatprep.subr.bf16.mxu0 0
        %1512 = vmatpush1.bf16.xpose.msra.mxu0 0
        %1513 = vmatprep.subr.bf16.mxu0 0
        %1514 = vmatpush1.bf16.xpose.msra.mxu0 %v1503
        %1515 = vmatprep.subr.bf16.mxu0 0
        %1516 = vmatpush1.bf16.xpose.msra.mxu0 %v1500
        %1517 = vmatprep.subr.bf16.mxu0 0
        %1518 = vmatpush1.bf16.xpose.msra.mxu0 %v1497
        %1519 = vmatprep.subr.bf16.mxu0 0
        %1520 = vmatpush1.bf16.xpose.msra.mxu0 %v1494
        %1521 = vmatprep.subr.bf16.mxu0 0
        %1522 = vmatpush2.bf16.xpose.msra.mxu0 0
        %1523 = vmatprep.subr.bf16.mxu0 0
        %1524 = vmatpush2.bf16.xpose.msra.mxu0 0
        %1525 = vmatprep.subr.bf16.mxu0 0
        %1526 = vmatpush2.bf16.xpose.msra.mxu0 0
        %1527 = vmatprep.subr.bf16.mxu0 0
        %1528 = vmatpush2.bf16.xpose.msra.mxu0 0
        %1529 = vmatprep.subr.bf16.mxu0 0
        %1530 = vmatpush2.bf16.xpose.msra.mxu0 0
        %1531 = vmatprep.subr.bf16.mxu0 0
        %1532 = vmatpush2.bf16.xpose.msra.mxu0 0
        %1533 = vmatprep.subr.bf16.mxu0 0
        %1534 = vmatpush2.bf16.xpose.msra.mxu0 0
        %1535 = vmatprep.subr.bf16.mxu0 0
        %1536 = vmatpush2.bf16.xpose.msra.mxu0 0
        %1537 = vmatprep.mubr.bf16.mxu0 0
        %1538 = vmatmul.mubr.bf16.gmra.mxu0 %v1482
        %v1539 = vpop.f32.mrf.mxu0
        %v1540 = vadd.f32 %v835, %v1539
        %v1541 = vpop.f32.mrf.mxu0
        %v1542 = vpop.f32.mrf.mxu0
        %v1543 = vadd.f32 %v836, %v1542
        %v1544 = vpop.f32.mrf.mxu0
        %1545 = vmatprep.mubr.bf16.mxu0 0
        %1546 = vmatmul.mubr.bf16.gmra.mxu0 %v1485
        %v1547 = vpop.f32.mrf.mxu0
        %v1548 = vadd.f32 %v837, %v1547
        %v1549 = vpop.f32.mrf.mxu0
        %v1550 = vpop.f32.mrf.mxu0
        %v1551 = vadd.f32 %v838, %v1550
        %v1552 = vpop.f32.mrf.mxu0
        %1553 = vmatprep.mubr.bf16.mxu0 0
        %1554 = vmatmul.mubr.bf16.gmra.mxu0 %v1488
        %v1555 = vpop.f32.mrf.mxu0
        %v1556 = vadd.f32 %v839, %v1555
        %v1557 = vpop.f32.mrf.mxu0
        %v1558 = vpop.f32.mrf.mxu0
        %v1559 = vadd.f32 %v840, %v1558
        %v1560 = vpop.f32.mrf.mxu0
        %1561 = vmatprep.mubr.bf16.mxu0 0
        %1562 = vmatmul.mubr.bf16.gmra.mxu0 %v1491
        %v1563 = vpop.f32.mrf.mxu0
        %v1564 = vadd.f32 %v841, %v1563
        %v1565 = vpop.f32.mrf.mxu0
        %v1566 = vpop.f32.mrf.mxu0
        %v1567 = vadd.f32 %v842, %v1566
        %v1568 = vpop.f32.mrf.mxu0
        %1569 = vdwg.mxu0
        %1570 = vrot.lane.b32.xlu0 %v847, 64
        %v1571 = vpop.permute.xlu0 %1570
        %1572 = vrot.lane.b32.xlu0 %v848, 64
        %v1573 = vpop.permute.xlu0 %1572
        %1574 = vrot.lane.b32.xlu0 %v849, 64
        %v1575 = vpop.permute.xlu0 %1574
        %1576 = vrot.lane.b32.xlu0 %v850, 64
        %v1577 = vpop.permute.xlu0 %1576
        %1578 = vrot.lane.b32.xlu0 %v855, 64
        %v1579 = vpop.permute.xlu0 %1578
        %1580 = vrot.lane.b32.xlu0 %v856, 64
        %v1581 = vpop.permute.xlu0 %1580
        %1582 = vrot.lane.b32.xlu0 %v857, 64
        %v1583 = vpop.permute.xlu0 %1582
        %1584 = vrot.lane.b32.xlu0 %v858, 64
        %v1585 = vpop.permute.xlu0 %1584
        %v1587 = vsel %vm867, %v1571, 0
        %v1590 = vsel %vm867, %v1573, 0
        %v1593 = vsel %vm867, %v1575, 0
        %v1596 = vsel %vm867, %v1577, 0
        %v1599 = vsel %vm867, %v1579, 0
        %v1602 = vsel %vm867, %v1581, 0
        %v1605 = vsel %vm867, %v1583, 0
        %v1608 = vsel %vm867, %v1585, 0
        %1610 = vmatprep.subr.bf16.mxu0 0
        %1611 = vmatpush1.bf16.xpose.msra.mxu0 0
        %1612 = vmatprep.subr.bf16.mxu0 0
        %1613 = vmatpush1.bf16.xpose.msra.mxu0 0
        %1614 = vmatprep.subr.bf16.mxu0 0
        %1615 = vmatpush1.bf16.xpose.msra.mxu0 0
        %1616 = vmatprep.subr.bf16.mxu0 0
        %1617 = vmatpush1.bf16.xpose.msra.mxu0 0
        %1618 = vmatprep.subr.bf16.mxu0 0
        %1619 = vmatpush1.bf16.xpose.msra.mxu0 %v1608
        %1620 = vmatprep.subr.bf16.mxu0 0
        %1621 = vmatpush1.bf16.xpose.msra.mxu0 %v1605
        %1622 = vmatprep.subr.bf16.mxu0 0
        %1623 = vmatpush1.bf16.xpose.msra.mxu0 %v1602
        %1624 = vmatprep.subr.bf16.mxu0 0
        %1625 = vmatpush1.bf16.xpose.msra.mxu0 %v1599
        %1626 = vmatprep.subr.bf16.mxu0 0
        %1627 = vmatpush2.bf16.xpose.msra.mxu0 0
        %1628 = vmatprep.subr.bf16.mxu0 0
        %1629 = vmatpush2.bf16.xpose.msra.mxu0 0
        %1630 = vmatprep.subr.bf16.mxu0 0
        %1631 = vmatpush2.bf16.xpose.msra.mxu0 0
        %1632 = vmatprep.subr.bf16.mxu0 0
        %1633 = vmatpush2.bf16.xpose.msra.mxu0 0
        %1634 = vmatprep.subr.bf16.mxu0 0
        %1635 = vmatpush2.bf16.xpose.msra.mxu0 0
        %1636 = vmatprep.subr.bf16.mxu0 0
        %1637 = vmatpush2.bf16.xpose.msra.mxu0 0
        %1638 = vmatprep.subr.bf16.mxu0 0
        %1639 = vmatpush2.bf16.xpose.msra.mxu0 0
        %1640 = vmatprep.subr.bf16.mxu0 0
        %1641 = vmatpush2.bf16.xpose.msra.mxu0 0
        %1642 = vmatprep.mubr.bf16.mxu0 0
        %1643 = vmatmul.mubr.bf16.gmra.mxu0 %v1587
        %v1644 = vpop.f32.mrf.mxu0
        %v1645 = vadd.f32 %v835, %v1644
        %v1646 = vpop.f32.mrf.mxu0
        %v1647 = vpop.f32.mrf.mxu0
        %v1648 = vadd.f32 %v836, %v1647
        %v1649 = vpop.f32.mrf.mxu0
        %1650 = vmatprep.mubr.bf16.mxu0 0
        %1651 = vmatmul.mubr.bf16.gmra.mxu0 %v1590
        %v1652 = vpop.f32.mrf.mxu0
        %v1653 = vadd.f32 %v837, %v1652
        %v1654 = vpop.f32.mrf.mxu0
        %v1655 = vpop.f32.mrf.mxu0
        %v1656 = vadd.f32 %v838, %v1655
        %v1657 = vpop.f32.mrf.mxu0
        %1658 = vmatprep.mubr.bf16.mxu0 0
        %1659 = vmatmul.mubr.bf16.gmra.mxu0 %v1593
        %v1660 = vpop.f32.mrf.mxu0
        %v1661 = vadd.f32 %v839, %v1660
        %v1662 = vpop.f32.mrf.mxu0
        %v1663 = vpop.f32.mrf.mxu0
        %v1664 = vadd.f32 %v840, %v1663
        %v1665 = vpop.f32.mrf.mxu0
        %1666 = vmatprep.mubr.bf16.mxu0 0
        %1667 = vmatmul.mubr.bf16.gmra.mxu0 %v1596
        %v1668 = vpop.f32.mrf.mxu0
        %v1669 = vadd.f32 %v841, %v1668
        %v1670 = vpop.f32.mrf.mxu0
        %v1671 = vpop.f32.mrf.mxu0
        %v1672 = vadd.f32 %v842, %v1671
        %v1673 = vpop.f32.mrf.mxu0
        %1674 = vdwg.mxu0
        %v1675 = vsel %vm1046, %v1540, -inf
        %1676 = vmax.xlane.f32.xlu0 %v1675
        %v1677 = vpop.xlane.xlu0 %1676
        %v1678 = vsel %vm1046, %v1543, -inf
        %1679 = vmax.xlane.f32.xlu0 %v1678
        %v1680 = vpop.xlane.xlu0 %1679
        %v1681 = vsel %vm1046, %v1548, -inf
        %1682 = vmax.xlane.f32.xlu0 %v1681
        %v1683 = vpop.xlane.xlu0 %1682
        %v1684 = vsel %vm1046, %v1551, -inf
        %1685 = vmax.xlane.f32.xlu0 %v1684
        %v1686 = vpop.xlane.xlu0 %1685
        %v1687 = vsel %vm1046, %v1556, -inf
        %1688 = vmax.xlane.f32.xlu0 %v1687
        %v1689 = vpop.xlane.xlu0 %1688
        %v1690 = vsel %vm1046, %v1559, -inf
        %1691 = vmax.xlane.f32.xlu0 %v1690
        %v1692 = vpop.xlane.xlu0 %1691
        %v1693 = vsel %vm1046, %v1564, -inf
        %1694 = vmax.xlane.f32.xlu0 %v1693
        %v1695 = vpop.xlane.xlu0 %1694
        %v1696 = vsel %vm1046, %v1567, -inf
        %1697 = vmax.xlane.f32.xlu0 %v1696
        %v1698 = vpop.xlane.xlu0 %1697
        %v1699 = vsel %vm1046, %v1645, -inf
        %1700 = vmax.xlane.f32.xlu0 %v1699
        %v1701 = vpop.xlane.xlu0 %1700
        %v1702 = vsel %vm1046, %v1648, -inf
        %1703 = vmax.xlane.f32.xlu0 %v1702
        %v1704 = vpop.xlane.xlu0 %1703
        %v1705 = vsel %vm1046, %v1653, -inf
        %1706 = vmax.xlane.f32.xlu0 %v1705
        %v1707 = vpop.xlane.xlu0 %1706
        %v1708 = vsel %vm1046, %v1656, -inf
        %1709 = vmax.xlane.f32.xlu0 %v1708
        %v1710 = vpop.xlane.xlu0 %1709
        %v1711 = vsel %vm1046, %v1661, -inf
        %1712 = vmax.xlane.f32.xlu0 %v1711
        %v1713 = vpop.xlane.xlu0 %1712
        %v1714 = vsel %vm1046, %v1664, -inf
        %1715 = vmax.xlane.f32.xlu0 %v1714
        %v1716 = vpop.xlane.xlu0 %1715
        %v1717 = vsel %vm1046, %v1669, -inf
        %1718 = vmax.xlane.f32.xlu0 %v1717
        %v1719 = vpop.xlane.xlu0 %1718
        %v1720 = vsel %vm1046, %v1672, -inf
        %1721 = vmax.xlane.f32.xlu0 %v1720
        %v1722 = vpop.xlane.xlu0 %1721
        %v1723 = vsub.f32 %v1540, %v1677
        %v1724 = vsub.f32 %v1543, %v1680
        %v1725 = vsub.f32 %v1548, %v1683
        %v1726 = vsub.f32 %v1551, %v1686
        %v1727 = vsub.f32 %v1556, %v1689
        %v1728 = vsub.f32 %v1559, %v1692
        %v1729 = vsub.f32 %v1564, %v1695
        %v1730 = vsub.f32 %v1567, %v1698
        %v1731 = vsub.f32 %v1645, %v1701
        %v1732 = vsub.f32 %v1648, %v1704
        %v1733 = vsub.f32 %v1653, %v1707
        %v1734 = vsub.f32 %v1656, %v1710
        %v1735 = vsub.f32 %v1661, %v1713
        %v1736 = vsub.f32 %v1664, %v1716
        %v1737 = vsub.f32 %v1669, %v1719
        %v1738 = vsub.f32 %v1672, %v1722
        %v1739 = vmul.f32 %v1723, 1.442695
        %v1740 = vpow.pop %v1739
        %v1741 = vmul.f32 %v1724, 1.442695
        %v1742 = vpow.pop %v1741
        %v1743 = vmul.f32 %v1725, 1.442695
        %v1744 = vpow.pop %v1743
        %v1745 = vmul.f32 %v1726, 1.442695
        %v1746 = vpow.pop %v1745
        %v1747 = vmul.f32 %v1727, 1.442695
        %v1748 = vpow.pop %v1747
        %v1749 = vmul.f32 %v1728, 1.442695
        %v1750 = vpow.pop %v1749
        %v1751 = vmul.f32 %v1729, 1.442695
        %v1752 = vpow.pop %v1751
        %v1753 = vmul.f32 %v1730, 1.442695
        %v1754 = vpow.pop %v1753
        %v1755 = vmul.f32 %v1731, 1.442695
        %v1756 = vpow.pop %v1755
        %v1757 = vmul.f32 %v1732, 1.442695
        %v1758 = vpow.pop %v1757
        %v1759 = vmul.f32 %v1733, 1.442695
        %v1760 = vpow.pop %v1759
        %v1761 = vmul.f32 %v1734, 1.442695
        %v1762 = vpow.pop %v1761
        %v1763 = vmul.f32 %v1735, 1.442695
        %v1764 = vpow.pop %v1763
        %v1765 = vmul.f32 %v1736, 1.442695
        %v1766 = vpow.pop %v1765
        %v1767 = vmul.f32 %v1737, 1.442695
        %v1768 = vpow.pop %v1767
        %v1769 = vmul.f32 %v1738, 1.442695
        %v1770 = vpow.pop %v1769
        %1771 = vrot.lane.b32.xlu0 %v843, 32
        %v1772 = vpop.permute.xlu0 %1771
        %1773 = vrot.lane.b32.xlu0 %v844, 32
        %v1774 = vpop.permute.xlu0 %1773
        %1775 = vrot.lane.b32.xlu0 %v845, 32
        %v1776 = vpop.permute.xlu0 %1775
        %1777 = vrot.lane.b32.xlu0 %v846, 32
        %v1778 = vpop.permute.xlu0 %1777
        %1779 = vrot.lane.b32.xlu0 %v851, 32
        %v1780 = vpop.permute.xlu0 %1779
        %1781 = vrot.lane.b32.xlu0 %v852, 32
        %v1782 = vpop.permute.xlu0 %1781
        %1783 = vrot.lane.b32.xlu0 %v853, 32
        %v1784 = vpop.permute.xlu0 %1783
        %1785 = vrot.lane.b32.xlu0 %v854, 32
        %v1786 = vpop.permute.xlu0 %1785
        %v1788 = vsel %vm867, %v1772, 0
        %v1791 = vsel %vm867, %v1774, 0
        %v1794 = vsel %vm867, %v1776, 0
        %v1797 = vsel %vm867, %v1778, 0
        %v1800 = vsel %vm867, %v1780, 0
        %v1803 = vsel %vm867, %v1782, 0
        %v1806 = vsel %vm867, %v1784, 0
        %v1809 = vsel %vm867, %v1786, 0
        %1811 = vmatprep.subr.bf16.mxu0 0
        %1812 = vmatpush1.bf16.xpose.msra.mxu0 0
        %1813 = vmatprep.subr.bf16.mxu0 0
        %1814 = vmatpush1.bf16.xpose.msra.mxu0 0
        %1815 = vmatprep.subr.bf16.mxu0 0
        %1816 = vmatpush1.bf16.xpose.msra.mxu0 0
        %1817 = vmatprep.subr.bf16.mxu0 0
        %1818 = vmatpush1.bf16.xpose.msra.mxu0 0
        %1819 = vmatprep.subr.bf16.mxu0 0
        %1820 = vmatpush1.bf16.xpose.msra.mxu0 %v1809
        %1821 = vmatprep.subr.bf16.mxu0 0
        %1822 = vmatpush1.bf16.xpose.msra.mxu0 %v1806
        %1823 = vmatprep.subr.bf16.mxu0 0
        %1824 = vmatpush1.bf16.xpose.msra.mxu0 %v1803
        %1825 = vmatprep.subr.bf16.mxu0 0
        %1826 = vmatpush1.bf16.xpose.msra.mxu0 %v1800
        %1827 = vmatprep.subr.bf16.mxu0 0
        %1828 = vmatpush2.bf16.xpose.msra.mxu0 0
        %1829 = vmatprep.subr.bf16.mxu0 0
        %1830 = vmatpush2.bf16.xpose.msra.mxu0 0
        %1831 = vmatprep.subr.bf16.mxu0 0
        %1832 = vmatpush2.bf16.xpose.msra.mxu0 0
        %1833 = vmatprep.subr.bf16.mxu0 0
        %1834 = vmatpush2.bf16.xpose.msra.mxu0 0
        %1835 = vmatprep.subr.bf16.mxu0 0
        %1836 = vmatpush2.bf16.xpose.msra.mxu0 0
        %1837 = vmatprep.subr.bf16.mxu0 0
        %1838 = vmatpush2.bf16.xpose.msra.mxu0 0
        %1839 = vmatprep.subr.bf16.mxu0 0
        %1840 = vmatpush2.bf16.xpose.msra.mxu0 0
        %1841 = vmatprep.subr.bf16.mxu0 0
        %1842 = vmatpush2.bf16.xpose.msra.mxu0 0
        %1843 = vmatprep.mubr.bf16.mxu0 0
        %1844 = vmatmul.mubr.bf16.gmra.mxu0 %v1788
        %v1845 = vpop.f32.mrf.mxu0
        %v1846 = vadd.f32 %v835, %v1845
        %v1847 = vpop.f32.mrf.mxu0
        %v1848 = vpop.f32.mrf.mxu0
        %v1849 = vadd.f32 %v836, %v1848
        %v1850 = vpop.f32.mrf.mxu0
        %1851 = vmatprep.mubr.bf16.mxu0 0
        %1852 = vmatmul.mubr.bf16.gmra.mxu0 %v1791
        %v1853 = vpop.f32.mrf.mxu0
        %v1854 = vadd.f32 %v837, %v1853
        %v1855 = vpop.f32.mrf.mxu0
        %v1856 = vpop.f32.mrf.mxu0
        %v1857 = vadd.f32 %v838, %v1856
        %v1858 = vpop.f32.mrf.mxu0
        %1859 = vmatprep.mubr.bf16.mxu0 0
        %1860 = vmatmul.mubr.bf16.gmra.mxu0 %v1794
        %v1861 = vpop.f32.mrf.mxu0
        %v1862 = vadd.f32 %v839, %v1861
        %v1863 = vpop.f32.mrf.mxu0
        %v1864 = vpop.f32.mrf.mxu0
        %v1865 = vadd.f32 %v840, %v1864
        %v1866 = vpop.f32.mrf.mxu0
        %1867 = vmatprep.mubr.bf16.mxu0 0
        %1868 = vmatmul.mubr.bf16.gmra.mxu0 %v1797
        %v1869 = vpop.f32.mrf.mxu0
        %v1870 = vadd.f32 %v841, %v1869
        %v1871 = vpop.f32.mrf.mxu0
        %v1872 = vpop.f32.mrf.mxu0
        %v1873 = vadd.f32 %v842, %v1872
        %v1874 = vpop.f32.mrf.mxu0
        %1875 = vdwg.mxu0
        %1876 = vrot.lane.b32.xlu0 %v847, 32
        %v1877 = vpop.permute.xlu0 %1876
        %1878 = vrot.lane.b32.xlu0 %v848, 32
        %v1879 = vpop.permute.xlu0 %1878
        %1880 = vrot.lane.b32.xlu0 %v849, 32
        %v1881 = vpop.permute.xlu0 %1880
        %1882 = vrot.lane.b32.xlu0 %v850, 32
        %v1883 = vpop.permute.xlu0 %1882
        %1884 = vrot.lane.b32.xlu0 %v855, 32
        %v1885 = vpop.permute.xlu0 %1884
        %1886 = vrot.lane.b32.xlu0 %v856, 32
        %v1887 = vpop.permute.xlu0 %1886
        %1888 = vrot.lane.b32.xlu0 %v857, 32
        %v1889 = vpop.permute.xlu0 %1888
        %1890 = vrot.lane.b32.xlu0 %v858, 32
        %v1891 = vpop.permute.xlu0 %1890
        %v1893 = vsel %vm867, %v1877, 0
        %v1896 = vsel %vm867, %v1879, 0
        %v1899 = vsel %vm867, %v1881, 0
        %v1902 = vsel %vm867, %v1883, 0
        %v1905 = vsel %vm867, %v1885, 0
        %v1908 = vsel %vm867, %v1887, 0
        %v1911 = vsel %vm867, %v1889, 0
        %v1914 = vsel %vm867, %v1891, 0
        %1916 = vmatprep.subr.bf16.mxu0 0
        %1917 = vmatpush1.bf16.xpose.msra.mxu0 0
        %1918 = vmatprep.subr.bf16.mxu0 0
        %1919 = vmatpush1.bf16.xpose.msra.mxu0 0
        %1920 = vmatprep.subr.bf16.mxu0 0
        %1921 = vmatpush1.bf16.xpose.msra.mxu0 0
        %1922 = vmatprep.subr.bf16.mxu0 0
        %1923 = vmatpush1.bf16.xpose.msra.mxu0 0
        %1924 = vmatprep.subr.bf16.mxu0 0
        %1925 = vmatpush1.bf16.xpose.msra.mxu0 %v1914
        %1926 = vmatprep.subr.bf16.mxu0 0
        %1927 = vmatpush1.bf16.xpose.msra.mxu0 %v1911
        %1928 = vmatprep.subr.bf16.mxu0 0
        %1929 = vmatpush1.bf16.xpose.msra.mxu0 %v1908
        %1930 = vmatprep.subr.bf16.mxu0 0
        %1931 = vmatpush1.bf16.xpose.msra.mxu0 %v1905
        %1932 = vmatprep.subr.bf16.mxu0 0
        %1933 = vmatpush2.bf16.xpose.msra.mxu0 0
        %1934 = vmatprep.subr.bf16.mxu0 0
        %1935 = vmatpush2.bf16.xpose.msra.mxu0 0
        %1936 = vmatprep.subr.bf16.mxu0 0
        %1937 = vmatpush2.bf16.xpose.msra.mxu0 0
        %1938 = vmatprep.subr.bf16.mxu0 0
        %1939 = vmatpush2.bf16.xpose.msra.mxu0 0
        %1940 = vmatprep.subr.bf16.mxu0 0
        %1941 = vmatpush2.bf16.xpose.msra.mxu0 0
        %1942 = vmatprep.subr.bf16.mxu0 0
        %1943 = vmatpush2.bf16.xpose.msra.mxu0 0
        %1944 = vmatprep.subr.bf16.mxu0 0
        %1945 = vmatpush2.bf16.xpose.msra.mxu0 0
        %1946 = vmatprep.subr.bf16.mxu0 0
        %1947 = vmatpush2.bf16.xpose.msra.mxu0 0
        %1948 = vmatprep.mubr.bf16.mxu0 0
        %1949 = vmatmul.mubr.bf16.gmra.mxu0 %v1893
        %v1950 = vpop.f32.mrf.mxu0
        %v1951 = vadd.f32 %v835, %v1950
        %v1952 = vpop.f32.mrf.mxu0
        %v1953 = vpop.f32.mrf.mxu0
        %v1954 = vadd.f32 %v836, %v1953
        %v1955 = vpop.f32.mrf.mxu0
        %1956 = vmatprep.mubr.bf16.mxu0 0
        %1957 = vmatmul.mubr.bf16.gmra.mxu0 %v1896
        %v1958 = vpop.f32.mrf.mxu0
        %v1959 = vadd.f32 %v837, %v1958
        %v1960 = vpop.f32.mrf.mxu0
        %v1961 = vpop.f32.mrf.mxu0
        %v1962 = vadd.f32 %v838, %v1961
        %v1963 = vpop.f32.mrf.mxu0
        %1964 = vmatprep.mubr.bf16.mxu0 0
        %1965 = vmatmul.mubr.bf16.gmra.mxu0 %v1899
        %v1966 = vpop.f32.mrf.mxu0
        %v1967 = vadd.f32 %v839, %v1966
        %v1968 = vpop.f32.mrf.mxu0
        %v1969 = vpop.f32.mrf.mxu0
        %v1970 = vadd.f32 %v840, %v1969
        %v1971 = vpop.f32.mrf.mxu0
        %1972 = vmatprep.mubr.bf16.mxu0 0
        %1973 = vmatmul.mubr.bf16.gmra.mxu0 %v1902
        %v1974 = vpop.f32.mrf.mxu0
        %v1975 = vadd.f32 %v841, %v1974
        %v1976 = vpop.f32.mrf.mxu0
        %v1977 = vpop.f32.mrf.mxu0
        %v1978 = vadd.f32 %v842, %v1977
        %v1979 = vpop.f32.mrf.mxu0
        %1980 = vdwg.mxu0
        %v1981 = vsel %vm1046, %v1846, -inf
        %1982 = vmax.xlane.f32.xlu0 %v1981
        %v1983 = vpop.xlane.xlu0 %1982
        %v1984 = vsel %vm1046, %v1849, -inf
        %1985 = vmax.xlane.f32.xlu0 %v1984
        %v1986 = vpop.xlane.xlu0 %1985
        %v1987 = vsel %vm1046, %v1854, -inf
        %1988 = vmax.xlane.f32.xlu0 %v1987
        %v1989 = vpop.xlane.xlu0 %1988
        %v1990 = vsel %vm1046, %v1857, -inf
        %1991 = vmax.xlane.f32.xlu0 %v1990
        %v1992 = vpop.xlane.xlu0 %1991
        %v1993 = vsel %vm1046, %v1862, -inf
        %1994 = vmax.xlane.f32.xlu0 %v1993
        %v1995 = vpop.xlane.xlu0 %1994
        %v1996 = vsel %vm1046, %v1865, -inf
        %1997 = vmax.xlane.f32.xlu0 %v1996
        %v1998 = vpop.xlane.xlu0 %1997
        %v1999 = vsel %vm1046, %v1870, -inf
        %2000 = vmax.xlane.f32.xlu0 %v1999
        %v2001 = vpop.xlane.xlu0 %2000
        %v2002 = vsel %vm1046, %v1873, -inf
        %2003 = vmax.xlane.f32.xlu0 %v2002
        %v2004 = vpop.xlane.xlu0 %2003
        %v2005 = vsel %vm1046, %v1951, -inf
        %2006 = vmax.xlane.f32.xlu0 %v2005
        %v2007 = vpop.xlane.xlu0 %2006
        %v2008 = vsel %vm1046, %v1954, -inf
        %2009 = vmax.xlane.f32.xlu0 %v2008
        %v2010 = vpop.xlane.xlu0 %2009
        %v2011 = vsel %vm1046, %v1959, -inf
        %2012 = vmax.xlane.f32.xlu0 %v2011
        %v2013 = vpop.xlane.xlu0 %2012
        %v2014 = vsel %vm1046, %v1962, -inf
        %2015 = vmax.xlane.f32.xlu0 %v2014
        %v2016 = vpop.xlane.xlu0 %2015
        %v2017 = vsel %vm1046, %v1967, -inf
        %2018 = vmax.xlane.f32.xlu0 %v2017
        %v2019 = vpop.xlane.xlu0 %2018
        %v2020 = vsel %vm1046, %v1970, -inf
        %2021 = vmax.xlane.f32.xlu0 %v2020
        %v2022 = vpop.xlane.xlu0 %2021
        %v2023 = vsel %vm1046, %v1975, -inf
        %2024 = vmax.xlane.f32.xlu0 %v2023
        %v2025 = vpop.xlane.xlu0 %2024
        %v2026 = vsel %vm1046, %v1978, -inf
        %2027 = vmax.xlane.f32.xlu0 %v2026
        %v2028 = vpop.xlane.xlu0 %2027
        %v2029 = vsub.f32 %v1846, %v1983
        %v2030 = vsub.f32 %v1849, %v1986
        %v2031 = vsub.f32 %v1854, %v1989
        %v2032 = vsub.f32 %v1857, %v1992
        %v2033 = vsub.f32 %v1862, %v1995
        %v2034 = vsub.f32 %v1865, %v1998
        %v2035 = vsub.f32 %v1870, %v2001
        %v2036 = vsub.f32 %v1873, %v2004
        %v2037 = vsub.f32 %v1951, %v2007
        %v2038 = vsub.f32 %v1954, %v2010
        %v2039 = vsub.f32 %v1959, %v2013
        %v2040 = vsub.f32 %v1962, %v2016
        %v2041 = vsub.f32 %v1967, %v2019
        %v2042 = vsub.f32 %v1970, %v2022
        %v2043 = vsub.f32 %v1975, %v2025
        %v2044 = vsub.f32 %v1978, %v2028
        %v2045 = vmul.f32 %v2029, 1.442695
        %v2046 = vpow.pop %v2045
        %v2047 = vmul.f32 %v2030, 1.442695
        %v2048 = vpow.pop %v2047
        %v2049 = vmul.f32 %v2031, 1.442695
        %v2050 = vpow.pop %v2049
        %v2051 = vmul.f32 %v2032, 1.442695
        %v2052 = vpow.pop %v2051
        %v2053 = vmul.f32 %v2033, 1.442695
        %v2054 = vpow.pop %v2053
        %v2055 = vmul.f32 %v2034, 1.442695
        %v2056 = vpow.pop %v2055
        %v2057 = vmul.f32 %v2035, 1.442695
        %v2058 = vpow.pop %v2057
        %v2059 = vmul.f32 %v2036, 1.442695
        %v2060 = vpow.pop %v2059
        %v2061 = vmul.f32 %v2037, 1.442695
        %v2062 = vpow.pop %v2061
        %v2063 = vmul.f32 %v2038, 1.442695
        %v2064 = vpow.pop %v2063
        %v2065 = vmul.f32 %v2039, 1.442695
        %v2066 = vpow.pop %v2065
        %v2067 = vmul.f32 %v2040, 1.442695
        %v2068 = vpow.pop %v2067
        %v2069 = vmul.f32 %v2041, 1.442695
        %v2070 = vpow.pop %v2069
        %v2071 = vmul.f32 %v2042, 1.442695
        %v2072 = vpow.pop %v2071
        %v2073 = vmul.f32 %v2043, 1.442695
        %v2074 = vpow.pop %v2073
        %v2075 = vmul.f32 %v2044, 1.442695
        %v2076 = vpow.pop %v2075
        %v2077 = vpack.c.bf16 %v1114, %v1112
        %v2078 = vpack.c.bf16 %v1118, %v1116
        %v2079 = vpack.c.bf16 %v1122, %v1120
        %v2080 = vpack.c.bf16 %v1126, %v1124
        %v2081 = vpack.c.bf16 %v1130, %v1128
        %v2082 = vpack.c.bf16 %v1134, %v1132
        %v2083 = vpack.c.bf16 %v1138, %v1136
        %v2084 = vpack.c.bf16 %v1142, %v1140
        %v2085 = vpack.c.bf16 %v1436, %v1434
        %v2086 = vpack.c.bf16 %v1440, %v1438
        %v2087 = vpack.c.bf16 %v1444, %v1442
        %v2088 = vpack.c.bf16 %v1448, %v1446
        %v2089 = vpack.c.bf16 %v1452, %v1450
        %v2090 = vpack.c.bf16 %v1456, %v1454
        %v2091 = vpack.c.bf16 %v1460, %v1458
        %v2092 = vpack.c.bf16 %v1464, %v1462
        %v2093 = vpack.c.bf16 %v1742, %v1740
        %v2094 = vpack.c.bf16 %v1746, %v1744
        %v2095 = vpack.c.bf16 %v1750, %v1748
        %v2096 = vpack.c.bf16 %v1754, %v1752
        %v2097 = vpack.c.bf16 %v1758, %v1756
        %v2098 = vpack.c.bf16 %v1762, %v1760
        %v2099 = vpack.c.bf16 %v1766, %v1764
        %v2100 = vpack.c.bf16 %v1770, %v1768
        %v2101 = vpack.c.bf16 %v2048, %v2046
        %v2102 = vpack.c.bf16 %v2052, %v2050
        %v2103 = vpack.c.bf16 %v2056, %v2054
        %v2104 = vpack.c.bf16 %v2060, %v2058
        %v2105 = vpack.c.bf16 %v2064, %v2062
        %v2106 = vpack.c.bf16 %v2068, %v2066
        %v2107 = vpack.c.bf16 %v2072, %v2070
        %v2108 = vpack.c.bf16 %v2076, %v2074
        %v2117 = vunpack.c.l.b16 %v803
        %v2118 = vunpack.c.l.b16 %v804
        %v2119 = vunpack.c.l.b16 %v805
        %v2120 = vunpack.c.l.b16 %v806
        %v2121 = vunpack.c.l.b16 %v807
        %v2122 = vunpack.c.l.b16 %v808
        %v2123 = vunpack.c.l.b16 %v809
        %v2124 = vunpack.c.l.b16 %v810
        %v2125 = vpack.c.b16 %v2118, %v2117
        %v2126 = vpack.c.b16 %v2120, %v2119
        %v2127 = vpack.c.b16 %v2122, %v2121
        %v2128 = vpack.c.b16 %v2124, %v2123
        %v2134 = vsel %vm1046, %v2077, 0
        %v2137 = vsel %vm1046, %v2078, 0
        %v2140 = vsel %vm1046, %v2079, 0
        %v2143 = vsel %vm1046, %v2080, 0
        %v2146 = vsel %vm1046, %v2081, 0
        %v2149 = vsel %vm1046, %v2082, 0
        %v2152 = vsel %vm1046, %v2083, 0
        %v2155 = vsel %vm1046, %v2084, 0
        %v2158 = vsel %vm1046, %v2085, 0
        %v2161 = vsel %vm1046, %v2086, 0
        %v2164 = vsel %vm1046, %v2087, 0
        %v2167 = vsel %vm1046, %v2088, 0
        %v2170 = vsel %vm1046, %v2089, 0
        %v2173 = vsel %vm1046, %v2090, 0
        %v2176 = vsel %vm1046, %v2091, 0
        %v2179 = vsel %vm1046, %v2092, 0
        %v2182 = vsel %vm1046, %v2093, 0
        %v2185 = vsel %vm1046, %v2094, 0
        %v2188 = vsel %vm1046, %v2095, 0
        %v2191 = vsel %vm1046, %v2096, 0
        %v2194 = vsel %vm1046, %v2097, 0
        %v2197 = vsel %vm1046, %v2098, 0
        %v2200 = vsel %vm1046, %v2099, 0
        %v2203 = vsel %vm1046, %v2100, 0
        %v2206 = vsel %vm1046, %v2101, 0
        %v2209 = vsel %vm1046, %v2102, 0
        %v2212 = vsel %vm1046, %v2103, 0
        %v2215 = vsel %vm1046, %v2104, 0
        %v2218 = vsel %vm1046, %v2105, 0
        %v2221 = vsel %vm1046, %v2106, 0
        %v2224 = vsel %vm1046, %v2107, 0
        %v2227 = vsel %vm1046, %v2108, 0
        %2229 = vmatprep.subr.bf16.mxu0 0
        %2230 = vmatpush1.bf16.msra.mxu0 0
        %2231 = vmatprep.subr.bf16.mxu0 0
        %2232 = vmatpush1.bf16.msra.mxu0 0
        %2233 = vmatprep.subr.bf16.mxu0 0
        %2234 = vmatpush1.bf16.msra.mxu0 0
        %2235 = vmatprep.subr.bf16.mxu0 0
        %2236 = vmatpush1.bf16.msra.mxu0 0
        %2237 = vmatprep.subr.bf16.mxu0 0
        %2238 = vmatpush1.bf16.msra.mxu0 %v2128
        %2239 = vmatprep.subr.bf16.mxu0 0
        %2240 = vmatpush1.bf16.msra.mxu0 %v2127
        %2241 = vmatprep.subr.bf16.mxu0 0
        %2242 = vmatpush1.bf16.msra.mxu0 %v2126
        %2243 = vmatprep.subr.bf16.mxu0 0
        %2244 = vmatpush1.bf16.msra.mxu0 %v2125
        %2245 = vmatprep.subr.bf16.mxu0 0
        %2246 = vmatpush2.bf16.msra.mxu0 0
        %2247 = vmatprep.subr.bf16.mxu0 0
        %2248 = vmatpush2.bf16.msra.mxu0 0
        %2249 = vmatprep.subr.bf16.mxu0 0
        %2250 = vmatpush2.bf16.msra.mxu0 0
        %2251 = vmatprep.subr.bf16.mxu0 0
        %2252 = vmatpush2.bf16.msra.mxu0 0
        %2253 = vmatprep.subr.bf16.mxu0 0
        %2254 = vmatpush2.bf16.msra.mxu0 0
        %2255 = vmatprep.subr.bf16.mxu0 0
        %2256 = vmatpush2.bf16.msra.mxu0 0
        %2257 = vmatprep.subr.bf16.mxu0 0
        %2258 = vmatpush2.bf16.msra.mxu0 0
        %2259 = vmatprep.subr.bf16.mxu0 0
        %2260 = vmatpush2.bf16.msra.mxu0 0
        %2261 = vmatprep.mubr.bf16.mxu0 0
        %2262 = vmatmul.mubr.bf16.gmra.mxu0 %v2134
        %v2263 = vpop.f32.mrf.mxu0
        %v2264 = vadd.f32 0.0, %v2263
        %v2265 = vpop.f32.mrf.mxu0
        %v2266 = vpop.f32.mrf.mxu0
        %v2267 = vadd.f32 0.0, %v2266
        %v2268 = vpop.f32.mrf.mxu0
        %2269 = vmatprep.mubr.bf16.mxu0 0
        %2270 = vmatmul.mubr.bf16.gmra.mxu0 %v2137
        %v2271 = vpop.f32.mrf.mxu0
        %v2272 = vadd.f32 0.0, %v2271
        %v2273 = vpop.f32.mrf.mxu0
        %v2274 = vpop.f32.mrf.mxu0
        %v2275 = vadd.f32 0.0, %v2274
        %v2276 = vpop.f32.mrf.mxu0
        %2277 = vmatprep.mubr.bf16.mxu0 0
        %2278 = vmatmul.mubr.bf16.gmra.mxu0 %v2140
        %v2279 = vpop.f32.mrf.mxu0
        %v2280 = vadd.f32 0.0, %v2279
        %v2281 = vpop.f32.mrf.mxu0
        %v2282 = vpop.f32.mrf.mxu0
        %v2283 = vadd.f32 0.0, %v2282
        %v2284 = vpop.f32.mrf.mxu0
        %2285 = vmatprep.mubr.bf16.mxu0 0
        %2286 = vmatmul.mubr.bf16.gmra.mxu0 %v2143
        %v2287 = vpop.f32.mrf.mxu0
        %v2288 = vadd.f32 0.0, %v2287
        %v2289 = vpop.f32.mrf.mxu0
        %v2290 = vpop.f32.mrf.mxu0
        %v2291 = vadd.f32 0.0, %v2290
        %v2292 = vpop.f32.mrf.mxu0
        %2293 = vmatprep.mubr.bf16.mxu0 0
        %2294 = vmatmul.mubr.bf16.gmra.mxu0 %v2146
        %v2295 = vpop.f32.mrf.mxu0
        %v2296 = vadd.f32 0.0, %v2295
        %v2297 = vpop.f32.mrf.mxu0
        %v2298 = vpop.f32.mrf.mxu0
        %v2299 = vadd.f32 0.0, %v2298
        %v2300 = vpop.f32.mrf.mxu0
        %2301 = vmatprep.mubr.bf16.mxu0 0
        %2302 = vmatmul.mubr.bf16.gmra.mxu0 %v2149
        %v2303 = vpop.f32.mrf.mxu0
        %v2304 = vadd.f32 0.0, %v2303
        %v2305 = vpop.f32.mrf.mxu0
        %v2306 = vpop.f32.mrf.mxu0
        %v2307 = vadd.f32 0.0, %v2306
        %v2308 = vpop.f32.mrf.mxu0
        %2309 = vmatprep.mubr.bf16.mxu0 0
        %2310 = vmatmul.mubr.bf16.gmra.mxu0 %v2152
        %v2311 = vpop.f32.mrf.mxu0
        %v2312 = vadd.f32 0.0, %v2311
        %v2313 = vpop.f32.mrf.mxu0
        %v2314 = vpop.f32.mrf.mxu0
        %v2315 = vadd.f32 0.0, %v2314
        %v2316 = vpop.f32.mrf.mxu0
        %2317 = vmatprep.mubr.bf16.mxu0 0
        %2318 = vmatmul.mubr.bf16.gmra.mxu0 %v2155
        %v2319 = vpop.f32.mrf.mxu0
        %v2320 = vadd.f32 0.0, %v2319
        %v2321 = vpop.f32.mrf.mxu0
        %v2322 = vpop.f32.mrf.mxu0
        %v2323 = vadd.f32 0.0, %v2322
        %v2324 = vpop.f32.mrf.mxu0
        %2325 = vmatprep.mubr.bf16.mxu0 0
        %2326 = vmatmul.mubr.bf16.gmra.mxu0 %v2158
        %v2327 = vpop.f32.mrf.mxu0
        %v2328 = vadd.f32 0.0, %v2327
        %v2329 = vpop.f32.mrf.mxu0
        %v2330 = vpop.f32.mrf.mxu0
        %v2331 = vadd.f32 0.0, %v2330
        %v2332 = vpop.f32.mrf.mxu0
        %2333 = vmatprep.mubr.bf16.mxu0 0
        %2334 = vmatmul.mubr.bf16.gmra.mxu0 %v2161
        %v2335 = vpop.f32.mrf.mxu0
        %v2336 = vadd.f32 0.0, %v2335
        %v2337 = vpop.f32.mrf.mxu0
        %v2338 = vpop.f32.mrf.mxu0
        %v2339 = vadd.f32 0.0, %v2338
        %v2340 = vpop.f32.mrf.mxu0
        %2341 = vmatprep.mubr.bf16.mxu0 0
        %2342 = vmatmul.mubr.bf16.gmra.mxu0 %v2164
        %v2343 = vpop.f32.mrf.mxu0
        %v2344 = vadd.f32 0.0, %v2343
        %v2345 = vpop.f32.mrf.mxu0
        %v2346 = vpop.f32.mrf.mxu0
        %v2347 = vadd.f32 0.0, %v2346
        %v2348 = vpop.f32.mrf.mxu0
        %2349 = vmatprep.mubr.bf16.mxu0 0
        %2350 = vmatmul.mubr.bf16.gmra.mxu0 %v2167
        %v2351 = vpop.f32.mrf.mxu0
        %v2352 = vadd.f32 0.0, %v2351
        %v2353 = vpop.f32.mrf.mxu0
        %v2354 = vpop.f32.mrf.mxu0
        %v2355 = vadd.f32 0.0, %v2354
        %v2356 = vpop.f32.mrf.mxu0
        %2357 = vmatprep.mubr.bf16.mxu0 0
        %2358 = vmatmul.mubr.bf16.gmra.mxu0 %v2170
        %v2359 = vpop.f32.mrf.mxu0
        %v2360 = vadd.f32 0.0, %v2359
        %v2361 = vpop.f32.mrf.mxu0
        %v2362 = vpop.f32.mrf.mxu0
        %v2363 = vadd.f32 0.0, %v2362
        %v2364 = vpop.f32.mrf.mxu0
        %2365 = vmatprep.mubr.bf16.mxu0 0
        %2366 = vmatmul.mubr.bf16.gmra.mxu0 %v2173
        %v2367 = vpop.f32.mrf.mxu0
        %v2368 = vadd.f32 0.0, %v2367
        %v2369 = vpop.f32.mrf.mxu0
        %v2370 = vpop.f32.mrf.mxu0
        %v2371 = vadd.f32 0.0, %v2370
        %v2372 = vpop.f32.mrf.mxu0
        %2373 = vmatprep.mubr.bf16.mxu0 0
        %2374 = vmatmul.mubr.bf16.gmra.mxu0 %v2176
        %v2375 = vpop.f32.mrf.mxu0
        %v2376 = vadd.f32 0.0, %v2375
        %v2377 = vpop.f32.mrf.mxu0
        %v2378 = vpop.f32.mrf.mxu0
        %v2379 = vadd.f32 0.0, %v2378
        %v2380 = vpop.f32.mrf.mxu0
        %2381 = vmatprep.mubr.bf16.mxu0 0
        %2382 = vmatmul.mubr.bf16.gmra.mxu0 %v2179
        %v2383 = vpop.f32.mrf.mxu0
        %v2384 = vadd.f32 0.0, %v2383
        %v2385 = vpop.f32.mrf.mxu0
        %v2386 = vpop.f32.mrf.mxu0
        %v2387 = vadd.f32 0.0, %v2386
        %v2388 = vpop.f32.mrf.mxu0
        %2389 = vmatprep.mubr.bf16.mxu0 0
        %2390 = vmatmul.mubr.bf16.gmra.mxu0 %v2182
        %v2391 = vpop.f32.mrf.mxu0
        %v2392 = vadd.f32 0.0, %v2391
        %v2393 = vpop.f32.mrf.mxu0
        %v2394 = vpop.f32.mrf.mxu0
        %v2395 = vadd.f32 0.0, %v2394
        %v2396 = vpop.f32.mrf.mxu0
        %2397 = vmatprep.mubr.bf16.mxu0 0
        %2398 = vmatmul.mubr.bf16.gmra.mxu0 %v2185
        %v2399 = vpop.f32.mrf.mxu0
        %v2400 = vadd.f32 0.0, %v2399
        %v2401 = vpop.f32.mrf.mxu0
        %v2402 = vpop.f32.mrf.mxu0
        %v2403 = vadd.f32 0.0, %v2402
        %v2404 = vpop.f32.mrf.mxu0
        %2405 = vmatprep.mubr.bf16.mxu0 0
        %2406 = vmatmul.mubr.bf16.gmra.mxu0 %v2188
        %v2407 = vpop.f32.mrf.mxu0
        %v2408 = vadd.f32 0.0, %v2407
        %v2409 = vpop.f32.mrf.mxu0
        %v2410 = vpop.f32.mrf.mxu0
        %v2411 = vadd.f32 0.0, %v2410
        %v2412 = vpop.f32.mrf.mxu0
        %2413 = vmatprep.mubr.bf16.mxu0 0
        %2414 = vmatmul.mubr.bf16.gmra.mxu0 %v2191
        %v2415 = vpop.f32.mrf.mxu0
        %v2416 = vadd.f32 0.0, %v2415
        %v2417 = vpop.f32.mrf.mxu0
        %v2418 = vpop.f32.mrf.mxu0
        %v2419 = vadd.f32 0.0, %v2418
        %v2420 = vpop.f32.mrf.mxu0
        %2421 = vmatprep.mubr.bf16.mxu0 0
        %2422 = vmatmul.mubr.bf16.gmra.mxu0 %v2194
        %v2423 = vpop.f32.mrf.mxu0
        %v2424 = vadd.f32 0.0, %v2423
        %v2425 = vpop.f32.mrf.mxu0
        %v2426 = vpop.f32.mrf.mxu0
        %v2427 = vadd.f32 0.0, %v2426
        %v2428 = vpop.f32.mrf.mxu0
        %2429 = vmatprep.mubr.bf16.mxu0 0
        %2430 = vmatmul.mubr.bf16.gmra.mxu0 %v2197
        %v2431 = vpop.f32.mrf.mxu0
        %v2432 = vadd.f32 0.0, %v2431
        %v2433 = vpop.f32.mrf.mxu0
        %v2434 = vpop.f32.mrf.mxu0
        %v2435 = vadd.f32 0.0, %v2434
        %v2436 = vpop.f32.mrf.mxu0
        %2437 = vmatprep.mubr.bf16.mxu0 0
        %2438 = vmatmul.mubr.bf16.gmra.mxu0 %v2200
        %v2439 = vpop.f32.mrf.mxu0
        %v2440 = vadd.f32 0.0, %v2439
        %v2441 = vpop.f32.mrf.mxu0
        %v2442 = vpop.f32.mrf.mxu0
        %v2443 = vadd.f32 0.0, %v2442
        %v2444 = vpop.f32.mrf.mxu0
        %2445 = vmatprep.mubr.bf16.mxu0 0
        %2446 = vmatmul.mubr.bf16.gmra.mxu0 %v2203
        %v2447 = vpop.f32.mrf.mxu0
        %v2448 = vadd.f32 0.0, %v2447
        %v2449 = vpop.f32.mrf.mxu0
        %v2450 = vpop.f32.mrf.mxu0
        %v2451 = vadd.f32 0.0, %v2450
        %v2452 = vpop.f32.mrf.mxu0
        %2453 = vmatprep.mubr.bf16.mxu0 0
        %2454 = vmatmul.mubr.bf16.gmra.mxu0 %v2206
        %v2455 = vpop.f32.mrf.mxu0
        %v2456 = vadd.f32 0.0, %v2455
        %v2457 = vpop.f32.mrf.mxu0
        %v2458 = vpop.f32.mrf.mxu0
        %v2459 = vadd.f32 0.0, %v2458
        %v2460 = vpop.f32.mrf.mxu0
        %2461 = vmatprep.mubr.bf16.mxu0 0
        %2462 = vmatmul.mubr.bf16.gmra.mxu0 %v2209
        %v2463 = vpop.f32.mrf.mxu0
        %v2464 = vadd.f32 0.0, %v2463
        %v2465 = vpop.f32.mrf.mxu0
        %v2466 = vpop.f32.mrf.mxu0
        %v2467 = vadd.f32 0.0, %v2466
        %v2468 = vpop.f32.mrf.mxu0
        %2469 = vmatprep.mubr.bf16.mxu0 0
        %2470 = vmatmul.mubr.bf16.gmra.mxu0 %v2212
        %v2471 = vpop.f32.mrf.mxu0
        %v2472 = vadd.f32 0.0, %v2471
        %v2473 = vpop.f32.mrf.mxu0
        %v2474 = vpop.f32.mrf.mxu0
        %v2475 = vadd.f32 0.0, %v2474
        %v2476 = vpop.f32.mrf.mxu0
        %2477 = vmatprep.mubr.bf16.mxu0 0
        %2478 = vmatmul.mubr.bf16.gmra.mxu0 %v2215
        %v2479 = vpop.f32.mrf.mxu0
        %v2480 = vadd.f32 0.0, %v2479
        %v2481 = vpop.f32.mrf.mxu0
        %v2482 = vpop.f32.mrf.mxu0
        %v2483 = vadd.f32 0.0, %v2482
        %v2484 = vpop.f32.mrf.mxu0
        %2485 = vmatprep.mubr.bf16.mxu0 0
        %2486 = vmatmul.mubr.bf16.gmra.mxu0 %v2218
        %v2487 = vpop.f32.mrf.mxu0
        %v2488 = vadd.f32 0.0, %v2487
        %v2489 = vpop.f32.mrf.mxu0
        %v2490 = vpop.f32.mrf.mxu0
        %v2491 = vadd.f32 0.0, %v2490
        %v2492 = vpop.f32.mrf.mxu0
        %2493 = vmatprep.mubr.bf16.mxu0 0
        %2494 = vmatmul.mubr.bf16.gmra.mxu0 %v2221
        %v2495 = vpop.f32.mrf.mxu0
        %v2496 = vadd.f32 0.0, %v2495
        %v2497 = vpop.f32.mrf.mxu0
        %v2498 = vpop.f32.mrf.mxu0
        %v2499 = vadd.f32 0.0, %v2498
        %v2500 = vpop.f32.mrf.mxu0
        %2501 = vmatprep.mubr.bf16.mxu0 0
        %2502 = vmatmul.mubr.bf16.gmra.mxu0 %v2224
        %v2503 = vpop.f32.mrf.mxu0
        %v2504 = vadd.f32 0.0, %v2503
        %v2505 = vpop.f32.mrf.mxu0
        %v2506 = vpop.f32.mrf.mxu0
        %v2507 = vadd.f32 0.0, %v2506
        %v2508 = vpop.f32.mrf.mxu0
        %2509 = vmatprep.mubr.bf16.mxu0 0
        %2510 = vmatmul.mubr.bf16.gmra.mxu0 %v2227
        %v2511 = vpop.f32.mrf.mxu0
        %v2512 = vadd.f32 0.0, %v2511
        %v2513 = vpop.f32.mrf.mxu0
        %v2514 = vpop.f32.mrf.mxu0
        %v2515 = vadd.f32 0.0, %v2514
        %v2516 = vpop.f32.mrf.mxu0
        %2517 = vdwg.mxu0
        %vm2518 = vcmp.eq.f32.partialorder %v827, 0.0
        %vm2519 = vcmp.eq.f32.partialorder %v828, 0.0
        %vm2520 = vcmp.eq.f32.partialorder %v829, 0.0
        %vm2521 = vcmp.eq.f32.partialorder %v830, 0.0
        %vm2522 = vcmp.eq.f32.partialorder %v831, 0.0
        %vm2523 = vcmp.eq.f32.partialorder %v832, 0.0
        %vm2524 = vcmp.eq.f32.partialorder %v833, 0.0
        %vm2525 = vcmp.eq.f32.partialorder %v834, 0.0
        %v2526 = vsel %vm2518, 1, 0
        %v2527 = vsel %vm2519, 1, 0
        %v2528 = vsel %vm2520, 1, 0
        %v2529 = vsel %vm2521, 1, 0
        %v2530 = vsel %vm2522, 1, 0
        %v2531 = vsel %vm2523, 1, 0
        %v2532 = vsel %vm2524, 1, 0
        %v2533 = vsel %vm2525, 1, 0
        %v2534 = vcvt.s32.f32 %v2526
        %v2535 = vcvt.s32.f32 %v2527
        %v2536 = vcvt.s32.f32 %v2528
        %v2537 = vcvt.s32.f32 %v2529
        %v2538 = vcvt.s32.f32 %v2530
        %v2539 = vcvt.s32.f32 %v2531
        %v2540 = vcvt.s32.f32 %v2532
        %v2541 = vcvt.s32.f32 %v2533
        %v2542 = vadd.f32 %v2264, %v2534
        %v2543 = vadd.f32 %v2267, %v2535
        %v2544 = vadd.f32 %v2272, %v2536
        %v2545 = vadd.f32 %v2275, %v2537
        %v2546 = vadd.f32 %v2280, %v2538
        %v2547 = vadd.f32 %v2283, %v2539
        %v2548 = vadd.f32 %v2288, %v2540
        %v2549 = vadd.f32 %v2291, %v2541
        %v2550 = vadd.f32 %v2296, %v2534
        %v2551 = vadd.f32 %v2299, %v2535
        %v2552 = vadd.f32 %v2304, %v2536
        %v2553 = vadd.f32 %v2307, %v2537
        %v2554 = vadd.f32 %v2312, %v2538
        %v2555 = vadd.f32 %v2315, %v2539
        %v2556 = vadd.f32 %v2320, %v2540
        %v2557 = vadd.f32 %v2323, %v2541
        %v2558 = vadd.f32 %v2328, %v2534
        %v2559 = vadd.f32 %v2331, %v2535
        %v2560 = vadd.f32 %v2336, %v2536
        %v2561 = vadd.f32 %v2339, %v2537
        %v2562 = vadd.f32 %v2344, %v2538
        %v2563 = vadd.f32 %v2347, %v2539
        %v2564 = vadd.f32 %v2352, %v2540
        %v2565 = vadd.f32 %v2355, %v2541
        %v2566 = vadd.f32 %v2360, %v2534
        %v2567 = vadd.f32 %v2363, %v2535
        %v2568 = vadd.f32 %v2368, %v2536
        %v2569 = vadd.f32 %v2371, %v2537
        %v2570 = vadd.f32 %v2376, %v2538
        %v2571 = vadd.f32 %v2379, %v2539
        %v2572 = vadd.f32 %v2384, %v2540
        %v2573 = vadd.f32 %v2387, %v2541
        %v2574 = vadd.f32 %v2392, %v2534
        %v2575 = vadd.f32 %v2395, %v2535
        %v2576 = vadd.f32 %v2400, %v2536
        %v2577 = vadd.f32 %v2403, %v2537
        %v2578 = vadd.f32 %v2408, %v2538
        %v2579 = vadd.f32 %v2411, %v2539
        %v2580 = vadd.f32 %v2416, %v2540
        %v2581 = vadd.f32 %v2419, %v2541
        %v2582 = vadd.f32 %v2424, %v2534
        %v2583 = vadd.f32 %v2427, %v2535
        %v2584 = vadd.f32 %v2432, %v2536
        %v2585 = vadd.f32 %v2435, %v2537
        %v2586 = vadd.f32 %v2440, %v2538
        %v2587 = vadd.f32 %v2443, %v2539
        %v2588 = vadd.f32 %v2448, %v2540
        %v2589 = vadd.f32 %v2451, %v2541
        %v2590 = vadd.f32 %v2456, %v2534
        %v2591 = vadd.f32 %v2459, %v2535
        %v2592 = vadd.f32 %v2464, %v2536
        %v2593 = vadd.f32 %v2467, %v2537
        %v2594 = vadd.f32 %v2472, %v2538
        %v2595 = vadd.f32 %v2475, %v2539
        %v2596 = vadd.f32 %v2480, %v2540
        %v2597 = vadd.f32 %v2483, %v2541
        %v2598 = vadd.f32 %v2488, %v2534
        %v2599 = vadd.f32 %v2491, %v2535
        %v2600 = vadd.f32 %v2496, %v2536
        %v2601 = vadd.f32 %v2499, %v2537
        %v2602 = vadd.f32 %v2504, %v2538
        %v2603 = vadd.f32 %v2507, %v2539
        %v2604 = vadd.f32 %v2512, %v2540
        %v2605 = vadd.f32 %v2515, %v2541
        %v2606 = vrcp.pop %v2542
        %v2607 = vrcp.pop %v2543
        %v2608 = vrcp.pop %v2544
        %v2609 = vrcp.pop %v2545
        %v2610 = vrcp.pop %v2546
        %v2611 = vrcp.pop %v2547
        %v2612 = vrcp.pop %v2548
        %v2613 = vrcp.pop %v2549
        %v2614 = vrcp.pop %v2550
        %v2615 = vrcp.pop %v2551
        %v2616 = vrcp.pop %v2552
        %v2617 = vrcp.pop %v2553
        %v2618 = vrcp.pop %v2554
        %v2619 = vrcp.pop %v2555
        %v2620 = vrcp.pop %v2556
        %v2621 = vrcp.pop %v2557
        %v2622 = vrcp.pop %v2558
        %v2623 = vrcp.pop %v2559
        %v2624 = vrcp.pop %v2560
        %v2625 = vrcp.pop %v2561
        %v2626 = vrcp.pop %v2562
        %v2627 = vrcp.pop %v2563
        %v2628 = vrcp.pop %v2564
        %v2629 = vrcp.pop %v2565
        %v2630 = vrcp.pop %v2566
        %v2631 = vrcp.pop %v2567
        %v2632 = vrcp.pop %v2568
        %v2633 = vrcp.pop %v2569
        %v2634 = vrcp.pop %v2570
        %v2635 = vrcp.pop %v2571
        %v2636 = vrcp.pop %v2572
        %v2637 = vrcp.pop %v2573
        %v2638 = vrcp.pop %v2574
        %v2639 = vrcp.pop %v2575
        %v2640 = vrcp.pop %v2576
        %v2641 = vrcp.pop %v2577
        %v2642 = vrcp.pop %v2578
        %v2643 = vrcp.pop %v2579
        %v2644 = vrcp.pop %v2580
        %v2645 = vrcp.pop %v2581
        %v2646 = vrcp.pop %v2582
        %v2647 = vrcp.pop %v2583
        %v2648 = vrcp.pop %v2584
        %v2649 = vrcp.pop %v2585
        %v2650 = vrcp.pop %v2586
        %v2651 = vrcp.pop %v2587
        %v2652 = vrcp.pop %v2588
        %v2653 = vrcp.pop %v2589
        %v2654 = vrcp.pop %v2590
        %v2655 = vrcp.pop %v2591
        %v2656 = vrcp.pop %v2592
        %v2657 = vrcp.pop %v2593
        %v2658 = vrcp.pop %v2594
        %v2659 = vrcp.pop %v2595
        %v2660 = vrcp.pop %v2596
        %v2661 = vrcp.pop %v2597
        %v2662 = vrcp.pop %v2598
        %v2663 = vrcp.pop %v2599
        %v2664 = vrcp.pop %v2600
        %v2665 = vrcp.pop %v2601
        %v2666 = vrcp.pop %v2602
        %v2667 = vrcp.pop %v2603
        %v2668 = vrcp.pop %v2604
        %v2669 = vrcp.pop %v2605
        %v2670 = vmul.f32 %v2606, %v827
        %v2671 = vmul.f32 %v2607, %v828
        %v2672 = vmul.f32 %v2608, %v829
        %v2673 = vmul.f32 %v2609, %v830
        %v2674 = vmul.f32 %v2610, %v831
        %v2675 = vmul.f32 %v2611, %v832
        %v2676 = vmul.f32 %v2612, %v833
        %v2677 = vmul.f32 %v2613, %v834
        %v2678 = vmul.f32 %v2614, %v827
        %v2679 = vmul.f32 %v2615, %v828
        %v2680 = vmul.f32 %v2616, %v829
        %v2681 = vmul.f32 %v2617, %v830
        %v2682 = vmul.f32 %v2618, %v831
        %v2683 = vmul.f32 %v2619, %v832
        %v2684 = vmul.f32 %v2620, %v833
        %v2685 = vmul.f32 %v2621, %v834
        %v2686 = vmul.f32 %v2622, %v827
        %v2687 = vmul.f32 %v2623, %v828
        %v2688 = vmul.f32 %v2624, %v829
        %v2689 = vmul.f32 %v2625, %v830
        %v2690 = vmul.f32 %v2626, %v831
        %v2691 = vmul.f32 %v2627, %v832
        %v2692 = vmul.f32 %v2628, %v833
        %v2693 = vmul.f32 %v2629, %v834
        %v2694 = vmul.f32 %v2630, %v827
        %v2695 = vmul.f32 %v2631, %v828
        %v2696 = vmul.f32 %v2632, %v829
        %v2697 = vmul.f32 %v2633, %v830
        %v2698 = vmul.f32 %v2634, %v831
        %v2699 = vmul.f32 %v2635, %v832
        %v2700 = vmul.f32 %v2636, %v833
        %v2701 = vmul.f32 %v2637, %v834
        %v2702 = vmul.f32 %v2638, %v827
        %v2703 = vmul.f32 %v2639, %v828
        %v2704 = vmul.f32 %v2640, %v829
        %v2705 = vmul.f32 %v2641, %v830
        %v2706 = vmul.f32 %v2642, %v831
        %v2707 = vmul.f32 %v2643, %v832
        %v2708 = vmul.f32 %v2644, %v833
        %v2709 = vmul.f32 %v2645, %v834
        %v2710 = vmul.f32 %v2646, %v827
        %v2711 = vmul.f32 %v2647, %v828
        %v2712 = vmul.f32 %v2648, %v829
        %v2713 = vmul.f32 %v2649, %v830
        %v2714 = vmul.f32 %v2650, %v831
        %v2715 = vmul.f32 %v2651, %v832
        %v2716 = vmul.f32 %v2652, %v833
        %v2717 = vmul.f32 %v2653, %v834
        %v2718 = vmul.f32 %v2654, %v827
        %v2719 = vmul.f32 %v2655, %v828
        %v2720 = vmul.f32 %v2656, %v829
        %v2721 = vmul.f32 %v2657, %v830
        %v2722 = vmul.f32 %v2658, %v831
        %v2723 = vmul.f32 %v2659, %v832
        %v2724 = vmul.f32 %v2660, %v833
        %v2725 = vmul.f32 %v2661, %v834
        %v2726 = vmul.f32 %v2662, %v827
        %v2727 = vmul.f32 %v2663, %v828
        %v2728 = vmul.f32 %v2664, %v829
        %v2729 = vmul.f32 %v2665, %v830
        %v2730 = vmul.f32 %v2666, %v831
        %v2731 = vmul.f32 %v2667, %v832
        %v2732 = vmul.f32 %v2668, %v833
        %v2733 = vmul.f32 %v2669, %v834
        %v2734 = vpack.c.bf16 %v2671, %v2670
        %v2735 = vpack.c.bf16 %v2673, %v2672
        %v2736 = vpack.c.bf16 %v2675, %v2674
        %v2737 = vpack.c.bf16 %v2677, %v2676
        %v2738 = vpack.c.bf16 %v2679, %v2678
        %v2739 = vpack.c.bf16 %v2681, %v2680
        %v2740 = vpack.c.bf16 %v2683, %v2682
        %v2741 = vpack.c.bf16 %v2685, %v2684
        %v2742 = vpack.c.bf16 %v2687, %v2686
        %v2743 = vpack.c.bf16 %v2689, %v2688
        %v2744 = vpack.c.bf16 %v2691, %v2690
        %v2745 = vpack.c.bf16 %v2693, %v2692
        %v2746 = vpack.c.bf16 %v2695, %v2694
        %v2747 = vpack.c.bf16 %v2697, %v2696
        %v2748 = vpack.c.bf16 %v2699, %v2698
        %v2749 = vpack.c.bf16 %v2701, %v2700
        %v2750 = vpack.c.bf16 %v2703, %v2702
        %v2751 = vpack.c.bf16 %v2705, %v2704
        %v2752 = vpack.c.bf16 %v2707, %v2706
        %v2753 = vpack.c.bf16 %v2709, %v2708
        %v2754 = vpack.c.bf16 %v2711, %v2710
        %v2755 = vpack.c.bf16 %v2713, %v2712
        %v2756 = vpack.c.bf16 %v2715, %v2714
        %v2757 = vpack.c.bf16 %v2717, %v2716
        %v2758 = vpack.c.bf16 %v2719, %v2718
        %v2759 = vpack.c.bf16 %v2721, %v2720
        %v2760 = vpack.c.bf16 %v2723, %v2722
        %v2761 = vpack.c.bf16 %v2725, %v2724
        %v2762 = vpack.c.bf16 %v2727, %v2726
        %v2763 = vpack.c.bf16 %v2729, %v2728
        %v2764 = vpack.c.bf16 %v2731, %v2730
        %v2765 = vpack.c.bf16 %v2733, %v2732
        %v2782 = vunpack.c.l.b16 %v811
        %v2783 = vunpack.c.l.b16 %v812
        %v2784 = vunpack.c.l.b16 %v813
        %v2785 = vunpack.c.l.b16 %v814
        %v2786 = vunpack.c.l.b16 %v815
        %v2787 = vunpack.c.l.b16 %v816
        %v2788 = vunpack.c.l.b16 %v817
        %v2789 = vunpack.c.l.b16 %v818
        %v2790 = vunpack.c.l.b16 %v819
        %v2791 = vunpack.c.l.b16 %v820
        %v2792 = vunpack.c.l.b16 %v821
        %v2793 = vunpack.c.l.b16 %v822
        %v2794 = vunpack.c.l.b16 %v823
        %v2795 = vunpack.c.l.b16 %v824
        %v2796 = vunpack.c.l.b16 %v825
        %v2797 = vunpack.c.l.b16 %v826
        %v2798 = vpack.c.b16 %v2783, %v2782
        %v2799 = vpack.c.b16 %v2785, %v2784
        %v2800 = vpack.c.b16 %v2787, %v2786
        %v2801 = vpack.c.b16 %v2789, %v2788
        %v2802 = vpack.c.b16 %v2791, %v2790
        %v2803 = vpack.c.b16 %v2793, %v2792
        %v2804 = vpack.c.b16 %v2795, %v2794
        %v2805 = vpack.c.b16 %v2797, %v2796
        %2814 = vmatprep.subr.bf16.mxu0 0
        %2815 = vmatpush1.bf16.msra.mxu0 %v2805
        %2816 = vmatprep.subr.bf16.mxu0 0
        %2817 = vmatpush1.bf16.msra.mxu0 %v2804
        %2818 = vmatprep.subr.bf16.mxu0 0
        %2819 = vmatpush1.bf16.msra.mxu0 %v2803
        %2820 = vmatprep.subr.bf16.mxu0 0
        %2821 = vmatpush1.bf16.msra.mxu0 %v2802
        %2822 = vmatprep.subr.bf16.mxu0 0
        %2823 = vmatpush1.bf16.msra.mxu0 %v2801
        %2824 = vmatprep.subr.bf16.mxu0 0
        %2825 = vmatpush1.bf16.msra.mxu0 %v2800
        %2826 = vmatprep.subr.bf16.mxu0 0
        %2827 = vmatpush1.bf16.msra.mxu0 %v2799
        %2828 = vmatprep.subr.bf16.mxu0 0
        %2829 = vmatpush1.bf16.msra.mxu0 %v2798
        %2830 = vmatprep.subr.bf16.mxu0 0
        %2831 = vmatpush2.bf16.msra.mxu0 0
        %2832 = vmatprep.subr.bf16.mxu0 0
        %2833 = vmatpush2.bf16.msra.mxu0 0
        %2834 = vmatprep.subr.bf16.mxu0 0
        %2835 = vmatpush2.bf16.msra.mxu0 0
        %2836 = vmatprep.subr.bf16.mxu0 0
        %2837 = vmatpush2.bf16.msra.mxu0 0
        %2838 = vmatprep.subr.bf16.mxu0 0
        %2839 = vmatpush2.bf16.msra.mxu0 0
        %2840 = vmatprep.subr.bf16.mxu0 0
        %2841 = vmatpush2.bf16.msra.mxu0 0
        %2842 = vmatprep.subr.bf16.mxu0 0
        %2843 = vmatpush2.bf16.msra.mxu0 0
        %2844 = vmatprep.subr.bf16.mxu0 0
        %2845 = vmatpush2.bf16.msra.mxu0 0
        %2846 = vmatprep.mubr.bf16.mxu0 0
        %2847 = vmatmul.mubr.bf16.gmra.mxu0 %v2734
        %v2848 = vpop.f32.mrf.mxu0
        %v2849 = vadd.f32 0.0, %v2848
        %v2850 = vpop.f32.mrf.mxu0
        %v2851 = vpop.f32.mrf.mxu0
        %v2852 = vadd.f32 0.0, %v2851
        %v2853 = vpop.f32.mrf.mxu0
        %2854 = vmatprep.mubr.bf16.mxu0 0
        %2855 = vmatmul.mubr.bf16.gmra.mxu0 %v2735
        %v2856 = vpop.f32.mrf.mxu0
        %v2857 = vadd.f32 0.0, %v2856
        %v2858 = vpop.f32.mrf.mxu0
        %v2859 = vpop.f32.mrf.mxu0
        %v2860 = vadd.f32 0.0, %v2859
        %v2861 = vpop.f32.mrf.mxu0
        %2862 = vmatprep.mubr.bf16.mxu0 0
        %2863 = vmatmul.mubr.bf16.gmra.mxu0 %v2736
        %v2864 = vpop.f32.mrf.mxu0
        %v2865 = vadd.f32 0.0, %v2864
        %v2866 = vpop.f32.mrf.mxu0
        %v2867 = vpop.f32.mrf.mxu0
        %v2868 = vadd.f32 0.0, %v2867
        %v2869 = vpop.f32.mrf.mxu0
        %2870 = vmatprep.mubr.bf16.mxu0 0
        %2871 = vmatmul.mubr.bf16.gmra.mxu0 %v2737
        %v2872 = vpop.f32.mrf.mxu0
        %v2873 = vadd.f32 0.0, %v2872
        %v2874 = vpop.f32.mrf.mxu0
        %v2875 = vpop.f32.mrf.mxu0
        %v2876 = vadd.f32 0.0, %v2875
        %v2877 = vpop.f32.mrf.mxu0
        %2878 = vmatprep.mubr.bf16.mxu0 0
        %2879 = vmatmul.mubr.bf16.gmra.mxu0 %v2738
        %v2880 = vpop.f32.mrf.mxu0
        %v2881 = vadd.f32 0.0, %v2880
        %v2882 = vpop.f32.mrf.mxu0
        %v2883 = vpop.f32.mrf.mxu0
        %v2884 = vadd.f32 0.0, %v2883
        %v2885 = vpop.f32.mrf.mxu0
        %2886 = vmatprep.mubr.bf16.mxu0 0
        %2887 = vmatmul.mubr.bf16.gmra.mxu0 %v2739
        %v2888 = vpop.f32.mrf.mxu0
        %v2889 = vadd.f32 0.0, %v2888
        %v2890 = vpop.f32.mrf.mxu0
        %v2891 = vpop.f32.mrf.mxu0
        %v2892 = vadd.f32 0.0, %v2891
        %v2893 = vpop.f32.mrf.mxu0
        %2894 = vmatprep.mubr.bf16.mxu0 0
        %2895 = vmatmul.mubr.bf16.gmra.mxu0 %v2740
        %v2896 = vpop.f32.mrf.mxu0
        %v2897 = vadd.f32 0.0, %v2896
        %v2898 = vpop.f32.mrf.mxu0
        %v2899 = vpop.f32.mrf.mxu0
        %v2900 = vadd.f32 0.0, %v2899
        %v2901 = vpop.f32.mrf.mxu0
        %2902 = vmatprep.mubr.bf16.mxu0 0
        %2903 = vmatmul.mubr.bf16.gmra.mxu0 %v2741
        %v2904 = vpop.f32.mrf.mxu0
        %v2905 = vadd.f32 0.0, %v2904
        %v2906 = vpop.f32.mrf.mxu0
        %v2907 = vpop.f32.mrf.mxu0
        %v2908 = vadd.f32 0.0, %v2907
        %v2909 = vpop.f32.mrf.mxu0
        %2910 = vmatprep.mubr.bf16.mxu0 0
        %2911 = vmatmul.mubr.bf16.gmra.mxu0 %v2742
        %v2912 = vpop.f32.mrf.mxu0
        %v2913 = vadd.f32 0.0, %v2912
        %v2914 = vpop.f32.mrf.mxu0
        %v2915 = vpop.f32.mrf.mxu0
        %v2916 = vadd.f32 0.0, %v2915
        %v2917 = vpop.f32.mrf.mxu0
        %2918 = vmatprep.mubr.bf16.mxu0 0
        %2919 = vmatmul.mubr.bf16.gmra.mxu0 %v2743
        %v2920 = vpop.f32.mrf.mxu0
        %v2921 = vadd.f32 0.0, %v2920
        %v2922 = vpop.f32.mrf.mxu0
        %v2923 = vpop.f32.mrf.mxu0
        %v2924 = vadd.f32 0.0, %v2923
        %v2925 = vpop.f32.mrf.mxu0
        %2926 = vmatprep.mubr.bf16.mxu0 0
        %2927 = vmatmul.mubr.bf16.gmra.mxu0 %v2744
        %v2928 = vpop.f32.mrf.mxu0
        %v2929 = vadd.f32 0.0, %v2928
        %v2930 = vpop.f32.mrf.mxu0
        %v2931 = vpop.f32.mrf.mxu0
        %v2932 = vadd.f32 0.0, %v2931
        %v2933 = vpop.f32.mrf.mxu0
        %2934 = vmatprep.mubr.bf16.mxu0 0
        %2935 = vmatmul.mubr.bf16.gmra.mxu0 %v2745
        %v2936 = vpop.f32.mrf.mxu0
        %v2937 = vadd.f32 0.0, %v2936
        %v2938 = vpop.f32.mrf.mxu0
        %v2939 = vpop.f32.mrf.mxu0
        %v2940 = vadd.f32 0.0, %v2939
        %v2941 = vpop.f32.mrf.mxu0
        %2942 = vmatprep.mubr.bf16.mxu0 0
        %2943 = vmatmul.mubr.bf16.gmra.mxu0 %v2746
        %v2944 = vpop.f32.mrf.mxu0
        %v2945 = vadd.f32 0.0, %v2944
        %v2946 = vpop.f32.mrf.mxu0
        %v2947 = vpop.f32.mrf.mxu0
        %v2948 = vadd.f32 0.0, %v2947
        %v2949 = vpop.f32.mrf.mxu0
        %2950 = vmatprep.mubr.bf16.mxu0 0
        %2951 = vmatmul.mubr.bf16.gmra.mxu0 %v2747
        %v2952 = vpop.f32.mrf.mxu0
        %v2953 = vadd.f32 0.0, %v2952
        %v2954 = vpop.f32.mrf.mxu0
        %v2955 = vpop.f32.mrf.mxu0
        %v2956 = vadd.f32 0.0, %v2955
        %v2957 = vpop.f32.mrf.mxu0
        %2958 = vmatprep.mubr.bf16.mxu0 0
        %2959 = vmatmul.mubr.bf16.gmra.mxu0 %v2748
        %v2960 = vpop.f32.mrf.mxu0
        %v2961 = vadd.f32 0.0, %v2960
        %v2962 = vpop.f32.mrf.mxu0
        %v2963 = vpop.f32.mrf.mxu0
        %v2964 = vadd.f32 0.0, %v2963
        %v2965 = vpop.f32.mrf.mxu0
        %2966 = vmatprep.mubr.bf16.mxu0 0
        %2967 = vmatmul.mubr.bf16.gmra.mxu0 %v2749
        %v2968 = vpop.f32.mrf.mxu0
        %v2969 = vadd.f32 0.0, %v2968
        %v2970 = vpop.f32.mrf.mxu0
        %v2971 = vpop.f32.mrf.mxu0
        %v2972 = vadd.f32 0.0, %v2971
        %v2973 = vpop.f32.mrf.mxu0
        %2974 = vmatprep.mubr.bf16.mxu0 0
        %2975 = vmatmul.mubr.bf16.gmra.mxu0 %v2750
        %v2976 = vpop.f32.mrf.mxu0
        %v2977 = vadd.f32 0.0, %v2976
        %v2978 = vpop.f32.mrf.mxu0
        %v2979 = vpop.f32.mrf.mxu0
        %v2980 = vadd.f32 0.0, %v2979
        %v2981 = vpop.f32.mrf.mxu0
        %2982 = vmatprep.mubr.bf16.mxu0 0
        %2983 = vmatmul.mubr.bf16.gmra.mxu0 %v2751
        %v2984 = vpop.f32.mrf.mxu0
        %v2985 = vadd.f32 0.0, %v2984
        %v2986 = vpop.f32.mrf.mxu0
        %v2987 = vpop.f32.mrf.mxu0
        %v2988 = vadd.f32 0.0, %v2987
        %v2989 = vpop.f32.mrf.mxu0
        %2990 = vmatprep.mubr.bf16.mxu0 0
        %2991 = vmatmul.mubr.bf16.gmra.mxu0 %v2752
        %v2992 = vpop.f32.mrf.mxu0
        %v2993 = vadd.f32 0.0, %v2992
        %v2994 = vpop.f32.mrf.mxu0
        %v2995 = vpop.f32.mrf.mxu0
        %v2996 = vadd.f32 0.0, %v2995
        %v2997 = vpop.f32.mrf.mxu0
        %2998 = vmatprep.mubr.bf16.mxu0 0
        %2999 = vmatmul.mubr.bf16.gmra.mxu0 %v2753
        %v3000 = vpop.f32.mrf.mxu0
        %v3001 = vadd.f32 0.0, %v3000
        %v3002 = vpop.f32.mrf.mxu0
        %v3003 = vpop.f32.mrf.mxu0
        %v3004 = vadd.f32 0.0, %v3003
        %v3005 = vpop.f32.mrf.mxu0
        %3006 = vmatprep.mubr.bf16.mxu0 0
        %3007 = vmatmul.mubr.bf16.gmra.mxu0 %v2754
        %v3008 = vpop.f32.mrf.mxu0
        %v3009 = vadd.f32 0.0, %v3008
        %v3010 = vpop.f32.mrf.mxu0
        %v3011 = vpop.f32.mrf.mxu0
        %v3012 = vadd.f32 0.0, %v3011
        %v3013 = vpop.f32.mrf.mxu0
        %3014 = vmatprep.mubr.bf16.mxu0 0
        %3015 = vmatmul.mubr.bf16.gmra.mxu0 %v2755
        %v3016 = vpop.f32.mrf.mxu0
        %v3017 = vadd.f32 0.0, %v3016
        %v3018 = vpop.f32.mrf.mxu0
        %v3019 = vpop.f32.mrf.mxu0
        %v3020 = vadd.f32 0.0, %v3019
        %v3021 = vpop.f32.mrf.mxu0
        %3022 = vmatprep.mubr.bf16.mxu0 0
        %3023 = vmatmul.mubr.bf16.gmra.mxu0 %v2756
        %v3024 = vpop.f32.mrf.mxu0
        %v3025 = vadd.f32 0.0, %v3024
        %v3026 = vpop.f32.mrf.mxu0
        %v3027 = vpop.f32.mrf.mxu0
        %v3028 = vadd.f32 0.0, %v3027
        %v3029 = vpop.f32.mrf.mxu0
        %3030 = vmatprep.mubr.bf16.mxu0 0
        %3031 = vmatmul.mubr.bf16.gmra.mxu0 %v2757
        %v3032 = vpop.f32.mrf.mxu0
        %v3033 = vadd.f32 0.0, %v3032
        %v3034 = vpop.f32.mrf.mxu0
        %v3035 = vpop.f32.mrf.mxu0
        %v3036 = vadd.f32 0.0, %v3035
        %v3037 = vpop.f32.mrf.mxu0
        %3038 = vmatprep.mubr.bf16.mxu0 0
        %3039 = vmatmul.mubr.bf16.gmra.mxu0 %v2758
        %v3040 = vpop.f32.mrf.mxu0
        %v3041 = vadd.f32 0.0, %v3040
        %v3042 = vpop.f32.mrf.mxu0
        %v3043 = vpop.f32.mrf.mxu0
        %v3044 = vadd.f32 0.0, %v3043
        %v3045 = vpop.f32.mrf.mxu0
        %3046 = vmatprep.mubr.bf16.mxu0 0
        %3047 = vmatmul.mubr.bf16.gmra.mxu0 %v2759
        %v3048 = vpop.f32.mrf.mxu0
        %v3049 = vadd.f32 0.0, %v3048
        %v3050 = vpop.f32.mrf.mxu0
        %v3051 = vpop.f32.mrf.mxu0
        %v3052 = vadd.f32 0.0, %v3051
        %v3053 = vpop.f32.mrf.mxu0
        %3054 = vmatprep.mubr.bf16.mxu0 0
        %3055 = vmatmul.mubr.bf16.gmra.mxu0 %v2760
        %v3056 = vpop.f32.mrf.mxu0
        %v3057 = vadd.f32 0.0, %v3056
        %v3058 = vpop.f32.mrf.mxu0
        %v3059 = vpop.f32.mrf.mxu0
        %v3060 = vadd.f32 0.0, %v3059
        %v3061 = vpop.f32.mrf.mxu0
        %3062 = vmatprep.mubr.bf16.mxu0 0
        %3063 = vmatmul.mubr.bf16.gmra.mxu0 %v2761
        %v3064 = vpop.f32.mrf.mxu0
        %v3065 = vadd.f32 0.0, %v3064
        %v3066 = vpop.f32.mrf.mxu0
        %v3067 = vpop.f32.mrf.mxu0
        %v3068 = vadd.f32 0.0, %v3067
        %v3069 = vpop.f32.mrf.mxu0
        %3070 = vmatprep.mubr.bf16.mxu0 0
        %3071 = vmatmul.mubr.bf16.gmra.mxu0 %v2762
        %v3072 = vpop.f32.mrf.mxu0
        %v3073 = vadd.f32 0.0, %v3072
        %v3074 = vpop.f32.mrf.mxu0
        %v3075 = vpop.f32.mrf.mxu0
        %v3076 = vadd.f32 0.0, %v3075
        %v3077 = vpop.f32.mrf.mxu0
        %3078 = vmatprep.mubr.bf16.mxu0 0
        %3079 = vmatmul.mubr.bf16.gmra.mxu0 %v2763
        %v3080 = vpop.f32.mrf.mxu0
        %v3081 = vadd.f32 0.0, %v3080
        %v3082 = vpop.f32.mrf.mxu0
        %v3083 = vpop.f32.mrf.mxu0
        %v3084 = vadd.f32 0.0, %v3083
        %v3085 = vpop.f32.mrf.mxu0
        %3086 = vmatprep.mubr.bf16.mxu0 0
        %3087 = vmatmul.mubr.bf16.gmra.mxu0 %v2764
        %v3088 = vpop.f32.mrf.mxu0
        %v3089 = vadd.f32 0.0, %v3088
        %v3090 = vpop.f32.mrf.mxu0
        %v3091 = vpop.f32.mrf.mxu0
        %v3092 = vadd.f32 0.0, %v3091
        %v3093 = vpop.f32.mrf.mxu0
        %3094 = vmatprep.mubr.bf16.mxu0 0
        %3095 = vmatmul.mubr.bf16.gmra.mxu0 %v2765
        %v3096 = vpop.f32.mrf.mxu0
        %v3097 = vadd.f32 0.0, %v3096
        %v3098 = vpop.f32.mrf.mxu0
        %v3099 = vpop.f32.mrf.mxu0
        %v3100 = vadd.f32 0.0, %v3099
        %v3101 = vpop.f32.mrf.mxu0
        %3102 = vdwg.mxu0
        %v3103 = vmul.f32 %v1112, %v2849
        %v3104 = vmul.f32 %v1114, %v2852
        %v3105 = vmul.f32 %v1116, %v2857
        %v3106 = vmul.f32 %v1118, %v2860
        %v3107 = vmul.f32 %v1120, %v2865
        %v3108 = vmul.f32 %v1122, %v2868
        %v3109 = vmul.f32 %v1124, %v2873
        %v3110 = vmul.f32 %v1126, %v2876
        %v3111 = vmul.f32 %v1128, %v2881
        %v3112 = vmul.f32 %v1130, %v2884
        %v3113 = vmul.f32 %v1132, %v2889
        %v3114 = vmul.f32 %v1134, %v2892
        %v3115 = vmul.f32 %v1136, %v2897
        %v3116 = vmul.f32 %v1138, %v2900
        %v3117 = vmul.f32 %v1140, %v2905
        %v3118 = vmul.f32 %v1142, %v2908
        %v3119 = vmul.f32 %v1434, %v2913
        %v3120 = vmul.f32 %v1436, %v2916
        %v3121 = vmul.f32 %v1438, %v2921
        %v3122 = vmul.f32 %v1440, %v2924
        %v3123 = vmul.f32 %v1442, %v2929
        %v3124 = vmul.f32 %v1444, %v2932
        %v3125 = vmul.f32 %v1446, %v2937
        %v3126 = vmul.f32 %v1448, %v2940
        %v3127 = vmul.f32 %v1450, %v2945
        %v3128 = vmul.f32 %v1452, %v2948
        %v3129 = vmul.f32 %v1454, %v2953
        %v3130 = vmul.f32 %v1456, %v2956
        %v3131 = vmul.f32 %v1458, %v2961
        %v3132 = vmul.f32 %v1460, %v2964
        %v3133 = vmul.f32 %v1462, %v2969
        %v3134 = vmul.f32 %v1464, %v2972
        %v3135 = vmul.f32 %v1740, %v2977
        %v3136 = vmul.f32 %v1742, %v2980
        %v3137 = vmul.f32 %v1744, %v2985
        %v3138 = vmul.f32 %v1746, %v2988
        %v3139 = vmul.f32 %v1748, %v2993
        %v3140 = vmul.f32 %v1750, %v2996
        %v3141 = vmul.f32 %v1752, %v3001
        %v3142 = vmul.f32 %v1754, %v3004
        %v3143 = vmul.f32 %v1756, %v3009
        %v3144 = vmul.f32 %v1758, %v3012
        %v3145 = vmul.f32 %v1760, %v3017
        %v3146 = vmul.f32 %v1762, %v3020
        %v3147 = vmul.f32 %v1764, %v3025
        %v3148 = vmul.f32 %v1766, %v3028
        %v3149 = vmul.f32 %v1768, %v3033
        %v3150 = vmul.f32 %v1770, %v3036
        %v3151 = vmul.f32 %v2046, %v3041
        %v3152 = vmul.f32 %v2048, %v3044
        %v3153 = vmul.f32 %v2050, %v3049
        %v3154 = vmul.f32 %v2052, %v3052
        %v3155 = vmul.f32 %v2054, %v3057
        %v3156 = vmul.f32 %v2056, %v3060
        %v3157 = vmul.f32 %v2058, %v3065
        %v3158 = vmul.f32 %v2060, %v3068
        %v3159 = vmul.f32 %v2062, %v3073
        %v3160 = vmul.f32 %v2064, %v3076
        %v3161 = vmul.f32 %v2066, %v3081
        %v3162 = vmul.f32 %v2068, %v3084
        %v3163 = vmul.f32 %v2070, %v3089
        %v3164 = vmul.f32 %v2072, %v3092
        %v3165 = vmul.f32 %v2074, %v3097
        %v3166 = vmul.f32 %v2076, %v3100
        %v3167 = vpack.c.bf16 %v3104, %v3103
        %v3168 = vpack.c.bf16 %v3106, %v3105
        %v3169 = vpack.c.bf16 %v3108, %v3107
        %v3170 = vpack.c.bf16 %v3110, %v3109
        %v3171 = vpack.c.bf16 %v3112, %v3111
        %v3172 = vpack.c.bf16 %v3114, %v3113
        %v3173 = vpack.c.bf16 %v3116, %v3115
        %v3174 = vpack.c.bf16 %v3118, %v3117
        %v3175 = vpack.c.bf16 %v3120, %v3119
        %v3176 = vpack.c.bf16 %v3122, %v3121
        %v3177 = vpack.c.bf16 %v3124, %v3123
        %v3178 = vpack.c.bf16 %v3126, %v3125
        %v3179 = vpack.c.bf16 %v3128, %v3127
        %v3180 = vpack.c.bf16 %v3130, %v3129
        %v3181 = vpack.c.bf16 %v3132, %v3131
        %v3182 = vpack.c.bf16 %v3134, %v3133
        %v3183 = vpack.c.bf16 %v3136, %v3135
        %v3184 = vpack.c.bf16 %v3138, %v3137
        %v3185 = vpack.c.bf16 %v3140, %v3139
        %v3186 = vpack.c.bf16 %v3142, %v3141
        %v3187 = vpack.c.bf16 %v3144, %v3143
        %v3188 = vpack.c.bf16 %v3146, %v3145
        %v3189 = vpack.c.bf16 %v3148, %v3147
        %v3190 = vpack.c.bf16 %v3150, %v3149
        %v3191 = vpack.c.bf16 %v3152, %v3151
        %v3192 = vpack.c.bf16 %v3154, %v3153
        %v3193 = vpack.c.bf16 %v3156, %v3155
        %v3194 = vpack.c.bf16 %v3158, %v3157
        %v3195 = vpack.c.bf16 %v3160, %v3159
        %v3196 = vpack.c.bf16 %v3162, %v3161
        %v3197 = vpack.c.bf16 %v3164, %v3163
        %v3198 = vpack.c.bf16 %v3166, %v3165
        %v3200 = vsel %vm1046, %v3167, 0
        %v3203 = vsel %vm1046, %v3168, 0
        %v3206 = vsel %vm1046, %v3169, 0
        %v3209 = vsel %vm1046, %v3170, 0
        %3211 = vmatprep.subr.bf16.mxu0 0
        %3212 = vmatpush1.bf16.msra.mxu0 0
        %3213 = vmatprep.subr.bf16.mxu0 0
        %3214 = vmatpush1.bf16.msra.mxu0 0
        %3215 = vmatprep.subr.bf16.mxu0 0
        %3216 = vmatpush1.bf16.msra.mxu0 0
        %3217 = vmatprep.subr.bf16.mxu0 0
        %3218 = vmatpush1.bf16.msra.mxu0 0
        %3219 = vmatprep.subr.bf16.mxu0 0
        %3220 = vmatpush1.bf16.msra.mxu0 %v862
        %3221 = vmatprep.subr.bf16.mxu0 0
        %3222 = vmatpush1.bf16.msra.mxu0 %v861
        %3223 = vmatprep.subr.bf16.mxu0 0
        %3224 = vmatpush1.bf16.msra.mxu0 %v860
        %3225 = vmatprep.subr.bf16.mxu0 0
        %3226 = vmatpush1.bf16.msra.mxu0 %v859
        %3227 = vmatprep.subr.bf16.mxu0 0
        %3228 = vmatpush2.bf16.msra.mxu0 0
        %3229 = vmatprep.subr.bf16.mxu0 0
        %3230 = vmatpush2.bf16.msra.mxu0 0
        %3231 = vmatprep.subr.bf16.mxu0 0
        %3232 = vmatpush2.bf16.msra.mxu0 0
        %3233 = vmatprep.subr.bf16.mxu0 0
        %3234 = vmatpush2.bf16.msra.mxu0 0
        %3235 = vmatprep.subr.bf16.mxu0 0
        %3236 = vmatpush2.bf16.msra.mxu0 0
        %3237 = vmatprep.subr.bf16.mxu0 0
        %3238 = vmatpush2.bf16.msra.mxu0 0
        %3239 = vmatprep.subr.bf16.mxu0 0
        %3240 = vmatpush2.bf16.msra.mxu0 0
        %3241 = vmatprep.subr.bf16.mxu0 0
        %3242 = vmatpush2.bf16.msra.mxu0 0
        %3243 = vmatprep.mubr.bf16.mxu0 0
        %3244 = vmatmul.mubr.bf16.gmra.mxu0 %v3200
        %v3245 = vpop.f32.mrf.mxu0
        %v3246 = vadd.f32 0.0, %v3245
        %v3247 = vpop.f32.mrf.mxu0
        %v3248 = vpop.f32.mrf.mxu0
        %v3249 = vadd.f32 0.0, %v3248
        %v3250 = vpop.f32.mrf.mxu0
        %3251 = vmatprep.mubr.bf16.mxu0 0
        %3252 = vmatmul.mubr.bf16.gmra.mxu0 %v3203
        %v3253 = vpop.f32.mrf.mxu0
        %v3254 = vadd.f32 0.0, %v3253
        %v3255 = vpop.f32.mrf.mxu0
        %v3256 = vpop.f32.mrf.mxu0
        %v3257 = vadd.f32 0.0, %v3256
        %v3258 = vpop.f32.mrf.mxu0
        %3259 = vmatprep.mubr.bf16.mxu0 0
        %3260 = vmatmul.mubr.bf16.gmra.mxu0 %v3206
        %v3261 = vpop.f32.mrf.mxu0
        %v3262 = vadd.f32 0.0, %v3261
        %v3263 = vpop.f32.mrf.mxu0
        %v3264 = vpop.f32.mrf.mxu0
        %v3265 = vadd.f32 0.0, %v3264
        %v3266 = vpop.f32.mrf.mxu0
        %3267 = vmatprep.mubr.bf16.mxu0 0
        %3268 = vmatmul.mubr.bf16.gmra.mxu0 %v3209
        %v3269 = vpop.f32.mrf.mxu0
        %v3270 = vadd.f32 0.0, %v3269
        %v3271 = vpop.f32.mrf.mxu0
        %v3272 = vpop.f32.mrf.mxu0
        %v3273 = vadd.f32 0.0, %v3272
        %v3274 = vpop.f32.mrf.mxu0
        %3275 = vdwg.mxu0
        %v3277 = vsel %vm1046, %v3171, 0
        %v3280 = vsel %vm1046, %v3172, 0
        %v3283 = vsel %vm1046, %v3173, 0
        %v3286 = vsel %vm1046, %v3174, 0
        %3288 = vmatprep.subr.bf16.mxu0 0
        %3289 = vmatpush1.bf16.msra.mxu0 0
        %3290 = vmatprep.subr.bf16.mxu0 0
        %3291 = vmatpush1.bf16.msra.mxu0 0
        %3292 = vmatprep.subr.bf16.mxu0 0
        %3293 = vmatpush1.bf16.msra.mxu0 0
        %3294 = vmatprep.subr.bf16.mxu0 0
        %3295 = vmatpush1.bf16.msra.mxu0 0
        %3296 = vmatprep.subr.bf16.mxu0 0
        %3297 = vmatpush1.bf16.msra.mxu0 %v866
        %3298 = vmatprep.subr.bf16.mxu0 0
        %3299 = vmatpush1.bf16.msra.mxu0 %v865
        %3300 = vmatprep.subr.bf16.mxu0 0
        %3301 = vmatpush1.bf16.msra.mxu0 %v864
        %3302 = vmatprep.subr.bf16.mxu0 0
        %3303 = vmatpush1.bf16.msra.mxu0 %v863
        %3304 = vmatprep.subr.bf16.mxu0 0
        %3305 = vmatpush2.bf16.msra.mxu0 0
        %3306 = vmatprep.subr.bf16.mxu0 0
        %3307 = vmatpush2.bf16.msra.mxu0 0
        %3308 = vmatprep.subr.bf16.mxu0 0
        %3309 = vmatpush2.bf16.msra.mxu0 0
        %3310 = vmatprep.subr.bf16.mxu0 0
        %3311 = vmatpush2.bf16.msra.mxu0 0
        %3312 = vmatprep.subr.bf16.mxu0 0
        %3313 = vmatpush2.bf16.msra.mxu0 0
        %3314 = vmatprep.subr.bf16.mxu0 0
        %3315 = vmatpush2.bf16.msra.mxu0 0
        %3316 = vmatprep.subr.bf16.mxu0 0
        %3317 = vmatpush2.bf16.msra.mxu0 0
        %3318 = vmatprep.subr.bf16.mxu0 0
        %3319 = vmatpush2.bf16.msra.mxu0 0
        %3320 = vmatprep.mubr.bf16.mxu0 0
        %3321 = vmatmul.mubr.bf16.gmra.mxu0 %v3277
        %v3322 = vpop.f32.mrf.mxu0
        %v3323 = vadd.f32 0.0, %v3322
        %v3324 = vpop.f32.mrf.mxu0
        %v3325 = vpop.f32.mrf.mxu0
        %v3326 = vadd.f32 0.0, %v3325
        %v3327 = vpop.f32.mrf.mxu0
        %3328 = vmatprep.mubr.bf16.mxu0 0
        %3329 = vmatmul.mubr.bf16.gmra.mxu0 %v3280
        %v3330 = vpop.f32.mrf.mxu0
        %v3331 = vadd.f32 0.0, %v3330
        %v3332 = vpop.f32.mrf.mxu0
        %v3333 = vpop.f32.mrf.mxu0
        %v3334 = vadd.f32 0.0, %v3333
        %v3335 = vpop.f32.mrf.mxu0
        %3336 = vmatprep.mubr.bf16.mxu0 0
        %3337 = vmatmul.mubr.bf16.gmra.mxu0 %v3283
        %v3338 = vpop.f32.mrf.mxu0
        %v3339 = vadd.f32 0.0, %v3338
        %v3340 = vpop.f32.mrf.mxu0
        %v3341 = vpop.f32.mrf.mxu0
        %v3342 = vadd.f32 0.0, %v3341
        %v3343 = vpop.f32.mrf.mxu0
        %3344 = vmatprep.mubr.bf16.mxu0 0
        %3345 = vmatmul.mubr.bf16.gmra.mxu0 %v3286
        %v3346 = vpop.f32.mrf.mxu0
        %v3347 = vadd.f32 0.0, %v3346
        %v3348 = vpop.f32.mrf.mxu0
        %v3349 = vpop.f32.mrf.mxu0
        %v3350 = vadd.f32 0.0, %v3349
        %v3351 = vpop.f32.mrf.mxu0
        %3352 = vdwg.mxu0
        %3353 = vst.msk [vmem:[#allocation2] sm:$0xff] %vm867, %v3246
        %3354 = vst.msk [vmem:[#allocation2 + $0x8] sm:$0xff] %vm867, %v3249
        %3355 = vst.msk [vmem:[#allocation2 + $0x10] sm:$0xff] %vm867, %v3254
        %3356 = vst.msk [vmem:[#allocation2 + $0x18] sm:$0xff] %vm867, %v3257
        %3357 = vst.msk [vmem:[#allocation2 + $0x20] sm:$0xff] %vm867, %v3262
        %3358 = vst.msk [vmem:[#allocation2 + $0x28] sm:$0xff] %vm867, %v3265
        %3359 = vst.msk [vmem:[#allocation2 + $0x30] sm:$0xff] %vm867, %v3270
        %3360 = vst.msk [vmem:[#allocation2 + $0x38] sm:$0xff] %vm867, %v3273
        %3361 = vst.msk [vmem:[#allocation2 + $0x40] sm:$0xff] %vm867, %v3323
        %3362 = vst.msk [vmem:[#allocation2 + $0x48] sm:$0xff] %vm867, %v3326
        %3363 = vst.msk [vmem:[#allocation2 + $0x50] sm:$0xff] %vm867, %v3331
        %3364 = vst.msk [vmem:[#allocation2 + $0x58] sm:$0xff] %vm867, %v3334
        %3365 = vst.msk [vmem:[#allocation2 + $0x60] sm:$0xff] %vm867, %v3339
        %3366 = vst.msk [vmem:[#allocation2 + $0x68] sm:$0xff] %vm867, %v3342
        %3367 = vst.msk [vmem:[#allocation2 + $0x70] sm:$0xff] %vm867, %v3347
        %3368 = vst.msk [vmem:[#allocation2 + $0x78] sm:$0xff] %vm867, %v3350
        %3373 = vrot.lane.b32.xlu0 %v859, 96
        %v3374 = vpop.permute.xlu0 %3373
        %3375 = vrot.lane.b32.xlu0 %v860, 96
        %v3376 = vpop.permute.xlu0 %3375
        %3377 = vrot.lane.b32.xlu0 %v861, 96
        %v3378 = vpop.permute.xlu0 %3377
        %3379 = vrot.lane.b32.xlu0 %v862, 96
        %v3380 = vpop.permute.xlu0 %3379
        %v3386 = vsel %vm1046, %v3175, 0
        %v3389 = vsel %vm1046, %v3176, 0
        %v3392 = vsel %vm1046, %v3177, 0
        %v3395 = vsel %vm1046, %v3178, 0
        %3397 = vmatprep.subr.bf16.mxu0 0
        %3398 = vmatpush1.bf16.msra.mxu0 0
        %3399 = vmatprep.subr.bf16.mxu0 0
        %3400 = vmatpush1.bf16.msra.mxu0 0
        %3401 = vmatprep.subr.bf16.mxu0 0
        %3402 = vmatpush1.bf16.msra.mxu0 0
        %3403 = vmatprep.subr.bf16.mxu0 0
        %3404 = vmatpush1.bf16.msra.mxu0 0
        %3405 = vmatprep.subr.bf16.mxu0 0
        %3406 = vmatpush1.bf16.msra.mxu0 %v3380
        %3407 = vmatprep.subr.bf16.mxu0 0
        %3408 = vmatpush1.bf16.msra.mxu0 %v3378
        %3409 = vmatprep.subr.bf16.mxu0 0
        %3410 = vmatpush1.bf16.msra.mxu0 %v3376
        %3411 = vmatprep.subr.bf16.mxu0 0
        %3412 = vmatpush1.bf16.msra.mxu0 %v3374
        %3413 = vmatprep.subr.bf16.mxu0 0
        %3414 = vmatpush2.bf16.msra.mxu0 0
        %3415 = vmatprep.subr.bf16.mxu0 0
        %3416 = vmatpush2.bf16.msra.mxu0 0
        %3417 = vmatprep.subr.bf16.mxu0 0
        %3418 = vmatpush2.bf16.msra.mxu0 0
        %3419 = vmatprep.subr.bf16.mxu0 0
        %3420 = vmatpush2.bf16.msra.mxu0 0
        %3421 = vmatprep.subr.bf16.mxu0 0
        %3422 = vmatpush2.bf16.msra.mxu0 0
        %3423 = vmatprep.subr.bf16.mxu0 0
        %3424 = vmatpush2.bf16.msra.mxu0 0
        %3425 = vmatprep.subr.bf16.mxu0 0
        %3426 = vmatpush2.bf16.msra.mxu0 0
        %3427 = vmatprep.subr.bf16.mxu0 0
        %3428 = vmatpush2.bf16.msra.mxu0 0
        %3429 = vmatprep.mubr.bf16.mxu0 0
        %3430 = vmatmul.mubr.bf16.gmra.mxu0 %v3386
        %v3431 = vpop.f32.mrf.mxu0
        %v3432 = vadd.f32 0.0, %v3431
        %v3433 = vpop.f32.mrf.mxu0
        %v3434 = vpop.f32.mrf.mxu0
        %v3435 = vadd.f32 0.0, %v3434
        %v3436 = vpop.f32.mrf.mxu0
        %3437 = vmatprep.mubr.bf16.mxu0 0
        %3438 = vmatmul.mubr.bf16.gmra.mxu0 %v3389
        %v3439 = vpop.f32.mrf.mxu0
        %v3440 = vadd.f32 0.0, %v3439
        %v3441 = vpop.f32.mrf.mxu0
        %v3442 = vpop.f32.mrf.mxu0
        %v3443 = vadd.f32 0.0, %v3442
        %v3444 = vpop.f32.mrf.mxu0
        %3445 = vmatprep.mubr.bf16.mxu0 0
        %3446 = vmatmul.mubr.bf16.gmra.mxu0 %v3392
        %v3447 = vpop.f32.mrf.mxu0
        %v3448 = vadd.f32 0.0, %v3447
        %v3449 = vpop.f32.mrf.mxu0
        %v3450 = vpop.f32.mrf.mxu0
        %v3451 = vadd.f32 0.0, %v3450
        %v3452 = vpop.f32.mrf.mxu0
        %3453 = vmatprep.mubr.bf16.mxu0 0
        %3454 = vmatmul.mubr.bf16.gmra.mxu0 %v3395
        %v3455 = vpop.f32.mrf.mxu0
        %v3456 = vadd.f32 0.0, %v3455
        %v3457 = vpop.f32.mrf.mxu0
        %v3458 = vpop.f32.mrf.mxu0
        %v3459 = vadd.f32 0.0, %v3458
        %v3460 = vpop.f32.mrf.mxu0
        %3461 = vdwg.mxu0
        %3466 = vrot.lane.b32.xlu0 %v863, 96
        %v3467 = vpop.permute.xlu0 %3466
        %3468 = vrot.lane.b32.xlu0 %v864, 96
        %v3469 = vpop.permute.xlu0 %3468
        %3470 = vrot.lane.b32.xlu0 %v865, 96
        %v3471 = vpop.permute.xlu0 %3470
        %3472 = vrot.lane.b32.xlu0 %v866, 96
        %v3473 = vpop.permute.xlu0 %3472
        %v3479 = vsel %vm1046, %v3179, 0
        %v3482 = vsel %vm1046, %v3180, 0
        %v3485 = vsel %vm1046, %v3181, 0
        %v3488 = vsel %vm1046, %v3182, 0
        %3490 = vmatprep.subr.bf16.mxu0 0
        %3491 = vmatpush1.bf16.msra.mxu0 0
        %3492 = vmatprep.subr.bf16.mxu0 0
        %3493 = vmatpush1.bf16.msra.mxu0 0
        %3494 = vmatprep.subr.bf16.mxu0 0
        %3495 = vmatpush1.bf16.msra.mxu0 0
        %3496 = vmatprep.subr.bf16.mxu0 0
        %3497 = vmatpush1.bf16.msra.mxu0 0
        %3498 = vmatprep.subr.bf16.mxu0 0
        %3499 = vmatpush1.bf16.msra.mxu0 %v3473
        %3500 = vmatprep.subr.bf16.mxu0 0
        %3501 = vmatpush1.bf16.msra.mxu0 %v3471
        %3502 = vmatprep.subr.bf16.mxu0 0
        %3503 = vmatpush1.bf16.msra.mxu0 %v3469
        %3504 = vmatprep.subr.bf16.mxu0 0
        %3505 = vmatpush1.bf16.msra.mxu0 %v3467
        %3506 = vmatprep.subr.bf16.mxu0 0
        %3507 = vmatpush2.bf16.msra.mxu0 0
        %3508 = vmatprep.subr.bf16.mxu0 0
        %3509 = vmatpush2.bf16.msra.mxu0 0
        %3510 = vmatprep.subr.bf16.mxu0 0
        %3511 = vmatpush2.bf16.msra.mxu0 0
        %3512 = vmatprep.subr.bf16.mxu0 0
        %3513 = vmatpush2.bf16.msra.mxu0 0
        %3514 = vmatprep.subr.bf16.mxu0 0
        %3515 = vmatpush2.bf16.msra.mxu0 0
        %3516 = vmatprep.subr.bf16.mxu0 0
        %3517 = vmatpush2.bf16.msra.mxu0 0
        %3518 = vmatprep.subr.bf16.mxu0 0
        %3519 = vmatpush2.bf16.msra.mxu0 0
        %3520 = vmatprep.subr.bf16.mxu0 0
        %3521 = vmatpush2.bf16.msra.mxu0 0
        %3522 = vmatprep.mubr.bf16.mxu0 0
        %3523 = vmatmul.mubr.bf16.gmra.mxu0 %v3479
        %v3524 = vpop.f32.mrf.mxu0
        %v3525 = vadd.f32 0.0, %v3524
        %v3526 = vpop.f32.mrf.mxu0
        %v3527 = vpop.f32.mrf.mxu0
        %v3528 = vadd.f32 0.0, %v3527
        %v3529 = vpop.f32.mrf.mxu0
        %3530 = vmatprep.mubr.bf16.mxu0 0
        %3531 = vmatmul.mubr.bf16.gmra.mxu0 %v3482
        %v3532 = vpop.f32.mrf.mxu0
        %v3533 = vadd.f32 0.0, %v3532
        %v3534 = vpop.f32.mrf.mxu0
        %v3535 = vpop.f32.mrf.mxu0
        %v3536 = vadd.f32 0.0, %v3535
        %v3537 = vpop.f32.mrf.mxu0
        %3538 = vmatprep.mubr.bf16.mxu0 0
        %3539 = vmatmul.mubr.bf16.gmra.mxu0 %v3485
        %v3540 = vpop.f32.mrf.mxu0
        %v3541 = vadd.f32 0.0, %v3540
        %v3542 = vpop.f32.mrf.mxu0
        %v3543 = vpop.f32.mrf.mxu0
        %v3544 = vadd.f32 0.0, %v3543
        %v3545 = vpop.f32.mrf.mxu0
        %3546 = vmatprep.mubr.bf16.mxu0 0
        %3547 = vmatmul.mubr.bf16.gmra.mxu0 %v3488
        %v3548 = vpop.f32.mrf.mxu0
        %v3549 = vadd.f32 0.0, %v3548
        %v3550 = vpop.f32.mrf.mxu0
        %v3551 = vpop.f32.mrf.mxu0
        %v3552 = vadd.f32 0.0, %v3551
        %v3553 = vpop.f32.mrf.mxu0
        %3554 = vdwg.mxu0
        %3571 = vrot.lane.b32.xlu0 %v3432, 32
        %v3572 = vpop.permute.xlu0 %3571
        %3573 = vrot.lane.b32.xlu0 %v3435, 32
        %v3574 = vpop.permute.xlu0 %3573
        %3575 = vrot.lane.b32.xlu0 %v3440, 32
        %v3576 = vpop.permute.xlu0 %3575
        %3577 = vrot.lane.b32.xlu0 %v3443, 32
        %v3578 = vpop.permute.xlu0 %3577
        %3579 = vrot.lane.b32.xlu0 %v3448, 32
        %v3580 = vpop.permute.xlu0 %3579
        %3581 = vrot.lane.b32.xlu0 %v3451, 32
        %v3582 = vpop.permute.xlu0 %3581
        %3583 = vrot.lane.b32.xlu0 %v3456, 32
        %v3584 = vpop.permute.xlu0 %3583
        %3585 = vrot.lane.b32.xlu0 %v3459, 32
        %v3586 = vpop.permute.xlu0 %3585
        %3587 = vrot.lane.b32.xlu0 %v3525, 32
        %v3588 = vpop.permute.xlu0 %3587
        %3589 = vrot.lane.b32.xlu0 %v3528, 32
        %v3590 = vpop.permute.xlu0 %3589
        %3591 = vrot.lane.b32.xlu0 %v3533, 32
        %v3592 = vpop.permute.xlu0 %3591
        %3593 = vrot.lane.b32.xlu0 %v3536, 32
        %v3594 = vpop.permute.xlu0 %3593
        %3595 = vrot.lane.b32.xlu0 %v3541, 32
        %v3596 = vpop.permute.xlu0 %3595
        %3597 = vrot.lane.b32.xlu0 %v3544, 32
        %v3598 = vpop.permute.xlu0 %3597
        %3599 = vrot.lane.b32.xlu0 %v3549, 32
        %v3600 = vpop.permute.xlu0 %3599
        %3601 = vrot.lane.b32.xlu0 %v3552, 32
        %v3602 = vpop.permute.xlu0 %3601
        %vm3619 = vcmask 523520
        %3620 = vst.msk [vmem:[#allocation2] sm:$0xff] %vm3619, %v3572
        %3621 = vst.msk [vmem:[#allocation2 + $0x8] sm:$0xff] %vm3619, %v3574
        %3622 = vst.msk [vmem:[#allocation2 + $0x10] sm:$0xff] %vm3619, %v3576
        %3623 = vst.msk [vmem:[#allocation2 + $0x18] sm:$0xff] %vm3619, %v3578
        %3624 = vst.msk [vmem:[#allocation2 + $0x20] sm:$0xff] %vm3619, %v3580
        %3625 = vst.msk [vmem:[#allocation2 + $0x28] sm:$0xff] %vm3619, %v3582
        %3626 = vst.msk [vmem:[#allocation2 + $0x30] sm:$0xff] %vm3619, %v3584
        %3627 = vst.msk [vmem:[#allocation2 + $0x38] sm:$0xff] %vm3619, %v3586
        %3628 = vst.msk [vmem:[#allocation2 + $0x40] sm:$0xff] %vm3619, %v3588
        %3629 = vst.msk [vmem:[#allocation2 + $0x48] sm:$0xff] %vm3619, %v3590
        %3630 = vst.msk [vmem:[#allocation2 + $0x50] sm:$0xff] %vm3619, %v3592
        %3631 = vst.msk [vmem:[#allocation2 + $0x58] sm:$0xff] %vm3619, %v3594
        %3632 = vst.msk [vmem:[#allocation2 + $0x60] sm:$0xff] %vm3619, %v3596
        %3633 = vst.msk [vmem:[#allocation2 + $0x68] sm:$0xff] %vm3619, %v3598
        %3634 = vst.msk [vmem:[#allocation2 + $0x70] sm:$0xff] %vm3619, %v3600
        %3635 = vst.msk [vmem:[#allocation2 + $0x78] sm:$0xff] %vm3619, %v3602
        %3636 = vrot.lane.b32.xlu0 %v859, 64
        %v3637 = vpop.permute.xlu0 %3636
        %3638 = vrot.lane.b32.xlu0 %v860, 64
        %v3639 = vpop.permute.xlu0 %3638
        %3640 = vrot.lane.b32.xlu0 %v861, 64
        %v3641 = vpop.permute.xlu0 %3640
        %3642 = vrot.lane.b32.xlu0 %v862, 64
        %v3643 = vpop.permute.xlu0 %3642
        %v3649 = vsel %vm1046, %v3183, 0
        %v3652 = vsel %vm1046, %v3184, 0
        %v3655 = vsel %vm1046, %v3185, 0
        %v3658 = vsel %vm1046, %v3186, 0
        %3660 = vmatprep.subr.bf16.mxu0 0
        %3661 = vmatpush1.bf16.msra.mxu0 0
        %3662 = vmatprep.subr.bf16.mxu0 0
        %3663 = vmatpush1.bf16.msra.mxu0 0
        %3664 = vmatprep.subr.bf16.mxu0 0
        %3665 = vmatpush1.bf16.msra.mxu0 0
        %3666 = vmatprep.subr.bf16.mxu0 0
        %3667 = vmatpush1.bf16.msra.mxu0 0
        %3668 = vmatprep.subr.bf16.mxu0 0
        %3669 = vmatpush1.bf16.msra.mxu0 %v3643
        %3670 = vmatprep.subr.bf16.mxu0 0
        %3671 = vmatpush1.bf16.msra.mxu0 %v3641
        %3672 = vmatprep.subr.bf16.mxu0 0
        %3673 = vmatpush1.bf16.msra.mxu0 %v3639
        %3674 = vmatprep.subr.bf16.mxu0 0
        %3675 = vmatpush1.bf16.msra.mxu0 %v3637
        %3676 = vmatprep.subr.bf16.mxu0 0
        %3677 = vmatpush2.bf16.msra.mxu0 0
        %3678 = vmatprep.subr.bf16.mxu0 0
        %3679 = vmatpush2.bf16.msra.mxu0 0
        %3680 = vmatprep.subr.bf16.mxu0 0
        %3681 = vmatpush2.bf16.msra.mxu0 0
        %3682 = vmatprep.subr.bf16.mxu0 0
        %3683 = vmatpush2.bf16.msra.mxu0 0
        %3684 = vmatprep.subr.bf16.mxu0 0
        %3685 = vmatpush2.bf16.msra.mxu0 0
        %3686 = vmatprep.subr.bf16.mxu0 0
        %3687 = vmatpush2.bf16.msra.mxu0 0
        %3688 = vmatprep.subr.bf16.mxu0 0
        %3689 = vmatpush2.bf16.msra.mxu0 0
        %3690 = vmatprep.subr.bf16.mxu0 0
        %3691 = vmatpush2.bf16.msra.mxu0 0
        %3692 = vmatprep.mubr.bf16.mxu0 0
        %3693 = vmatmul.mubr.bf16.gmra.mxu0 %v3649
        %v3694 = vpop.f32.mrf.mxu0
        %v3695 = vadd.f32 0.0, %v3694
        %v3696 = vpop.f32.mrf.mxu0
        %v3697 = vpop.f32.mrf.mxu0
        %v3698 = vadd.f32 0.0, %v3697
        %v3699 = vpop.f32.mrf.mxu0
        %3700 = vmatprep.mubr.bf16.mxu0 0
        %3701 = vmatmul.mubr.bf16.gmra.mxu0 %v3652
        %v3702 = vpop.f32.mrf.mxu0
        %v3703 = vadd.f32 0.0, %v3702
        %v3704 = vpop.f32.mrf.mxu0
        %v3705 = vpop.f32.mrf.mxu0
        %v3706 = vadd.f32 0.0, %v3705
        %v3707 = vpop.f32.mrf.mxu0
        %3708 = vmatprep.mubr.bf16.mxu0 0
        %3709 = vmatmul.mubr.bf16.gmra.mxu0 %v3655
        %v3710 = vpop.f32.mrf.mxu0
        %v3711 = vadd.f32 0.0, %v3710
        %v3712 = vpop.f32.mrf.mxu0
        %v3713 = vpop.f32.mrf.mxu0
        %v3714 = vadd.f32 0.0, %v3713
        %v3715 = vpop.f32.mrf.mxu0
        %3716 = vmatprep.mubr.bf16.mxu0 0
        %3717 = vmatmul.mubr.bf16.gmra.mxu0 %v3658
        %v3718 = vpop.f32.mrf.mxu0
        %v3719 = vadd.f32 0.0, %v3718
        %v3720 = vpop.f32.mrf.mxu0
        %v3721 = vpop.f32.mrf.mxu0
        %v3722 = vadd.f32 0.0, %v3721
        %v3723 = vpop.f32.mrf.mxu0
        %3724 = vdwg.mxu0
        %3725 = vrot.lane.b32.xlu0 %v863, 64
        %v3726 = vpop.permute.xlu0 %3725
        %3727 = vrot.lane.b32.xlu0 %v864, 64
        %v3728 = vpop.permute.xlu0 %3727
        %3729 = vrot.lane.b32.xlu0 %v865, 64
        %v3730 = vpop.permute.xlu0 %3729
        %3731 = vrot.lane.b32.xlu0 %v866, 64
        %v3732 = vpop.permute.xlu0 %3731
        %v3738 = vsel %vm1046, %v3187, 0
        %v3741 = vsel %vm1046, %v3188, 0
        %v3744 = vsel %vm1046, %v3189, 0
        %v3747 = vsel %vm1046, %v3190, 0
        %3749 = vmatprep.subr.bf16.mxu0 0
        %3750 = vmatpush1.bf16.msra.mxu0 0
        %3751 = vmatprep.subr.bf16.mxu0 0
        %3752 = vmatpush1.bf16.msra.mxu0 0
        %3753 = vmatprep.subr.bf16.mxu0 0
        %3754 = vmatpush1.bf16.msra.mxu0 0
        %3755 = vmatprep.subr.bf16.mxu0 0
        %3756 = vmatpush1.bf16.msra.mxu0 0
        %3757 = vmatprep.subr.bf16.mxu0 0
        %3758 = vmatpush1.bf16.msra.mxu0 %v3732
        %3759 = vmatprep.subr.bf16.mxu0 0
        %3760 = vmatpush1.bf16.msra.mxu0 %v3730
        %3761 = vmatprep.subr.bf16.mxu0 0
        %3762 = vmatpush1.bf16.msra.mxu0 %v3728
        %3763 = vmatprep.subr.bf16.mxu0 0
        %3764 = vmatpush1.bf16.msra.mxu0 %v3726
        %3765 = vmatprep.subr.bf16.mxu0 0
        %3766 = vmatpush2.bf16.msra.mxu0 0
        %3767 = vmatprep.subr.bf16.mxu0 0
        %3768 = vmatpush2.bf16.msra.mxu0 0
        %3769 = vmatprep.subr.bf16.mxu0 0
        %3770 = vmatpush2.bf16.msra.mxu0 0
        %3771 = vmatprep.subr.bf16.mxu0 0
        %3772 = vmatpush2.bf16.msra.mxu0 0
        %3773 = vmatprep.subr.bf16.mxu0 0
        %3774 = vmatpush2.bf16.msra.mxu0 0
        %3775 = vmatprep.subr.bf16.mxu0 0
        %3776 = vmatpush2.bf16.msra.mxu0 0
        %3777 = vmatprep.subr.bf16.mxu0 0
        %3778 = vmatpush2.bf16.msra.mxu0 0
        %3779 = vmatprep.subr.bf16.mxu0 0
        %3780 = vmatpush2.bf16.msra.mxu0 0
        %3781 = vmatprep.mubr.bf16.mxu0 0
        %3782 = vmatmul.mubr.bf16.gmra.mxu0 %v3738
        %v3783 = vpop.f32.mrf.mxu0
        %v3784 = vadd.f32 0.0, %v3783
        %v3785 = vpop.f32.mrf.mxu0
        %v3786 = vpop.f32.mrf.mxu0
        %v3787 = vadd.f32 0.0, %v3786
        %v3788 = vpop.f32.mrf.mxu0
        %3789 = vmatprep.mubr.bf16.mxu0 0
        %3790 = vmatmul.mubr.bf16.gmra.mxu0 %v3741
        %v3791 = vpop.f32.mrf.mxu0
        %v3792 = vadd.f32 0.0, %v3791
        %v3793 = vpop.f32.mrf.mxu0
        %v3794 = vpop.f32.mrf.mxu0
        %v3795 = vadd.f32 0.0, %v3794
        %v3796 = vpop.f32.mrf.mxu0
        %3797 = vmatprep.mubr.bf16.mxu0 0
        %3798 = vmatmul.mubr.bf16.gmra.mxu0 %v3744
        %v3799 = vpop.f32.mrf.mxu0
        %v3800 = vadd.f32 0.0, %v3799
        %v3801 = vpop.f32.mrf.mxu0
        %v3802 = vpop.f32.mrf.mxu0
        %v3803 = vadd.f32 0.0, %v3802
        %v3804 = vpop.f32.mrf.mxu0
        %3805 = vmatprep.mubr.bf16.mxu0 0
        %3806 = vmatmul.mubr.bf16.gmra.mxu0 %v3747
        %v3807 = vpop.f32.mrf.mxu0
        %v3808 = vadd.f32 0.0, %v3807
        %v3809 = vpop.f32.mrf.mxu0
        %v3810 = vpop.f32.mrf.mxu0
        %v3811 = vadd.f32 0.0, %v3810
        %v3812 = vpop.f32.mrf.mxu0
        %3813 = vdwg.mxu0
        %3830 = vrot.lane.b32.xlu0 %v3695, 64
        %v3831 = vpop.permute.xlu0 %3830
        %3832 = vrot.lane.b32.xlu0 %v3698, 64
        %v3833 = vpop.permute.xlu0 %3832
        %3834 = vrot.lane.b32.xlu0 %v3703, 64
        %v3835 = vpop.permute.xlu0 %3834
        %3836 = vrot.lane.b32.xlu0 %v3706, 64
        %v3837 = vpop.permute.xlu0 %3836
        %3838 = vrot.lane.b32.xlu0 %v3711, 64
        %v3839 = vpop.permute.xlu0 %3838
        %3840 = vrot.lane.b32.xlu0 %v3714, 64
        %v3841 = vpop.permute.xlu0 %3840
        %3842 = vrot.lane.b32.xlu0 %v3719, 64
        %v3843 = vpop.permute.xlu0 %3842
        %3844 = vrot.lane.b32.xlu0 %v3722, 64
        %v3845 = vpop.permute.xlu0 %3844
        %3846 = vrot.lane.b32.xlu0 %v3784, 64
        %v3847 = vpop.permute.xlu0 %3846
        %3848 = vrot.lane.b32.xlu0 %v3787, 64
        %v3849 = vpop.permute.xlu0 %3848
        %3850 = vrot.lane.b32.xlu0 %v3792, 64
        %v3851 = vpop.permute.xlu0 %3850
        %3852 = vrot.lane.b32.xlu0 %v3795, 64
        %v3853 = vpop.permute.xlu0 %3852
        %3854 = vrot.lane.b32.xlu0 %v3800, 64
        %v3855 = vpop.permute.xlu0 %3854
        %3856 = vrot.lane.b32.xlu0 %v3803, 64
        %v3857 = vpop.permute.xlu0 %3856
        %3858 = vrot.lane.b32.xlu0 %v3808, 64
        %v3859 = vpop.permute.xlu0 %3858
        %3860 = vrot.lane.b32.xlu0 %v3811, 64
        %v3861 = vpop.permute.xlu0 %3860
        %vm3878 = vcmask 785920
        %3879 = vst.msk [vmem:[#allocation2] sm:$0xff] %vm3878, %v3831
        %3880 = vst.msk [vmem:[#allocation2 + $0x8] sm:$0xff] %vm3878, %v3833
        %3881 = vst.msk [vmem:[#allocation2 + $0x10] sm:$0xff] %vm3878, %v3835
        %3882 = vst.msk [vmem:[#allocation2 + $0x18] sm:$0xff] %vm3878, %v3837
        %3883 = vst.msk [vmem:[#allocation2 + $0x20] sm:$0xff] %vm3878, %v3839
        %3884 = vst.msk [vmem:[#allocation2 + $0x28] sm:$0xff] %vm3878, %v3841
        %3885 = vst.msk [vmem:[#allocation2 + $0x30] sm:$0xff] %vm3878, %v3843
        %3886 = vst.msk [vmem:[#allocation2 + $0x38] sm:$0xff] %vm3878, %v3845
        %3887 = vst.msk [vmem:[#allocation2 + $0x40] sm:$0xff] %vm3878, %v3847
        %3888 = vst.msk [vmem:[#allocation2 + $0x48] sm:$0xff] %vm3878, %v3849
        %3889 = vst.msk [vmem:[#allocation2 + $0x50] sm:$0xff] %vm3878, %v3851
        %3890 = vst.msk [vmem:[#allocation2 + $0x58] sm:$0xff] %vm3878, %v3853
        %3891 = vst.msk [vmem:[#allocation2 + $0x60] sm:$0xff] %vm3878, %v3855
        %3892 = vst.msk [vmem:[#allocation2 + $0x68] sm:$0xff] %vm3878, %v3857
        %3893 = vst.msk [vmem:[#allocation2 + $0x70] sm:$0xff] %vm3878, %v3859
        %3894 = vst.msk [vmem:[#allocation2 + $0x78] sm:$0xff] %vm3878, %v3861
        %3895 = vrot.lane.b32.xlu0 %v859, 32
        %v3896 = vpop.permute.xlu0 %3895
        %3897 = vrot.lane.b32.xlu0 %v860, 32
        %v3898 = vpop.permute.xlu0 %3897
        %3899 = vrot.lane.b32.xlu0 %v861, 32
        %v3900 = vpop.permute.xlu0 %3899
        %3901 = vrot.lane.b32.xlu0 %v862, 32
        %v3902 = vpop.permute.xlu0 %3901
        %v3908 = vsel %vm1046, %v3191, 0
        %v3911 = vsel %vm1046, %v3192, 0
        %v3914 = vsel %vm1046, %v3193, 0
        %v3917 = vsel %vm1046, %v3194, 0
        %3919 = vmatprep.subr.bf16.mxu0 0
        %3920 = vmatpush1.bf16.msra.mxu0 0
        %3921 = vmatprep.subr.bf16.mxu0 0
        %3922 = vmatpush1.bf16.msra.mxu0 0
        %3923 = vmatprep.subr.bf16.mxu0 0
        %3924 = vmatpush1.bf16.msra.mxu0 0
        %3925 = vmatprep.subr.bf16.mxu0 0
        %3926 = vmatpush1.bf16.msra.mxu0 0
        %3927 = vmatprep.subr.bf16.mxu0 0
        %3928 = vmatpush1.bf16.msra.mxu0 %v3902
        %3929 = vmatprep.subr.bf16.mxu0 0
        %3930 = vmatpush1.bf16.msra.mxu0 %v3900
        %3931 = vmatprep.subr.bf16.mxu0 0
        %3932 = vmatpush1.bf16.msra.mxu0 %v3898
        %3933 = vmatprep.subr.bf16.mxu0 0
        %3934 = vmatpush1.bf16.msra.mxu0 %v3896
        %3935 = vmatprep.subr.bf16.mxu0 0
        %3936 = vmatpush2.bf16.msra.mxu0 0
        %3937 = vmatprep.subr.bf16.mxu0 0
        %3938 = vmatpush2.bf16.msra.mxu0 0
        %3939 = vmatprep.subr.bf16.mxu0 0
        %3940 = vmatpush2.bf16.msra.mxu0 0
        %3941 = vmatprep.subr.bf16.mxu0 0
        %3942 = vmatpush2.bf16.msra.mxu0 0
        %3943 = vmatprep.subr.bf16.mxu0 0
        %3944 = vmatpush2.bf16.msra.mxu0 0
        %3945 = vmatprep.subr.bf16.mxu0 0
        %3946 = vmatpush2.bf16.msra.mxu0 0
        %3947 = vmatprep.subr.bf16.mxu0 0
        %3948 = vmatpush2.bf16.msra.mxu0 0
        %3949 = vmatprep.subr.bf16.mxu0 0
        %3950 = vmatpush2.bf16.msra.mxu0 0
        %3951 = vmatprep.mubr.bf16.mxu0 0
        %3952 = vmatmul.mubr.bf16.gmra.mxu0 %v3908
        %v3953 = vpop.f32.mrf.mxu0
        %v3954 = vadd.f32 0.0, %v3953
        %v3955 = vpop.f32.mrf.mxu0
        %v3956 = vpop.f32.mrf.mxu0
        %v3957 = vadd.f32 0.0, %v3956
        %v3958 = vpop.f32.mrf.mxu0
        %3959 = vmatprep.mubr.bf16.mxu0 0
        %3960 = vmatmul.mubr.bf16.gmra.mxu0 %v3911
        %v3961 = vpop.f32.mrf.mxu0
        %v3962 = vadd.f32 0.0, %v3961
        %v3963 = vpop.f32.mrf.mxu0
        %v3964 = vpop.f32.mrf.mxu0
        %v3965 = vadd.f32 0.0, %v3964
        %v3966 = vpop.f32.mrf.mxu0
        %3967 = vmatprep.mubr.bf16.mxu0 0
        %3968 = vmatmul.mubr.bf16.gmra.mxu0 %v3914
        %v3969 = vpop.f32.mrf.mxu0
        %v3970 = vadd.f32 0.0, %v3969
        %v3971 = vpop.f32.mrf.mxu0
        %v3972 = vpop.f32.mrf.mxu0
        %v3973 = vadd.f32 0.0, %v3972
        %v3974 = vpop.f32.mrf.mxu0
        %3975 = vmatprep.mubr.bf16.mxu0 0
        %3976 = vmatmul.mubr.bf16.gmra.mxu0 %v3917
        %v3977 = vpop.f32.mrf.mxu0
        %v3978 = vadd.f32 0.0, %v3977
        %v3979 = vpop.f32.mrf.mxu0
        %v3980 = vpop.f32.mrf.mxu0
        %v3981 = vadd.f32 0.0, %v3980
        %v3982 = vpop.f32.mrf.mxu0
        %3983 = vdwg.mxu0
        %3984 = vrot.lane.b32.xlu0 %v863, 32
        %v3985 = vpop.permute.xlu0 %3984
        %3986 = vrot.lane.b32.xlu0 %v864, 32
        %v3987 = vpop.permute.xlu0 %3986
        %3988 = vrot.lane.b32.xlu0 %v865, 32
        %v3989 = vpop.permute.xlu0 %3988
        %3990 = vrot.lane.b32.xlu0 %v866, 32
        %v3991 = vpop.permute.xlu0 %3990
        %v3997 = vsel %vm1046, %v3195, 0
        %v4000 = vsel %vm1046, %v3196, 0
        %v4003 = vsel %vm1046, %v3197, 0
        %v4006 = vsel %vm1046, %v3198, 0
        %4008 = vmatprep.subr.bf16.mxu0 0
        %4009 = vmatpush1.bf16.msra.mxu0 0
        %4010 = vmatprep.subr.bf16.mxu0 0
        %4011 = vmatpush1.bf16.msra.mxu0 0
        %4012 = vmatprep.subr.bf16.mxu0 0
        %4013 = vmatpush1.bf16.msra.mxu0 0
        %4014 = vmatprep.subr.bf16.mxu0 0
        %4015 = vmatpush1.bf16.msra.mxu0 0
        %4016 = vmatprep.subr.bf16.mxu0 0
        %4017 = vmatpush1.bf16.msra.mxu0 %v3991
        %4018 = vmatprep.subr.bf16.mxu0 0
        %4019 = vmatpush1.bf16.msra.mxu0 %v3989
        %4020 = vmatprep.subr.bf16.mxu0 0
        %4021 = vmatpush1.bf16.msra.mxu0 %v3987
        %4022 = vmatprep.subr.bf16.mxu0 0
        %4023 = vmatpush1.bf16.msra.mxu0 %v3985
        %4024 = vmatprep.subr.bf16.mxu0 0
        %4025 = vmatpush2.bf16.msra.mxu0 0
        %4026 = vmatprep.subr.bf16.mxu0 0
        %4027 = vmatpush2.bf16.msra.mxu0 0
        %4028 = vmatprep.subr.bf16.mxu0 0
        %4029 = vmatpush2.bf16.msra.mxu0 0
        %4030 = vmatprep.subr.bf16.mxu0 0
        %4031 = vmatpush2.bf16.msra.mxu0 0
        %4032 = vmatprep.subr.bf16.mxu0 0
        %4033 = vmatpush2.bf16.msra.mxu0 0
        %4034 = vmatprep.subr.bf16.mxu0 0
        %4035 = vmatpush2.bf16.msra.mxu0 0
        %4036 = vmatprep.subr.bf16.mxu0 0
        %4037 = vmatpush2.bf16.msra.mxu0 0
        %4038 = vmatprep.subr.bf16.mxu0 0
        %4039 = vmatpush2.bf16.msra.mxu0 0
        %4040 = vmatprep.mubr.bf16.mxu0 0
        %4041 = vmatmul.mubr.bf16.gmra.mxu0 %v3997
        %v4042 = vpop.f32.mrf.mxu0
        %v4043 = vadd.f32 0.0, %v4042
        %v4044 = vpop.f32.mrf.mxu0
        %v4045 = vpop.f32.mrf.mxu0
        %v4046 = vadd.f32 0.0, %v4045
        %v4047 = vpop.f32.mrf.mxu0
        %4048 = vmatprep.mubr.bf16.mxu0 0
        %4049 = vmatmul.mubr.bf16.gmra.mxu0 %v4000
        %v4050 = vpop.f32.mrf.mxu0
        %v4051 = vadd.f32 0.0, %v4050
        %v4052 = vpop.f32.mrf.mxu0
        %v4053 = vpop.f32.mrf.mxu0
        %v4054 = vadd.f32 0.0, %v4053
        %v4055 = vpop.f32.mrf.mxu0
        %4056 = vmatprep.mubr.bf16.mxu0 0
        %4057 = vmatmul.mubr.bf16.gmra.mxu0 %v4003
        %v4058 = vpop.f32.mrf.mxu0
        %v4059 = vadd.f32 0.0, %v4058
        %v4060 = vpop.f32.mrf.mxu0
        %v4061 = vpop.f32.mrf.mxu0
        %v4062 = vadd.f32 0.0, %v4061
        %v4063 = vpop.f32.mrf.mxu0
        %4064 = vmatprep.mubr.bf16.mxu0 0
        %4065 = vmatmul.mubr.bf16.gmra.mxu0 %v4006
        %v4066 = vpop.f32.mrf.mxu0
        %v4067 = vadd.f32 0.0, %v4066
        %v4068 = vpop.f32.mrf.mxu0
        %v4069 = vpop.f32.mrf.mxu0
        %v4070 = vadd.f32 0.0, %v4069
        %v4071 = vpop.f32.mrf.mxu0
        %4072 = vdwg.mxu0
        %4089 = vrot.lane.b32.xlu0 %v3954, 96
        %v4090 = vpop.permute.xlu0 %4089
        %4091 = vrot.lane.b32.xlu0 %v3957, 96
        %v4092 = vpop.permute.xlu0 %4091
        %4093 = vrot.lane.b32.xlu0 %v3962, 96
        %v4094 = vpop.permute.xlu0 %4093
        %4095 = vrot.lane.b32.xlu0 %v3965, 96
        %v4096 = vpop.permute.xlu0 %4095
        %4097 = vrot.lane.b32.xlu0 %v3970, 96
        %v4098 = vpop.permute.xlu0 %4097
        %4099 = vrot.lane.b32.xlu0 %v3973, 96
        %v4100 = vpop.permute.xlu0 %4099
        %4101 = vrot.lane.b32.xlu0 %v3978, 96
        %v4102 = vpop.permute.xlu0 %4101
        %4103 = vrot.lane.b32.xlu0 %v3981, 96
        %v4104 = vpop.permute.xlu0 %4103
        %4105 = vrot.lane.b32.xlu0 %v4043, 96
        %v4106 = vpop.permute.xlu0 %4105
        %4107 = vrot.lane.b32.xlu0 %v4046, 96
        %v4108 = vpop.permute.xlu0 %4107
        %4109 = vrot.lane.b32.xlu0 %v4051, 96
        %v4110 = vpop.permute.xlu0 %4109
        %4111 = vrot.lane.b32.xlu0 %v4054, 96
        %v4112 = vpop.permute.xlu0 %4111
        %4113 = vrot.lane.b32.xlu0 %v4059, 96
        %v4114 = vpop.permute.xlu0 %4113
        %4115 = vrot.lane.b32.xlu0 %v4062, 96
        %v4116 = vpop.permute.xlu0 %4115
        %4117 = vrot.lane.b32.xlu0 %v4067, 96
        %v4118 = vpop.permute.xlu0 %4117
        %4119 = vrot.lane.b32.xlu0 %v4070, 96
        %v4120 = vpop.permute.xlu0 %4119
        %vm4137 = vcmask 1048320
        %4138 = vst.msk [vmem:[#allocation2] sm:$0xff] %vm4137, %v4090
        %4139 = vst.msk [vmem:[#allocation2 + $0x8] sm:$0xff] %vm4137, %v4092
        %4140 = vst.msk [vmem:[#allocation2 + $0x10] sm:$0xff] %vm4137, %v4094
        %4141 = vst.msk [vmem:[#allocation2 + $0x18] sm:$0xff] %vm4137, %v4096
        %4142 = vst.msk [vmem:[#allocation2 + $0x20] sm:$0xff] %vm4137, %v4098
        %4143 = vst.msk [vmem:[#allocation2 + $0x28] sm:$0xff] %vm4137, %v4100
        %4144 = vst.msk [vmem:[#allocation2 + $0x30] sm:$0xff] %vm4137, %v4102
        %4145 = vst.msk [vmem:[#allocation2 + $0x38] sm:$0xff] %vm4137, %v4104
        %4146 = vst.msk [vmem:[#allocation2 + $0x40] sm:$0xff] %vm4137, %v4106
        %4147 = vst.msk [vmem:[#allocation2 + $0x48] sm:$0xff] %vm4137, %v4108
        %4148 = vst.msk [vmem:[#allocation2 + $0x50] sm:$0xff] %vm4137, %v4110
        %4149 = vst.msk [vmem:[#allocation2 + $0x58] sm:$0xff] %vm4137, %v4112
        %4150 = vst.msk [vmem:[#allocation2 + $0x60] sm:$0xff] %vm4137, %v4114
        %4151 = vst.msk [vmem:[#allocation2 + $0x68] sm:$0xff] %vm4137, %v4116
        %4152 = vst.msk [vmem:[#allocation2 + $0x70] sm:$0xff] %vm4137, %v4118
        %4153 = vst.msk [vmem:[#allocation2 + $0x78] sm:$0xff] %vm4137, %v4120
        %v4154 = vld [vmem:[#allocation2] sm:$0xff]
        %v4155 = vld [vmem:[#allocation2 + $0x8] sm:$0xff]
        %v4156 = vld [vmem:[#allocation2 + $0x10] sm:$0xff]
        %v4157 = vld [vmem:[#allocation2 + $0x18] sm:$0xff]
        %v4158 = vld [vmem:[#allocation2 + $0x20] sm:$0xff]
        %v4159 = vld [vmem:[#allocation2 + $0x28] sm:$0xff]
        %v4160 = vld [vmem:[#allocation2 + $0x30] sm:$0xff]
        %v4161 = vld [vmem:[#allocation2 + $0x38] sm:$0xff]
        %v4162 = vld [vmem:[#allocation2 + $0x40] sm:$0xff]
        %v4163 = vld [vmem:[#allocation2 + $0x48] sm:$0xff]
        %v4164 = vld [vmem:[#allocation2 + $0x50] sm:$0xff]
        %v4165 = vld [vmem:[#allocation2 + $0x58] sm:$0xff]
        %v4166 = vld [vmem:[#allocation2 + $0x60] sm:$0xff]
        %v4167 = vld [vmem:[#allocation2 + $0x68] sm:$0xff]
        %v4168 = vld [vmem:[#allocation2 + $0x70] sm:$0xff]
        %v4169 = vld [vmem:[#allocation2 + $0x78] sm:$0xff]
        %v4170 = vpack.c.bf16 %v4155, %v4154
        %v4171 = vpack.c.bf16 %v4157, %v4156
        %v4172 = vpack.c.bf16 %v4159, %v4158
        %v4173 = vpack.c.bf16 %v4161, %v4160
        %v4174 = vpack.c.bf16 %v4163, %v4162
        %v4175 = vpack.c.bf16 %v4165, %v4164
        %v4176 = vpack.c.bf16 %v4167, %v4166
        %v4177 = vpack.c.bf16 %v4169, %v4168
        %v4178 = vld [vmem:[%s2] sm:$0xf]
        %v4179 = vld [vmem:[%s2 + $0x4] sm:$0xf]
        %v4180 = vld [vmem:[%s2 + $0x8] sm:$0xf]
        %v4181 = vld [vmem:[%s2 + $0xc] sm:$0xf]
        %v4182 = vld [vmem:[%s2 + $0x10] sm:$0xf]
        %v4183 = vld [vmem:[%s2 + $0x14] sm:$0xf]
        %v4184 = vld [vmem:[%s2 + $0x18] sm:$0xf]
        %v4185 = vld [vmem:[%s2 + $0x1c] sm:$0xf]
        %v4186 = vld [vmem:[%s2 + $0x20] sm:$0xf]
        %v4187 = vld [vmem:[%s2 + $0x24] sm:$0xf]
        %v4188 = vld [vmem:[%s2 + $0x28] sm:$0xf]
        %v4189 = vld [vmem:[%s2 + $0x2c] sm:$0xf]
        %v4190 = vld [vmem:[%s2 + $0x30] sm:$0xf]
        %v4191 = vld [vmem:[%s2 + $0x34] sm:$0xf]
        %v4192 = vld [vmem:[%s2 + $0x38] sm:$0xf]
        %v4193 = vld [vmem:[%s2 + $0x3c] sm:$0xf]
        %v4194 = vld [vmem:[#allocation3] sm:$0x1]
        %v4196 = vlaneseq
        %v4197 = vshrl.u32 %v4196, 7
        %v4198 = vsub.s32 0, %v4197
        %v4199 = vrot.slane %v4194, %v4198
        %v4217 = vunpack.c.l.b16 %v4178
        %v4218 = vunpack.c.l.b16 %v4179
        %v4219 = vunpack.c.l.b16 %v4180
        %v4220 = vunpack.c.l.b16 %v4181
        %v4221 = vunpack.c.l.b16 %v4182
        %v4222 = vunpack.c.l.b16 %v4183
        %v4223 = vunpack.c.l.b16 %v4184
        %v4224 = vunpack.c.l.b16 %v4185
        %v4225 = vunpack.c.l.b16 %v4186
        %v4226 = vunpack.c.l.b16 %v4187
        %v4227 = vunpack.c.l.b16 %v4188
        %v4228 = vunpack.c.l.b16 %v4189
        %v4229 = vunpack.c.l.b16 %v4190
        %v4230 = vunpack.c.l.b16 %v4191
        %v4231 = vunpack.c.l.b16 %v4192
        %v4232 = vunpack.c.l.b16 %v4193
        %v4233 = vpack.c.b16 %v4218, %v4217
        %v4234 = vpack.c.b16 %v4220, %v4219
        %v4235 = vpack.c.b16 %v4222, %v4221
        %v4236 = vpack.c.b16 %v4224, %v4223
        %v4237 = vpack.c.b16 %v4226, %v4225
        %v4238 = vpack.c.b16 %v4228, %v4227
        %v4239 = vpack.c.b16 %v4230, %v4229
        %v4240 = vpack.c.b16 %v4232, %v4231
        %4249 = vmatprep.subr.bf16.mxu0 0
        %4250 = vmatpush1.bf16.msra.mxu0 %v4240
        %4251 = vmatprep.subr.bf16.mxu0 0
        %4252 = vmatpush1.bf16.msra.mxu0 %v4239
        %4253 = vmatprep.subr.bf16.mxu0 0
        %4254 = vmatpush1.bf16.msra.mxu0 %v4238
        %4255 = vmatprep.subr.bf16.mxu0 0
        %4256 = vmatpush1.bf16.msra.mxu0 %v4237
        %4257 = vmatprep.subr.bf16.mxu0 0
        %4258 = vmatpush1.bf16.msra.mxu0 %v4236
        %4259 = vmatprep.subr.bf16.mxu0 0
        %4260 = vmatpush1.bf16.msra.mxu0 %v4235
        %4261 = vmatprep.subr.bf16.mxu0 0
        %4262 = vmatpush1.bf16.msra.mxu0 %v4234
        %4263 = vmatprep.subr.bf16.mxu0 0
        %4264 = vmatpush1.bf16.msra.mxu0 %v4233
        %4265 = vmatprep.subr.bf16.mxu0 0
        %4266 = vmatpush2.bf16.msra.mxu0 0
        %4267 = vmatprep.subr.bf16.mxu0 0
        %4268 = vmatpush2.bf16.msra.mxu0 0
        %4269 = vmatprep.subr.bf16.mxu0 0
        %4270 = vmatpush2.bf16.msra.mxu0 0
        %4271 = vmatprep.subr.bf16.mxu0 0
        %4272 = vmatpush2.bf16.msra.mxu0 0
        %4273 = vmatprep.subr.bf16.mxu0 0
        %4274 = vmatpush2.bf16.msra.mxu0 0
        %4275 = vmatprep.subr.bf16.mxu0 0
        %4276 = vmatpush2.bf16.msra.mxu0 0
        %4277 = vmatprep.subr.bf16.mxu0 0
        %4278 = vmatpush2.bf16.msra.mxu0 0
        %4279 = vmatprep.subr.bf16.mxu0 0
        %4280 = vmatpush2.bf16.msra.mxu0 0
        %4281 = vmatprep.mubr.bf16.mxu0 0
        %4282 = vmatmul.mubr.bf16.gmra.mxu0 %v4170
        %v4283 = vpop.f32.mrf.mxu0
        %v4284 = vadd.f32 %v4199, %v4283
        %v4285 = vpop.f32.mrf.mxu0
        %v4286 = vpop.f32.mrf.mxu0
        %v4287 = vadd.f32 %v4199, %v4286
        %v4288 = vpop.f32.mrf.mxu0
        %4289 = vmatprep.mubr.bf16.mxu0 0
        %4290 = vmatmul.mubr.bf16.gmra.mxu0 %v4171
        %v4291 = vpop.f32.mrf.mxu0
        %v4292 = vadd.f32 %v4199, %v4291
        %v4293 = vpop.f32.mrf.mxu0
        %v4294 = vpop.f32.mrf.mxu0
        %v4295 = vadd.f32 %v4199, %v4294
        %v4296 = vpop.f32.mrf.mxu0
        %4297 = vmatprep.mubr.bf16.mxu0 0
        %4298 = vmatmul.mubr.bf16.gmra.mxu0 %v4172
        %v4299 = vpop.f32.mrf.mxu0
        %v4300 = vadd.f32 %v4199, %v4299
        %v4301 = vpop.f32.mrf.mxu0
        %v4302 = vpop.f32.mrf.mxu0
        %v4303 = vadd.f32 %v4199, %v4302
        %v4304 = vpop.f32.mrf.mxu0
        %4305 = vmatprep.mubr.bf16.mxu0 0
        %4306 = vmatmul.mubr.bf16.gmra.mxu0 %v4173
        %v4307 = vpop.f32.mrf.mxu0
        %v4308 = vadd.f32 %v4199, %v4307
        %v4309 = vpop.f32.mrf.mxu0
        %v4310 = vpop.f32.mrf.mxu0
        %v4311 = vadd.f32 %v4199, %v4310
        %v4312 = vpop.f32.mrf.mxu0
        %4313 = vmatprep.mubr.bf16.mxu0 0
        %4314 = vmatmul.mubr.bf16.gmra.mxu0 %v4174
        %v4315 = vpop.f32.mrf.mxu0
        %v4316 = vadd.f32 %v4199, %v4315
        %v4317 = vpop.f32.mrf.mxu0
        %v4318 = vpop.f32.mrf.mxu0
        %v4319 = vadd.f32 %v4199, %v4318
        %v4320 = vpop.f32.mrf.mxu0
        %4321 = vmatprep.mubr.bf16.mxu0 0
        %4322 = vmatmul.mubr.bf16.gmra.mxu0 %v4175
        %v4323 = vpop.f32.mrf.mxu0
        %v4324 = vadd.f32 %v4199, %v4323
        %v4325 = vpop.f32.mrf.mxu0
        %v4326 = vpop.f32.mrf.mxu0
        %v4327 = vadd.f32 %v4199, %v4326
        %v4328 = vpop.f32.mrf.mxu0
        %4329 = vmatprep.mubr.bf16.mxu0 0
        %4330 = vmatmul.mubr.bf16.gmra.mxu0 %v4176
        %v4331 = vpop.f32.mrf.mxu0
        %v4332 = vadd.f32 %v4199, %v4331
        %v4333 = vpop.f32.mrf.mxu0
        %v4334 = vpop.f32.mrf.mxu0
        %v4335 = vadd.f32 %v4199, %v4334
        %v4336 = vpop.f32.mrf.mxu0
        %4337 = vmatprep.mubr.bf16.mxu0 0
        %4338 = vmatmul.mubr.bf16.gmra.mxu0 %v4177
        %v4339 = vpop.f32.mrf.mxu0
        %v4340 = vadd.f32 %v4199, %v4339
        %v4341 = vpop.f32.mrf.mxu0
        %v4342 = vpop.f32.mrf.mxu0
        %v4343 = vadd.f32 %v4199, %v4342
        %v4344 = vpop.f32.mrf.mxu0
        %4345 = vdwg.mxu0
        %4346 = vst [vmem:[%s343] sm:$0xff] %v4284
        %4347 = vst [vmem:[%s343 + $0x8] sm:$0xff] %v4287
        %4348 = vst [vmem:[%s343 + $0x10] sm:$0xff] %v4292
        %4349 = vst [vmem:[%s343 + $0x18] sm:$0xff] %v4295
        %4350 = vst [vmem:[%s343 + $0x20] sm:$0xff] %v4300
        %4351 = vst [vmem:[%s343 + $0x28] sm:$0xff] %v4303
        %4352 = vst [vmem:[%s343 + $0x30] sm:$0xff] %v4308
        %4353 = vst [vmem:[%s343 + $0x38] sm:$0xff] %v4311
        %4354 = vst [vmem:[%s343 + $0x40] sm:$0xff] %v4316
        %4355 = vst [vmem:[%s343 + $0x48] sm:$0xff] %v4319
        %4356 = vst [vmem:[%s343 + $0x50] sm:$0xff] %v4324
        %4357 = vst [vmem:[%s343 + $0x58] sm:$0xff] %v4327
        %4358 = vst [vmem:[%s343 + $0x60] sm:$0xff] %v4332
        %4359 = vst [vmem:[%s343 + $0x68] sm:$0xff] %v4335
        %4360 = vst [vmem:[%s343 + $0x70] sm:$0xff] %v4340
        %4361 = vst [vmem:[%s343 + $0x78] sm:$0xff] %v4343
        %s4362 = sand.u32 %s205, 1
        %s4363 = scalar_lea.sflag [#allocation5], %s4362
        %s4364 = sand.u32 %s205, 1
        %s4365 = smul.addr %s4364, 128
        %s4366 = scalar_lea.vmem [#allocation9], %s4365
        // Predicated region
        $region65: #{cross_attention_forward.1} parent=51 // pred_check
          %p4367 = pneg %p215
        $region66: #{cross_attention_forward.1} parent=51 // pred_check_branch
          %4369 = sbr.rel (%p4367) target = $region68
        $region67: #{cross_attention_forward.1} parent=51 // pred_region
          %s4370 = smul.u32 2, %s24
          %s4372 = ssub.s32 2048, 2048
          %4373 = vsyncadd %s4363, %s4372
          %s4374 = smul.addr %s4370, 8
          %s4375 = smul.addr %s4374, 128
          %s4376 = scalar_lea.hbm %s8, %s4375
          %s4377 = sshll.u32 %s4366, 4
          %s4378 = int_to_ptr.vmem [resolvable:$true] %s4377
          %4383 = dma.vmem_to_hbm [thread:$0]  %s4378, 2048, %s4376, %s4363, 128, 128, 8
        $region68: #{cross_attention_forward.1} parent=51 // pred_fallthru
          _
      $region52: #{cross_attention_forward.1} parent=5 // pred_fallthru
        _
      %p4384 = scmp.le.s32.totalorder 2, %s19
      // Predicated region
      $region69: #{cross_attention_forward.1} parent=5 // pred_check
        %p4385 = pneg %p4384
      $region70: #{cross_attention_forward.1} parent=5 // pred_check_branch
        %4387 = sbr.rel (%p4385) target = $region72
      $region71: #{cross_attention_forward.1} parent=5 // pred_region
        %s4388 = ssub.s32 %s19, 2
        // Predicated region
        $region73: #{cross_attention_forward.1} parent=71 // pred_check
          %p4389 = pneg %p221
        $region74: #{cross_attention_forward.1} parent=71 // pred_check_branch
          %4391 = sbr.rel (%p4389) target = $region76
        $region75: #{cross_attention_forward.1} parent=71 // pred_region
          %s4392 = sand.u32 %s206, 1
          %s4393 = scalar_lea.sflag [#allocation5], %s4392
          %s4394 = sand.u32 %s206, 1
          %s4395 = smul.addr %s4394, 128
          %s4396 = scalar_lea.vmem [#allocation9], %s4395
          %4397 = dma.done %s4393, 2048
        $region76: #{cross_attention_forward.1} parent=71 // pred_fallthru
          _
      $region72: #{cross_attention_forward.1} parent=5 // pred_fallthru
        _
    $region6: #{cross_attention_forward.1} parent=1 // loop_footer
      %s23 = sadd.s32 1, %s19
    $region7: #{cross_attention_forward.1} parent=1 // loop_footer_branch
      %18 = sbr.rel target = $region3
    $region8: #{cross_attention_forward.1} parent=1 // loop_exit
      _
    %4398 = vsyncpa [#allocation4], 1
    %s4399 = scalar_lea.sflag [#allocation4], 1
    %4400 = vsyncpa %s4399, 1
    %4401 = vsyncpa [#allocation7], 1
    %4402 = vsyncpa [#allocation5], 1
    %s4403 = scalar_lea.sflag [#allocation5], 1
    %4404 = vsyncpa %s4403, 1

</llo_original>
